<compile_context>
chip_gen: v7x
topology: tpu7x:2x2x1
jax: 0.10.0
libtpu: 0.0.40
codegen_flags: <defaults>
</compile_context>

<pallas_src>
import functools

import jax
import jax.numpy as jnp
from jax import lax
from jax.experimental import pallas as pl
from jax.experimental.pallas import tpu as pltpu


def _spread_mat(w):
    """(w, 128) bf16 one-hot matrix: row b has a 1 at column 2*b + 1.

    Right-multiplying a compact row (C, w) by it performs the stride-2 zero insertion plus
    the left (K-1-padding) column on the MXU, yielding a dilated-padded 128-lane slot."""
    r = lax.broadcasted_iota(jnp.int32, (w, 128), 0)
    c = lax.broadcasted_iota(jnp.int32, (w, 128), 1)
    return (c == 2 * r + 1).astype(jnp.bfloat16)


def _fused_convt3_kernel(x_ref, w1_ref, b1_ref, w2_ref, b2_ref, w3_ref, b3_ref,
                         o_ref, x0, a1, a2, *, H0, W0, H1, OW1, H2, OW2):
    """Whole 3-layer network for one batch element.

    x_ref : (1, H0, 32, W0) f32   raw input rows in (H, C, W) layout
    wX_ref: (64, 192) bf16        block weights: rows 0:32 = even output row
                                  [kh==1 taps of data row a | zeros], rows 32:64 = odd
                                  output row [kh==0 taps of row a | kh==2 taps of row a+1];
                                  K index = kw*32 + ci inside each 96-wide block.
    bX_ref: (64, 1) f32           bias stacked twice (even / odd row halves)
    o_ref : (1, 2*H2-1, 32, 128)  final activations, lanes [OW3, 128) are scratch
    x0/a1/a2: (H, 32, 128) bf16   VMEM slabs of width-dilated-padded input rows per layer
    """
    f32, bf16 = jnp.float32, jnp.bfloat16

    def taps(row):  # kw = 0, 1, 2 shifted views of one dilated-padded (32, 128) row
        return [row[:, 0:126], row[:, 1:127], row[:, 2:128]]

    # ---- stage 0: dilate + pad the raw input rows into VMEM (replaces the XLA glue) ----
    s_in = _spread_mat(W0)
    for h in range(H0):
        row = x_ref[0, h].astype(bf16)                                     # (32, W0)
        x0[h] = jnp.dot(row, s_in, preferred_element_type=f32).astype(bf16)

    # ---- generic stride-2 ConvTranspose layer over dilated-row scratch -----------------
    def conv_layer(src, h_in, w_ref, b_ref, store):
        wp = w_ref[...]                                                    # (64, 192)
        bp = b_ref[...]                                                    # (64, 1)

        def pair(a, carry):
            ra = src[a]                                                    # (32, 128) bf16
            rb = src[a + 1]
            rhs = jnp.concatenate(taps(ra) + taps(rb), axis=0)             # (192, 126)
            y = jnp.dot(wp, rhs, preferred_element_type=f32) + bp          # (64, 126) f32
            store(2 * a, y, last=False)        # rows 0:32 -> oh=2a, rows 32:64 -> oh=2a+1
            return carry

        lax.fori_loop(0, h_in - 1, pair, 0)

        # final even output row 2*(h_in-1): only the kh==1 taps of the last data row.
        ra = src[h_in - 1]
        rhs = jnp.concatenate(taps(ra), axis=0)                            # (96, 126)
        y = jnp.dot(wp[0:32, 0:96], rhs, preferred_element_type=f32) + bp[0:32]
        store(2 * (h_in - 1), y, last=True)

    # layers 1 & 2: bias only; spread columns (stride-2 zero insertion + pad) on the MXU
    # and stash the rows as the next layer's dilated input.
    def stash_store(dst, ow):
        spread = _spread_mat(ow)

        def store(oh, y, last):
            z = jnp.dot(y[:, :ow].astype(bf16), spread,
                        preferred_element_type=f32).astype(bf16)           # (., 128)
            if last:
                dst[oh] = z
            else:
                dst[oh] = z[0:32]
                dst[oh + 1] = z[32:64]
        return store

    conv_layer(x0, H0, w1_ref, b1_ref, stash_store(a1, OW1))
    conv_layer(a1, H1, w2_ref, b2_ref, stash_store(a2, OW2))

    # layer 3: bias + hardsigmoid, written straight to the lane-padded output block.
    def out_store(oh, y, last):
        y = jnp.clip(y + 3.0, 0.0, 6.0) * (1.0 / 6.0)
        if last:
            o_ref[0, oh, :, 0:126] = y
        else:
            o_ref[0, oh, :, 0:126] = y[0:32]
            o_ref[0, oh + 1, :, 0:126] = y[32:64]

    conv_layer(a2, H2, w3_ref, b3_ref, out_store)


def prepare_params(params):
    """Hoisted weight preprocessing (runs once, outside the forward path)."""
    prepared = []
    for w_pt, b in params:
        cin, cout, kh, kw = w_pt.shape
        assert (cin, cout, kh, kw) == (32, 32, 3, 3)
        # correlation weights, channel-last: wc[co, kh, kw, ci] = w_pt[ci, co, 2-kh, 2-kw]
        wc = jnp.transpose(jnp.flip(w_pt, (2, 3)), (1, 2, 3, 0))           # (Cout,KH,KW,Cin)
        w_k0 = wc[:, 0].reshape(cout, 3 * cin)   # odd  output row, taps on data row a
        w_k1 = wc[:, 1].reshape(cout, 3 * cin)   # even output row, taps on data row a
        w_k2 = wc[:, 2].reshape(cout, 3 * cin)   # odd  output row, taps on data row a+1
        top = jnp.concatenate([w_k1, jnp.zeros_like(w_k1)], axis=1)        # (32, 192)
        bot = jnp.concatenate([w_k0, w_k2], axis=1)                        # (32, 192)
        w_pair = jnp.concatenate([top, bot], axis=0).astype(jnp.bfloat16)  # (64, 192)
        b_pair = jnp.concatenate([b, b]).reshape(2 * cout, 1).astype(jnp.float32)
        prepared.append((w_pair, b_pair))
    return prepared


def fused_forward(x_nchw, prepared):
    """Full Model.forward: three transposed convs + hardsigmoid, fused. Returns NCHW."""
    (w1, b1), (w2, b2), (w3, b3) = prepared
    N, C, H0, W0 = x_nchw.shape
    assert C == 32
    H1, OW1 = 2 * H0 - 1, 2 * W0 - 1
    H2, OW2 = 2 * H1 - 1, 2 * OW1 - 1
    H3, OW3 = 2 * H2 - 1, 2 * OW2 - 1
    # every dilated-padded row must fit in one 128-lane slot
    assert 2 * OW2 + 1 <= 128 and OW3 <= 126

    xh = jnp.transpose(x_nchw, (0, 2, 1, 3))                               # (N, H0, C, W0)

    kernel = functools.partial(_fused_convt3_kernel, H0=H0, W0=W0,
                               H1=H1, OW1=OW1, H2=H2, OW2=OW2)

    out = pl.pallas_call(
        kernel,
        out_shape=jax.ShapeDtypeStruct((N, H3, C, 128), jnp.float32),
        grid_spec=pltpu.PrefetchScalarGridSpec(
            num_scalar_prefetch=0,
            grid=(N,),
            in_specs=[
                pl.BlockSpec((1, H0, C, W0), lambda n: (n, 0, 0, 0)),
                pl.BlockSpec((64, 192), lambda n: (0, 0)),
                pl.BlockSpec((64, 1), lambda n: (0, 0)),
                pl.BlockSpec((64, 192), lambda n: (0, 0)),
                pl.BlockSpec((64, 1), lambda n: (0, 0)),
                pl.BlockSpec((64, 192), lambda n: (0, 0)),
                pl.BlockSpec((64, 1), lambda n: (0, 0)),
            ],
            out_specs=pl.BlockSpec((1, H3, C, 128), lambda n: (n, 0, 0, 0)),
            scratch_shapes=[
                pltpu.VMEM((H0, C, 128), jnp.bfloat16),   # dilated layer-1 input rows
                pltpu.VMEM((H1, C, 128), jnp.bfloat16),   # layer-1 out / layer-2 input
                pltpu.VMEM((H2, C, 128), jnp.bfloat16),   # layer-2 out / layer-3 input
            ],
        ),
        compiler_params=pltpu.CompilerParams(
            dimension_semantics=("arbitrary",),
            # actual need ~6 MB (double-buffered 2 MB output block + <1 MB scratch + inputs)
            vmem_limit_bytes=32 * 1024 * 1024),
    )(xh, w1, b1, w2, b2, w3, b3)

    out = out[:, :, :, :OW3]                                               # drop lane pad
    return jnp.transpose(out, (0, 2, 1, 3))                                # -> NCHW


model_forward = jax.jit(fused_forward)


def _ref_convT_nhwc(xh, w_pt, b):
    """Pure-JAX f32 reference for one transposed conv (correctness check only)."""
    w_corr = jnp.transpose(jnp.flip(w_pt, axis=(2, 3)), (2, 3, 0, 1))
    y = lax.conv_general_dilated(
        xh, w_corr, window_strides=(1, 1), padding=((1, 1), (1, 1)),
        lhs_dilation=(2, 2), dimension_numbers=("NHWC", "HWIO", "NHWC"),
        precision=lax.Precision.HIGHEST)
    return y + b.reshape(1, 1, 1, -1)


if __name__ == "__main__":
    key = jax.random.PRNGKey(0)
    ks = jax.random.split(key, 7)

    Cin = Cout = 32
    K = 3
    scale = 1.0 / (Cin * K * K) ** 0.5
    # deterministic synthetic parameters, PyTorch ConvTranspose2d layout (Cin, Cout, KH, KW)
    w1 = jax.random.uniform(ks[0], (Cin, Cout, K, K), jnp.float32, -scale, scale)
    b1 = jax.random.uniform(ks[1], (Cout,), jnp.float32, -scale, scale)
    w2 = jax.random.uniform(ks[2], (Cin, Cout, K, K), jnp.float32, -scale, scale)
    b2 = jax.random.uniform(ks[3], (Cout,), jnp.float32, -scale, scale)
    w3 = jax.random.uniform(ks[4], (Cin, Cout, K, K), jnp.float32, -scale, scale)
    b3 = jax.random.uniform(ks[5], (Cout,), jnp.float32, -scale, scale)
    params = ((w1, b1), (w2, b2), (w3, b3))

    # input matching the module: (1, 32, 16, 16) NCHW
    x_nchw = jax.random.normal(ks[6], (1, 32, 16, 16), jnp.float32)

    prepared = prepare_params(params)            # weight prep hoisted out of forward
    out = model_forward(x_nchw, prepared)
    out = jax.block_until_ready(out)
    assert out.shape == (1, 32, 121, 121), out.shape

    # pure-JAX f32 reference (kernel feeds bf16 to the MXU -> loose, documented tolerance)
    xh = jnp.transpose(x_nchw, (0, 2, 3, 1))
    r = _ref_convT_nhwc(_ref_convT_nhwc(_ref_convT_nhwc(xh, w1, b1), w2, b2), w3, b3)
    r = jnp.clip(r + 3.0, 0.0, 6.0) / 6.0
    r = jnp.transpose(r, (0, 3, 1, 2))
    err = float(jnp.max(jnp.abs(out - r)))
    assert jnp.allclose(out, r, atol=2e-2, rtol=2e-2), err

    print("KERNEL_OK")
</pallas_src>

<mosaic_0001>
module attributes {stable_mosaic.version = 11 : i64} {
  func.func @_fused_convt3_kernel(%arg0: i32, %arg1: memref<1x16x32x16xf32, #tpu.memory_space<vmem>>, %arg2: memref<64x192xbf16, #tpu.memory_space<vmem>>, %arg3: memref<64x1xf32, #tpu.memory_space<vmem>>, %arg4: memref<64x192xbf16, #tpu.memory_space<vmem>>, %arg5: memref<64x1xf32, #tpu.memory_space<vmem>>, %arg6: memref<64x192xbf16, #tpu.memory_space<vmem>>, %arg7: memref<64x1xf32, #tpu.memory_space<vmem>>, %arg8: memref<1x121x32x128xf32, #tpu.memory_space<vmem>>, %arg9: memref<16x32x128xbf16, #tpu.memory_space<vmem>>, %arg10: memref<31x32x128xbf16, #tpu.memory_space<vmem>>, %arg11: memref<61x32x128xbf16, #tpu.memory_space<vmem>>) attributes {dimension_semantics = [#tpu.dimension_semantics<arbitrary>], iteration_bounds = array<i64: 1>, scalar_prefetch = 0 : i64, scratch_operands = 3 : i64, tpu.core_type = #tpu.core_type<tc>, window_params = [{transform_indices = @transform_0, window_bounds = array<i64: 1, 16, 32, 16>}, {pipeline_mode = #tpu.pipeline_mode<synchronous>, transform_indices = @transform_1, window_bounds = array<i64: 64, 192>}, {pipeline_mode = #tpu.pipeline_mode<synchronous>, transform_indices = @transform_2, window_bounds = array<i64: 64, 1>}, {pipeline_mode = #tpu.pipeline_mode<synchronous>, transform_indices = @transform_3, window_bounds = array<i64: 64, 192>}, {pipeline_mode = #tpu.pipeline_mode<synchronous>, transform_indices = @transform_4, window_bounds = array<i64: 64, 1>}, {pipeline_mode = #tpu.pipeline_mode<synchronous>, transform_indices = @transform_5, window_bounds = array<i64: 64, 192>}, {pipeline_mode = #tpu.pipeline_mode<synchronous>, transform_indices = @transform_6, window_bounds = array<i64: 64, 1>}, {transform_indices = @transform_7, window_bounds = array<i64: 1, 121, 32, 128>}]} {
    %0 = tpu.iota {dimensions = array<i32: 0>} : vector<16x128xi32>
    %1 = tpu.iota {dimensions = array<i32: 1>} : vector<16x128xi32>
    %c2_i32 = arith.constant 2 : i32
    %2 = vector.broadcast %c2_i32 : i32 to vector<16x128xi32>
    %3 = arith.muli %2, %0 : vector<16x128xi32>
    %c1_i32 = arith.constant 1 : i32
    %4 = vector.broadcast %c1_i32 : i32 to vector<16x128xi32>
    %5 = arith.addi %3, %4 : vector<16x128xi32>
    %6 = arith.cmpi eq, %1, %5 : vector<16x128xi32>
    %7 = arith.extui %6 : vector<16x128xi1> to vector<16x128xi32>
    %8 = arith.sitofp %7 : vector<16x128xi32> to vector<16x128xf32>
    %9 = arith.truncf %8 : vector<16x128xf32> to vector<16x128xbf16>
    %c0 = arith.constant 0 : index
    %c0_0 = arith.constant 0 : index
    %c0_1 = arith.constant 0 : index
    %c0_2 = arith.constant 0 : index
    %10 = vector.load %arg1[%c0, %c0_0, %c0_1, %c0_2] : memref<1x16x32x16xf32, #tpu.memory_space<vmem>>, vector<1x1x32x16xf32>
    %11 = vector.shape_cast %10 : vector<1x1x32x16xf32> to vector<32x16xf32>
    %12 = arith.truncf %11 : vector<32x16xf32> to vector<32x16xbf16>
    %cst = arith.constant dense<0.000000e+00> : vector<32x128xf32>
    %13 = tpu.matmul %12, %9, %cst {dimension_numbers = #tpu.dot_dimension_numbers<[1], [0], [0], [1], [0, 0, 1, 1], [], []>} : vector<32x16xbf16>, vector<16x128xbf16>, vector<32x128xf32> -> vector<32x128xf32>
    %14 = arith.truncf %13 : vector<32x128xf32> to vector<32x128xbf16>
    %c0_3 = arith.constant 0 : index
    %c0_4 = arith.constant 0 : index
    %c0_5 = arith.constant 0 : index
    %15 = vector.load %arg9[%c0_3, %c0_4, %c0_5] : memref<16x32x128xbf16, #tpu.memory_space<vmem>>, vector<1x32x128xbf16>
    %16 = vector.shape_cast %15 : vector<1x32x128xbf16> to vector<32x128xbf16>
    %17 = vector.shape_cast %14 : vector<32x128xbf16> to vector<1x32x128xbf16>
    tpu.vector_store %arg9[%c0_3, %c0_4, %c0_5], %17 {strides = array<i32>} : memref<16x32x128xbf16, #tpu.memory_space<vmem>>, vector<1x32x128xbf16>,
    %c0_6 = arith.constant 0 : index
    %c1 = arith.constant 1 : index
    %c0_7 = arith.constant 0 : index
    %c0_8 = arith.constant 0 : index
    %18 = vector.load %arg1[%c0_6, %c1, %c0_7, %c0_8] : memref<1x16x32x16xf32, #tpu.memory_space<vmem>>, vector<1x1x32x16xf32>
    %19 = vector.shape_cast %18 : vector<1x1x32x16xf32> to vector<32x16xf32>
    %20 = arith.truncf %19 : vector<32x16xf32> to vector<32x16xbf16>
    %cst_9 = arith.constant dense<0.000000e+00> : vector<32x128xf32>
    %21 = tpu.matmul %20, %9, %cst_9 {dimension_numbers = #tpu.dot_dimension_numbers<[1], [0], [0], [1], [0, 0, 1, 1], [], []>} : vector<32x16xbf16>, vector<16x128xbf16>, vector<32x128xf32> -> vector<32x128xf32>
    %22 = arith.truncf %21 : vector<32x128xf32> to vector<32x128xbf16>
    %c1_10 = arith.constant 1 : index
    %c0_11 = arith.constant 0 : index
    %c0_12 = arith.constant 0 : index
    %23 = vector.load %arg9[%c1_10, %c0_11, %c0_12] : memref<16x32x128xbf16, #tpu.memory_space<vmem>>, vector<1x32x128xbf16>
    %24 = vector.shape_cast %23 : vector<1x32x128xbf16> to vector<32x128xbf16>
    %25 = vector.shape_cast %22 : vector<32x128xbf16> to vector<1x32x128xbf16>
    tpu.vector_store %arg9[%c1_10, %c0_11, %c0_12], %25 {strides = array<i32>} : memref<16x32x128xbf16, #tpu.memory_space<vmem>>, vector<1x32x128xbf16>,
    %c0_13 = arith.constant 0 : index
    %c2 = arith.constant 2 : index
    %c0_14 = arith.constant 0 : index
    %c0_15 = arith.constant 0 : index
    %26 = vector.load %arg1[%c0_13, %c2, %c0_14, %c0_15] : memref<1x16x32x16xf32, #tpu.memory_space<vmem>>, vector<1x1x32x16xf32>
    %27 = vector.shape_cast %26 : vector<1x1x32x16xf32> to vector<32x16xf32>
    %28 = arith.truncf %27 : vector<32x16xf32> to vector<32x16xbf16>
    %cst_16 = arith.constant dense<0.000000e+00> : vector<32x128xf32>
    %29 = tpu.matmul %28, %9, %cst_16 {dimension_numbers = #tpu.dot_dimension_numbers<[1], [0], [0], [1], [0, 0, 1, 1], [], []>} : vector<32x16xbf16>, vector<16x128xbf16>, vector<32x128xf32> -> vector<32x128xf32>
    %30 = arith.truncf %29 : vector<32x128xf32> to vector<32x128xbf16>
    %c2_17 = arith.constant 2 : index
    %c0_18 = arith.constant 0 : index
    %c0_19 = arith.constant 0 : index
    %31 = vector.load %arg9[%c2_17, %c0_18, %c0_19] : memref<16x32x128xbf16, #tpu.memory_space<vmem>>, vector<1x32x128xbf16>
    %32 = vector.shape_cast %31 : vector<1x32x128xbf16> to vector<32x128xbf16>
    %33 = vector.shape_cast %30 : vector<32x128xbf16> to vector<1x32x128xbf16>
    tpu.vector_store %arg9[%c2_17, %c0_18, %c0_19], %33 {strides = array<i32>} : memref<16x32x128xbf16, #tpu.memory_space<vmem>>, vector<1x32x128xbf16>,
    %c0_20 = arith.constant 0 : index
    %c3 = arith.constant 3 : index
    %c0_21 = arith.constant 0 : index
    %c0_22 = arith.constant 0 : index
    %34 = vector.load %arg1[%c0_20, %c3, %c0_21, %c0_22] : memref<1x16x32x16xf32, #tpu.memory_space<vmem>>, vector<1x1x32x16xf32>
    %35 = vector.shape_cast %34 : vector<1x1x32x16xf32> to vector<32x16xf32>
    %36 = arith.truncf %35 : vector<32x16xf32> to vector<32x16xbf16>
    %cst_23 = arith.constant dense<0.000000e+00> : vector<32x128xf32>
    %37 = tpu.matmul %36, %9, %cst_23 {dimension_numbers = #tpu.dot_dimension_numbers<[1], [0], [0], [1], [0, 0, 1, 1], [], []>} : vector<32x16xbf16>, vector<16x128xbf16>, vector<32x128xf32> -> vector<32x128xf32>
    %38 = arith.truncf %37 : vector<32x128xf32> to vector<32x128xbf16>
    %c3_24 = arith.constant 3 : index
    %c0_25 = arith.constant 0 : index
    %c0_26 = arith.constant 0 : index
    %39 = vector.load %arg9[%c3_24, %c0_25, %c0_26] : memref<16x32x128xbf16, #tpu.memory_space<vmem>>, vector<1x32x128xbf16>
    %40 = vector.shape_cast %39 : vector<1x32x128xbf16> to vector<32x128xbf16>
    %41 = vector.shape_cast %38 : vector<32x128xbf16> to vector<1x32x128xbf16>
    tpu.vector_store %arg9[%c3_24, %c0_25, %c0_26], %41 {strides = array<i32>} : memref<16x32x128xbf16, #tpu.memory_space<vmem>>, vector<1x32x128xbf16>,
    %c0_27 = arith.constant 0 : index
    %c4 = arith.constant 4 : index
    %c0_28 = arith.constant 0 : index
    %c0_29 = arith.constant 0 : index
    %42 = vector.load %arg1[%c0_27, %c4, %c0_28, %c0_29] : memref<1x16x32x16xf32, #tpu.memory_space<vmem>>, vector<1x1x32x16xf32>
    %43 = vector.shape_cast %42 : vector<1x1x32x16xf32> to vector<32x16xf32>
    %44 = arith.truncf %43 : vector<32x16xf32> to vector<32x16xbf16>
    %cst_30 = arith.constant dense<0.000000e+00> : vector<32x128xf32>
    %45 = tpu.matmul %44, %9, %cst_30 {dimension_numbers = #tpu.dot_dimension_numbers<[1], [0], [0], [1], [0, 0, 1, 1], [], []>} : vector<32x16xbf16>, vector<16x128xbf16>, vector<32x128xf32> -> vector<32x128xf32>
    %46 = arith.truncf %45 : vector<32x128xf32> to vector<32x128xbf16>
    %c4_31 = arith.constant 4 : index
    %c0_32 = arith.constant 0 : index
    %c0_33 = arith.constant 0 : index
    %47 = vector.load %arg9[%c4_31, %c0_32, %c0_33] : memref<16x32x128xbf16, #tpu.memory_space<vmem>>, vector<1x32x128xbf16>
    %48 = vector.shape_cast %47 : vector<1x32x128xbf16> to vector<32x128xbf16>
    %49 = vector.shape_cast %46 : vector<32x128xbf16> to vector<1x32x128xbf16>
    tpu.vector_store %arg9[%c4_31, %c0_32, %c0_33], %49 {strides = array<i32>} : memref<16x32x128xbf16, #tpu.memory_space<vmem>>, vector<1x32x128xbf16>,
    %c0_34 = arith.constant 0 : index
    %c5 = arith.constant 5 : index
    %c0_35 = arith.constant 0 : index
    %c0_36 = arith.constant 0 : index
    %50 = vector.load %arg1[%c0_34, %c5, %c0_35, %c0_36] : memref<1x16x32x16xf32, #tpu.memory_space<vmem>>, vector<1x1x32x16xf32>
    %51 = vector.shape_cast %50 : vector<1x1x32x16xf32> to vector<32x16xf32>
    %52 = arith.truncf %51 : vector<32x16xf32> to vector<32x16xbf16>
    %cst_37 = arith.constant dense<0.000000e+00> : vector<32x128xf32>
    %53 = tpu.matmul %52, %9, %cst_37 {dimension_numbers = #tpu.dot_dimension_numbers<[1], [0], [0], [1], [0, 0, 1, 1], [], []>} : vector<32x16xbf16>, vector<16x128xbf16>, vector<32x128xf32> -> vector<32x128xf32>
    %54 = arith.truncf %53 : vector<32x128xf32> to vector<32x128xbf16>
    %c5_38 = arith.constant 5 : index
    %c0_39 = arith.constant 0 : index
    %c0_40 = arith.constant 0 : index
    %55 = vector.load %arg9[%c5_38, %c0_39, %c0_40] : memref<16x32x128xbf16, #tpu.memory_space<vmem>>, vector<1x32x128xbf16>
    %56 = vector.shape_cast %55 : vector<1x32x128xbf16> to vector<32x128xbf16>
    %57 = vector.shape_cast %54 : vector<32x128xbf16> to vector<1x32x128xbf16>
    tpu.vector_store %arg9[%c5_38, %c0_39, %c0_40], %57 {strides = array<i32>} : memref<16x32x128xbf16, #tpu.memory_space<vmem>>, vector<1x32x128xbf16>,
    %c0_41 = arith.constant 0 : index
    %c6 = arith.constant 6 : index
    %c0_42 = arith.constant 0 : index
    %c0_43 = arith.constant 0 : index
    %58 = vector.load %arg1[%c0_41, %c6, %c0_42, %c0_43] : memref<1x16x32x16xf32, #tpu.memory_space<vmem>>, vector<1x1x32x16xf32>
    %59 = vector.shape_cast %58 : vector<1x1x32x16xf32> to vector<32x16xf32>
    %60 = arith.truncf %59 : vector<32x16xf32> to vector<32x16xbf16>
    %cst_44 = arith.constant dense<0.000000e+00> : vector<32x128xf32>
    %61 = tpu.matmul %60, %9, %cst_44 {dimension_numbers = #tpu.dot_dimension_numbers<[1], [0], [0], [1], [0, 0, 1, 1], [], []>} : vector<32x16xbf16>, vector<16x128xbf16>, vector<32x128xf32> -> vector<32x128xf32>
    %62 = arith.truncf %61 : vector<32x128xf32> to vector<32x128xbf16>
    %c6_45 = arith.constant 6 : index
    %c0_46 = arith.constant 0 : index
    %c0_47 = arith.constant 0 : index
    %63 = vector.load %arg9[%c6_45, %c0_46, %c0_47] : memref<16x32x128xbf16, #tpu.memory_space<vmem>>, vector<1x32x128xbf16>
    %64 = vector.shape_cast %63 : vector<1x32x128xbf16> to vector<32x128xbf16>
    %65 = vector.shape_cast %62 : vector<32x128xbf16> to vector<1x32x128xbf16>
    tpu.vector_store %arg9[%c6_45, %c0_46, %c0_47], %65 {strides = array<i32>} : memref<16x32x128xbf16, #tpu.memory_space<vmem>>, vector<1x32x128xbf16>,
    %c0_48 = arith.constant 0 : index
    %c7 = arith.constant 7 : index
    %c0_49 = arith.constant 0 : index
    %c0_50 = arith.constant 0 : index
    %66 = vector.load %arg1[%c0_48, %c7, %c0_49, %c0_50] : memref<1x16x32x16xf32, #tpu.memory_space<vmem>>, vector<1x1x32x16xf32>
    %67 = vector.shape_cast %66 : vector<1x1x32x16xf32> to vector<32x16xf32>
    %68 = arith.truncf %67 : vector<32x16xf32> to vector<32x16xbf16>
    %cst_51 = arith.constant dense<0.000000e+00> : vector<32x128xf32>
    %69 = tpu.matmul %68, %9, %cst_51 {dimension_numbers = #tpu.dot_dimension_numbers<[1], [0], [0], [1], [0, 0, 1, 1], [], []>} : vector<32x16xbf16>, vector<16x128xbf16>, vector<32x128xf32> -> vector<32x128xf32>
    %70 = arith.truncf %69 : vector<32x128xf32> to vector<32x128xbf16>
    %c7_52 = arith.constant 7 : index
    %c0_53 = arith.constant 0 : index
    %c0_54 = arith.constant 0 : index
    %71 = vector.load %arg9[%c7_52, %c0_53, %c0_54] : memref<16x32x128xbf16, #tpu.memory_space<vmem>>, vector<1x32x128xbf16>
    %72 = vector.shape_cast %71 : vector<1x32x128xbf16> to vector<32x128xbf16>
    %73 = vector.shape_cast %70 : vector<32x128xbf16> to vector<1x32x128xbf16>
    tpu.vector_store %arg9[%c7_52, %c0_53, %c0_54], %73 {strides = array<i32>} : memref<16x32x128xbf16, #tpu.memory_space<vmem>>, vector<1x32x128xbf16>,
    %c0_55 = arith.constant 0 : index
    %c8 = arith.constant 8 : index
    %c0_56 = arith.constant 0 : index
    %c0_57 = arith.constant 0 : index
    %74 = vector.load %arg1[%c0_55, %c8, %c0_56, %c0_57] : memref<1x16x32x16xf32, #tpu.memory_space<vmem>>, vector<1x1x32x16xf32>
    %75 = vector.shape_cast %74 : vector<1x1x32x16xf32> to vector<32x16xf32>
    %76 = arith.truncf %75 : vector<32x16xf32> to vector<32x16xbf16>
    %cst_58 = arith.constant dense<0.000000e+00> : vector<32x128xf32>
    %77 = tpu.matmul %76, %9, %cst_58 {dimension_numbers = #tpu.dot_dimension_numbers<[1], [0], [0], [1], [0, 0, 1, 1], [], []>} : vector<32x16xbf16>, vector<16x128xbf16>, vector<32x128xf32> -> vector<32x128xf32>
    %78 = arith.truncf %77 : vector<32x128xf32> to vector<32x128xbf16>
    %c8_59 = arith.constant 8 : index
    %c0_60 = arith.constant 0 : index
    %c0_61 = arith.constant 0 : index
    %79 = vector.load %arg9[%c8_59, %c0_60, %c0_61] : memref<16x32x128xbf16, #tpu.memory_space<vmem>>, vector<1x32x128xbf16>
    %80 = vector.shape_cast %79 : vector<1x32x128xbf16> to vector<32x128xbf16>
    %81 = vector.shape_cast %78 : vector<32x128xbf16> to vector<1x32x128xbf16>
    tpu.vector_store %arg9[%c8_59, %c0_60, %c0_61], %81 {strides = array<i32>} : memref<16x32x128xbf16, #tpu.memory_space<vmem>>, vector<1x32x128xbf16>,
    %c0_62 = arith.constant 0 : index
    %c9 = arith.constant 9 : index
    %c0_63 = arith.constant 0 : index
    %c0_64 = arith.constant 0 : index
    %82 = vector.load %arg1[%c0_62, %c9, %c0_63, %c0_64] : memref<1x16x32x16xf32, #tpu.memory_space<vmem>>, vector<1x1x32x16xf32>
    %83 = vector.shape_cast %82 : vector<1x1x32x16xf32> to vector<32x16xf32>
    %84 = arith.truncf %83 : vector<32x16xf32> to vector<32x16xbf16>
    %cst_65 = arith.constant dense<0.000000e+00> : vector<32x128xf32>
    %85 = tpu.matmul %84, %9, %cst_65 {dimension_numbers = #tpu.dot_dimension_numbers<[1], [0], [0], [1], [0, 0, 1, 1], [], []>} : vector<32x16xbf16>, vector<16x128xbf16>, vector<32x128xf32> -> vector<32x128xf32>
    %86 = arith.truncf %85 : vector<32x128xf32> to vector<32x128xbf16>
    %c9_66 = arith.constant 9 : index
    %c0_67 = arith.constant 0 : index
    %c0_68 = arith.constant 0 : index
    %87 = vector.load %arg9[%c9_66, %c0_67, %c0_68] : memref<16x32x128xbf16, #tpu.memory_space<vmem>>, vector<1x32x128xbf16>
    %88 = vector.shape_cast %87 : vector<1x32x128xbf16> to vector<32x128xbf16>
    %89 = vector.shape_cast %86 : vector<32x128xbf16> to vector<1x32x128xbf16>
    tpu.vector_store %arg9[%c9_66, %c0_67, %c0_68], %89 {strides = array<i32>} : memref<16x32x128xbf16, #tpu.memory_space<vmem>>, vector<1x32x128xbf16>,
    %c0_69 = arith.constant 0 : index
    %c10 = arith.constant 10 : index
    %c0_70 = arith.constant 0 : index
    %c0_71 = arith.constant 0 : index
    %90 = vector.load %arg1[%c0_69, %c10, %c0_70, %c0_71] : memref<1x16x32x16xf32, #tpu.memory_space<vmem>>, vector<1x1x32x16xf32>
    %91 = vector.shape_cast %90 : vector<1x1x32x16xf32> to vector<32x16xf32>
    %92 = arith.truncf %91 : vector<32x16xf32> to vector<32x16xbf16>
    %cst_72 = arith.constant dense<0.000000e+00> : vector<32x128xf32>
    %93 = tpu.matmul %92, %9, %cst_72 {dimension_numbers = #tpu.dot_dimension_numbers<[1], [0], [0], [1], [0, 0, 1, 1], [], []>} : vector<32x16xbf16>, vector<16x128xbf16>, vector<32x128xf32> -> vector<32x128xf32>
    %94 = arith.truncf %93 : vector<32x128xf32> to vector<32x128xbf16>
    %c10_73 = arith.constant 10 : index
    %c0_74 = arith.constant 0 : index
    %c0_75 = arith.constant 0 : index
    %95 = vector.load %arg9[%c10_73, %c0_74, %c0_75] : memref<16x32x128xbf16, #tpu.memory_space<vmem>>, vector<1x32x128xbf16>
    %96 = vector.shape_cast %95 : vector<1x32x128xbf16> to vector<32x128xbf16>
    %97 = vector.shape_cast %94 : vector<32x128xbf16> to vector<1x32x128xbf16>
    tpu.vector_store %arg9[%c10_73, %c0_74, %c0_75], %97 {strides = array<i32>} : memref<16x32x128xbf16, #tpu.memory_space<vmem>>, vector<1x32x128xbf16>,
    %c0_76 = arith.constant 0 : index
    %c11 = arith.constant 11 : index
    %c0_77 = arith.constant 0 : index
    %c0_78 = arith.constant 0 : index
    %98 = vector.load %arg1[%c0_76, %c11, %c0_77, %c0_78] : memref<1x16x32x16xf32, #tpu.memory_space<vmem>>, vector<1x1x32x16xf32>
    %99 = vector.shape_cast %98 : vector<1x1x32x16xf32> to vector<32x16xf32>
    %100 = arith.truncf %99 : vector<32x16xf32> to vector<32x16xbf16>
    %cst_79 = arith.constant dense<0.000000e+00> : vector<32x128xf32>
    %101 = tpu.matmul %100, %9, %cst_79 {dimension_numbers = #tpu.dot_dimension_numbers<[1], [0], [0], [1], [0, 0, 1, 1], [], []>} : vector<32x16xbf16>, vector<16x128xbf16>, vector<32x128xf32> -> vector<32x128xf32>
    %102 = arith.truncf %101 : vector<32x128xf32> to vector<32x128xbf16>
    %c11_80 = arith.constant 11 : index
    %c0_81 = arith.constant 0 : index
    %c0_82 = arith.constant 0 : index
    %103 = vector.load %arg9[%c11_80, %c0_81, %c0_82] : memref<16x32x128xbf16, #tpu.memory_space<vmem>>, vector<1x32x128xbf16>
    %104 = vector.shape_cast %103 : vector<1x32x128xbf16> to vector<32x128xbf16>
    %105 = vector.shape_cast %102 : vector<32x128xbf16> to vector<1x32x128xbf16>
    tpu.vector_store %arg9[%c11_80, %c0_81, %c0_82], %105 {strides = array<i32>} : memref<16x32x128xbf16, #tpu.memory_space<vmem>>, vector<1x32x128xbf16>,
    %c0_83 = arith.constant 0 : index
    %c12 = arith.constant 12 : index
    %c0_84 = arith.constant 0 : index
    %c0_85 = arith.constant 0 : index
    %106 = vector.load %arg1[%c0_83, %c12, %c0_84, %c0_85] : memref<1x16x32x16xf32, #tpu.memory_space<vmem>>, vector<1x1x32x16xf32>
    %107 = vector.shape_cast %106 : vector<1x1x32x16xf32> to vector<32x16xf32>
    %108 = arith.truncf %107 : vector<32x16xf32> to vector<32x16xbf16>
    %cst_86 = arith.constant dense<0.000000e+00> : vector<32x128xf32>
    %109 = tpu.matmul %108, %9, %cst_86 {dimension_numbers = #tpu.dot_dimension_numbers<[1], [0], [0], [1], [0, 0, 1, 1], [], []>} : vector<32x16xbf16>, vector<16x128xbf16>, vector<32x128xf32> -> vector<32x128xf32>
    %110 = arith.truncf %109 : vector<32x128xf32> to vector<32x128xbf16>
    %c12_87 = arith.constant 12 : index
    %c0_88 = arith.constant 0 : index
    %c0_89 = arith.constant 0 : index
    %111 = vector.load %arg9[%c12_87, %c0_88, %c0_89] : memref<16x32x128xbf16, #tpu.memory_space<vmem>>, vector<1x32x128xbf16>
    %112 = vector.shape_cast %111 : vector<1x32x128xbf16> to vector<32x128xbf16>
    %113 = vector.shape_cast %110 : vector<32x128xbf16> to vector<1x32x128xbf16>
    tpu.vector_store %arg9[%c12_87, %c0_88, %c0_89], %113 {strides = array<i32>} : memref<16x32x128xbf16, #tpu.memory_space<vmem>>, vector<1x32x128xbf16>,
    %c0_90 = arith.constant 0 : index
    %c13 = arith.constant 13 : index
    %c0_91 = arith.constant 0 : index
    %c0_92 = arith.constant 0 : index
    %114 = vector.load %arg1[%c0_90, %c13, %c0_91, %c0_92] : memref<1x16x32x16xf32, #tpu.memory_space<vmem>>, vector<1x1x32x16xf32>
    %115 = vector.shape_cast %114 : vector<1x1x32x16xf32> to vector<32x16xf32>
    %116 = arith.truncf %115 : vector<32x16xf32> to vector<32x16xbf16>
    %cst_93 = arith.constant dense<0.000000e+00> : vector<32x128xf32>
    %117 = tpu.matmul %116, %9, %cst_93 {dimension_numbers = #tpu.dot_dimension_numbers<[1], [0], [0], [1], [0, 0, 1, 1], [], []>} : vector<32x16xbf16>, vector<16x128xbf16>, vector<32x128xf32> -> vector<32x128xf32>
    %118 = arith.truncf %117 : vector<32x128xf32> to vector<32x128xbf16>
    %c13_94 = arith.constant 13 : index
    %c0_95 = arith.constant 0 : index
    %c0_96 = arith.constant 0 : index
    %119 = vector.load %arg9[%c13_94, %c0_95, %c0_96] : memref<16x32x128xbf16, #tpu.memory_space<vmem>>, vector<1x32x128xbf16>
    %120 = vector.shape_cast %119 : vector<1x32x128xbf16> to vector<32x128xbf16>
    %121 = vector.shape_cast %118 : vector<32x128xbf16> to vector<1x32x128xbf16>
    tpu.vector_store %arg9[%c13_94, %c0_95, %c0_96], %121 {strides = array<i32>} : memref<16x32x128xbf16, #tpu.memory_space<vmem>>, vector<1x32x128xbf16>,
    %c0_97 = arith.constant 0 : index
    %c14 = arith.constant 14 : index
    %c0_98 = arith.constant 0 : index
    %c0_99 = arith.constant 0 : index
    %122 = vector.load %arg1[%c0_97, %c14, %c0_98, %c0_99] : memref<1x16x32x16xf32, #tpu.memory_space<vmem>>, vector<1x1x32x16xf32>
    %123 = vector.shape_cast %122 : vector<1x1x32x16xf32> to vector<32x16xf32>
    %124 = arith.truncf %123 : vector<32x16xf32> to vector<32x16xbf16>
    %cst_100 = arith.constant dense<0.000000e+00> : vector<32x128xf32>
    %125 = tpu.matmul %124, %9, %cst_100 {dimension_numbers = #tpu.dot_dimension_numbers<[1], [0], [0], [1], [0, 0, 1, 1], [], []>} : vector<32x16xbf16>, vector<16x128xbf16>, vector<32x128xf32> -> vector<32x128xf32>
    %126 = arith.truncf %125 : vector<32x128xf32> to vector<32x128xbf16>
    %c14_101 = arith.constant 14 : index
    %c0_102 = arith.constant 0 : index
    %c0_103 = arith.constant 0 : index
    %127 = vector.load %arg9[%c14_101, %c0_102, %c0_103] : memref<16x32x128xbf16, #tpu.memory_space<vmem>>, vector<1x32x128xbf16>
    %128 = vector.shape_cast %127 : vector<1x32x128xbf16> to vector<32x128xbf16>
    %129 = vector.shape_cast %126 : vector<32x128xbf16> to vector<1x32x128xbf16>
    tpu.vector_store %arg9[%c14_101, %c0_102, %c0_103], %129 {strides = array<i32>} : memref<16x32x128xbf16, #tpu.memory_space<vmem>>, vector<1x32x128xbf16>,
    %c0_104 = arith.constant 0 : index
    %c15 = arith.constant 15 : index
    %c0_105 = arith.constant 0 : index
    %c0_106 = arith.constant 0 : index
    %130 = vector.load %arg1[%c0_104, %c15, %c0_105, %c0_106] : memref<1x16x32x16xf32, #tpu.memory_space<vmem>>, vector<1x1x32x16xf32>
    %131 = vector.shape_cast %130 : vector<1x1x32x16xf32> to vector<32x16xf32>
    %132 = arith.truncf %131 : vector<32x16xf32> to vector<32x16xbf16>
    %cst_107 = arith.constant dense<0.000000e+00> : vector<32x128xf32>
    %133 = tpu.matmul %132, %9, %cst_107 {dimension_numbers = #tpu.dot_dimension_numbers<[1], [0], [0], [1], [0, 0, 1, 1], [], []>} : vector<32x16xbf16>, vector<16x128xbf16>, vector<32x128xf32> -> vector<32x128xf32>
    %134 = arith.truncf %133 : vector<32x128xf32> to vector<32x128xbf16>
    %c15_108 = arith.constant 15 : index
    %c0_109 = arith.constant 0 : index
    %c0_110 = arith.constant 0 : index
    %135 = vector.load %arg9[%c15_108, %c0_109, %c0_110] : memref<16x32x128xbf16, #tpu.memory_space<vmem>>, vector<1x32x128xbf16>
    %136 = vector.shape_cast %135 : vector<1x32x128xbf16> to vector<32x128xbf16>
    %137 = vector.shape_cast %134 : vector<32x128xbf16> to vector<1x32x128xbf16>
    tpu.vector_store %arg9[%c15_108, %c0_109, %c0_110], %137 {strides = array<i32>} : memref<16x32x128xbf16, #tpu.memory_space<vmem>>, vector<1x32x128xbf16>,
    %138 = tpu.iota {dimensions = array<i32: 0>} : vector<31x128xi32>
    %139 = tpu.iota {dimensions = array<i32: 1>} : vector<31x128xi32>
    %c2_i32_111 = arith.constant 2 : i32
    %140 = vector.broadcast %c2_i32_111 : i32 to vector<31x128xi32>
    %141 = arith.muli %140, %138 : vector<31x128xi32>
    %c1_i32_112 = arith.constant 1 : i32
    %142 = vector.broadcast %c1_i32_112 : i32 to vector<31x128xi32>
    %143 = arith.addi %141, %142 : vector<31x128xi32>
    %144 = arith.cmpi eq, %139, %143 : vector<31x128xi32>
    %145 = arith.extui %144 : vector<31x128xi1> to vector<31x128xi32>
    %146 = arith.sitofp %145 : vector<31x128xi32> to vector<31x128xf32>
    %147 = arith.truncf %146 : vector<31x128xf32> to vector<31x128xbf16>
    %c0_113 = arith.constant 0 : index
    %c0_114 = arith.constant 0 : index
    %148 = vector.load %arg2[%c0_113, %c0_114] : memref<64x192xbf16, #tpu.memory_space<vmem>>, vector<64x192xbf16>
    %c0_115 = arith.constant 0 : index
    %c0_116 = arith.constant 0 : index
    %149 = vector.load %arg3[%c0_115, %c0_116] : memref<64x1xf32, #tpu.memory_space<vmem>>, vector<64x1xf32>
    %c0_i32 = arith.constant 0 : i32
    %c15_i32 = arith.constant 15 : i32
    %150 = arith.addi %c0_i32, %c15_i32 : i32
    %c1_i32_117 = arith.constant 1 : i32
    scf.for %arg12 = %c0_i32 to %150 step %c1_i32_117  : i32 {
      %225 = arith.index_cast %arg12 : i32 to index
      %c0_160 = arith.constant 0 : index
      %c0_161 = arith.constant 0 : index
      %226 = vector.load %arg9[%225, %c0_160, %c0_161] : memref<16x32x128xbf16, #tpu.memory_space<vmem>>, vector<1x32x128xbf16>
      %227 = vector.shape_cast %226 : vector<1x32x128xbf16> to vector<32x128xbf16>
      %c1_i32_162 = arith.constant 1 : i32
      %228 = arith.addi %arg12, %c1_i32_162 : i32
      %229 = arith.index_cast %228 : i32 to index
      %c0_163 = arith.constant 0 : index
      %c0_164 = arith.constant 0 : index
      %230 = vector.load %arg9[%229, %c0_163, %c0_164] : memref<16x32x128xbf16, #tpu.memory_space<vmem>>, vector<1x32x128xbf16>
      %231 = vector.shape_cast %230 : vector<1x32x128xbf16> to vector<32x128xbf16>
      %232 = vector.extract_strided_slice %227 {offsets = [0, 0], sizes = [32, 126], strides = [1, 1]} : vector<32x128xbf16> to vector<32x126xbf16>
      %233 = vector.extract_strided_slice %227 {offsets = [0, 1], sizes = [32, 126], strides = [1, 1]} : vector<32x128xbf16> to vector<32x126xbf16>
      %234 = vector.extract_strided_slice %227 {offsets = [0, 2], sizes = [32, 126], strides = [1, 1]} : vector<32x128xbf16> to vector<32x126xbf16>
      %235 = vector.extract_strided_slice %231 {offsets = [0, 0], sizes = [32, 126], strides = [1, 1]} : vector<32x128xbf16> to vector<32x126xbf16>
      %236 = vector.extract_strided_slice %231 {offsets = [0, 1], sizes = [32, 126], strides = [1, 1]} : vector<32x128xbf16> to vector<32x126xbf16>
      %237 = vector.extract_strided_slice %231 {offsets = [0, 2], sizes = [32, 126], strides = [1, 1]} : vector<32x128xbf16> to vector<32x126xbf16>
      %238 = tpu.concatenate %232, %233, %234, %235, %236, %237 in 0 : vector<32x126xbf16>, vector<32x126xbf16>, vector<32x126xbf16>, vector<32x126xbf16>, vector<32x126xbf16>, vector<32x126xbf16> -> vector<192x126xbf16>
      %cst_165 = arith.constant dense<0.000000e+00> : vector<64x126xf32>
      %239 = tpu.matmul %148, %238, %cst_165 {dimension_numbers = #tpu.dot_dimension_numbers<[1], [0], [0], [1], [0, 0, 1, 1], [], []>} : vector<64x192xbf16>, vector<192x126xbf16>, vector<64x126xf32> -> vector<64x126xf32>
      %240 = vector.broadcast %149 : vector<64x1xf32> to vector<64x126xf32>
      %241 = arith.addf %239, %240 : vector<64x126xf32>
      %c2_i32_166 = arith.constant 2 : i32
      %242 = arith.muli %c2_i32_166, %arg12 : i32
      %243 = vector.extract_strided_slice %241 {offsets = [0, 0], sizes = [64, 31], strides = [1, 1]} : vector<64x126xf32> to vector<64x31xf32>
      %244 = arith.truncf %243 : vector<64x31xf32> to vector<64x31xbf16>
      %cst_167 = arith.constant dense<0.000000e+00> : vector<64x128xf32>
      %245 = tpu.matmul %244, %147, %cst_167 {dimension_numbers = #tpu.dot_dimension_numbers<[1], [0], [0], [1], [0, 0, 1, 1], [], []>} : vector<64x31xbf16>, vector<31x128xbf16>, vector<64x128xf32> -> vector<64x128xf32>
      %246 = arith.truncf %245 : vector<64x128xf32> to vector<64x128xbf16>
      %247 = vector.extract_strided_slice %246 {offsets = [0, 0], sizes = [32, 128], strides = [1, 1]} : vector<64x128xbf16> to vector<32x128xbf16>
      %248 = arith.index_cast %242 : i32 to index
      %c0_168 = arith.constant 0 : index
      %c0_169 = arith.constant 0 : index
      %249 = vector.load %arg10[%248, %c0_168, %c0_169] : memref<31x32x128xbf16, #tpu.memory_space<vmem>>, vector<1x32x128xbf16>
      %250 = vector.shape_cast %249 : vector<1x32x128xbf16> to vector<32x128xbf16>
      %251 = vector.shape_cast %247 : vector<32x128xbf16> to vector<1x32x128xbf16>
      tpu.vector_store %arg10[%248, %c0_168, %c0_169], %251 {strides = array<i32>} : memref<31x32x128xbf16, #tpu.memory_space<vmem>>, vector<1x32x128xbf16>,
      %252 = vector.extract_strided_slice %246 {offsets = [32, 0], sizes = [32, 128], strides = [1, 1]} : vector<64x128xbf16> to vector<32x128xbf16>
      %c1_i32_170 = arith.constant 1 : i32
      %253 = arith.addi %242, %c1_i32_170 : i32
      %254 = arith.index_cast %253 : i32 to index
      %c0_171 = arith.constant 0 : index
      %c0_172 = arith.constant 0 : index
      %255 = vector.load %arg10[%254, %c0_171, %c0_172] : memref<31x32x128xbf16, #tpu.memory_space<vmem>>, vector<1x32x128xbf16>
      %256 = vector.shape_cast %255 : vector<1x32x128xbf16> to vector<32x128xbf16>
      %257 = vector.shape_cast %252 : vector<32x128xbf16> to vector<1x32x128xbf16>
      tpu.vector_store %arg10[%254, %c0_171, %c0_172], %257 {strides = array<i32>} : memref<31x32x128xbf16, #tpu.memory_space<vmem>>, vector<1x32x128xbf16>,
    }
    %c15_i32_118 = arith.constant 15 : i32
    %c15_119 = arith.constant 15 : index
    %c0_120 = arith.constant 0 : index
    %c0_121 = arith.constant 0 : index
    %151 = vector.load %arg9[%c15_119, %c0_120, %c0_121] : memref<16x32x128xbf16, #tpu.memory_space<vmem>>, vector<1x32x128xbf16>
    %152 = vector.shape_cast %151 : vector<1x32x128xbf16> to vector<32x128xbf16>
    %153 = vector.extract_strided_slice %152 {offsets = [0, 0], sizes = [32, 126], strides = [1, 1]} : vector<32x128xbf16> to vector<32x126xbf16>
    %154 = vector.extract_strided_slice %152 {offsets = [0, 1], sizes = [32, 126], strides = [1, 1]} : vector<32x128xbf16> to vector<32x126xbf16>
    %155 = vector.extract_strided_slice %152 {offsets = [0, 2], sizes = [32, 126], strides = [1, 1]} : vector<32x128xbf16> to vector<32x126xbf16>
    %156 = tpu.concatenate %153, %154, %155 in 0 : vector<32x126xbf16>, vector<32x126xbf16>, vector<32x126xbf16> -> vector<96x126xbf16>
    %157 = vector.extract_strided_slice %148 {offsets = [0, 0], sizes = [32, 96], strides = [1, 1]} : vector<64x192xbf16> to vector<32x96xbf16>
    %cst_122 = arith.constant dense<0.000000e+00> : vector<32x126xf32>
    %158 = tpu.matmul %157, %156, %cst_122 {dimension_numbers = #tpu.dot_dimension_numbers<[1], [0], [0], [1], [0, 0, 1, 1], [], []>} : vector<32x96xbf16>, vector<96x126xbf16>, vector<32x126xf32> -> vector<32x126xf32>
    %159 = vector.extract_strided_slice %149 {offsets = [0, 0], sizes = [32, 1], strides = [1, 1]} : vector<64x1xf32> to vector<32x1xf32>
    %160 = vector.broadcast %159 : vector<32x1xf32> to vector<32x126xf32>
    %161 = arith.addf %158, %160 : vector<32x126xf32>
    %162 = vector.extract_strided_slice %161 {offsets = [0, 0], sizes = [32, 31], strides = [1, 1]} : vector<32x126xf32> to vector<32x31xf32>
    %163 = arith.truncf %162 : vector<32x31xf32> to vector<32x31xbf16>
    %cst_123 = arith.constant dense<0.000000e+00> : vector<32x128xf32>
    %164 = tpu.matmul %163, %147, %cst_123 {dimension_numbers = #tpu.dot_dimension_numbers<[1], [0], [0], [1], [0, 0, 1, 1], [], []>} : vector<32x31xbf16>, vector<31x128xbf16>, vector<32x128xf32> -> vector<32x128xf32>
    %165 = arith.truncf %164 : vector<32x128xf32> to vector<32x128xbf16>
    %c30 = arith.constant 30 : index
    %c0_124 = arith.constant 0 : index
    %c0_125 = arith.constant 0 : index
    %166 = vector.load %arg10[%c30, %c0_124, %c0_125] : memref<31x32x128xbf16, #tpu.memory_space<vmem>>, vector<1x32x128xbf16>
    %167 = vector.shape_cast %166 : vector<1x32x128xbf16> to vector<32x128xbf16>
    %168 = vector.shape_cast %165 : vector<32x128xbf16> to vector<1x32x128xbf16>
    tpu.vector_store %arg10[%c30, %c0_124, %c0_125], %168 {strides = array<i32>} : memref<31x32x128xbf16, #tpu.memory_space<vmem>>, vector<1x32x128xbf16>,
    %169 = tpu.iota {dimensions = array<i32: 0>} : vector<61x128xi32>
    %170 = tpu.iota {dimensions = array<i32: 1>} : vector<61x128xi32>
    %c2_i32_126 = arith.constant 2 : i32
    %171 = vector.broadcast %c2_i32_126 : i32 to vector<61x128xi32>
    %172 = arith.muli %171, %169 : vector<61x128xi32>
    %c1_i32_127 = arith.constant 1 : i32
    %173 = vector.broadcast %c1_i32_127 : i32 to vector<61x128xi32>
    %174 = arith.addi %172, %173 : vector<61x128xi32>
    %175 = arith.cmpi eq, %170, %174 : vector<61x128xi32>
    %176 = arith.extui %175 : vector<61x128xi1> to vector<61x128xi32>
    %177 = arith.sitofp %176 : vector<61x128xi32> to vector<61x128xf32>
    %178 = arith.truncf %177 : vector<61x128xf32> to vector<61x128xbf16>
    %c0_128 = arith.constant 0 : index
    %c0_129 = arith.constant 0 : index
    %179 = vector.load %arg4[%c0_128, %c0_129] : memref<64x192xbf16, #tpu.memory_space<vmem>>, vector<64x192xbf16>
    %c0_130 = arith.constant 0 : index
    %c0_131 = arith.constant 0 : index
    %180 = vector.load %arg5[%c0_130, %c0_131] : memref<64x1xf32, #tpu.memory_space<vmem>>, vector<64x1xf32>
    %c0_i32_132 = arith.constant 0 : i32
    %c30_i32 = arith.constant 30 : i32
    %181 = arith.addi %c0_i32_132, %c30_i32 : i32
    %c1_i32_133 = arith.constant 1 : i32
    scf.for %arg12 = %c0_i32_132 to %181 step %c1_i32_133  : i32 {
      %225 = arith.index_cast %arg12 : i32 to index
      %c0_160 = arith.constant 0 : index
      %c0_161 = arith.constant 0 : index
      %226 = vector.load %arg10[%225, %c0_160, %c0_161] : memref<31x32x128xbf16, #tpu.memory_space<vmem>>, vector<1x32x128xbf16>
      %227 = vector.shape_cast %226 : vector<1x32x128xbf16> to vector<32x128xbf16>
      %c1_i32_162 = arith.constant 1 : i32
      %228 = arith.addi %arg12, %c1_i32_162 : i32
      %229 = arith.index_cast %228 : i32 to index
      %c0_163 = arith.constant 0 : index
      %c0_164 = arith.constant 0 : index
      %230 = vector.load %arg10[%229, %c0_163, %c0_164] : memref<31x32x128xbf16, #tpu.memory_space<vmem>>, vector<1x32x128xbf16>
      %231 = vector.shape_cast %230 : vector<1x32x128xbf16> to vector<32x128xbf16>
      %232 = vector.extract_strided_slice %227 {offsets = [0, 0], sizes = [32, 126], strides = [1, 1]} : vector<32x128xbf16> to vector<32x126xbf16>
      %233 = vector.extract_strided_slice %227 {offsets = [0, 1], sizes = [32, 126], strides = [1, 1]} : vector<32x128xbf16> to vector<32x126xbf16>
      %234 = vector.extract_strided_slice %227 {offsets = [0, 2], sizes = [32, 126], strides = [1, 1]} : vector<32x128xbf16> to vector<32x126xbf16>
      %235 = vector.extract_strided_slice %231 {offsets = [0, 0], sizes = [32, 126], strides = [1, 1]} : vector<32x128xbf16> to vector<32x126xbf16>
      %236 = vector.extract_strided_slice %231 {offsets = [0, 1], sizes = [32, 126], strides = [1, 1]} : vector<32x128xbf16> to vector<32x126xbf16>
      %237 = vector.extract_strided_slice %231 {offsets = [0, 2], sizes = [32, 126], strides = [1, 1]} : vector<32x128xbf16> to vector<32x126xbf16>
      %238 = tpu.concatenate %232, %233, %234, %235, %236, %237 in 0 : vector<32x126xbf16>, vector<32x126xbf16>, vector<32x126xbf16>, vector<32x126xbf16>, vector<32x126xbf16>, vector<32x126xbf16> -> vector<192x126xbf16>
      %cst_165 = arith.constant dense<0.000000e+00> : vector<64x126xf32>
      %239 = tpu.matmul %179, %238, %cst_165 {dimension_numbers = #tpu.dot_dimension_numbers<[1], [0], [0], [1], [0, 0, 1, 1], [], []>} : vector<64x192xbf16>, vector<192x126xbf16>, vector<64x126xf32> -> vector<64x126xf32>
      %240 = vector.broadcast %180 : vector<64x1xf32> to vector<64x126xf32>
      %241 = arith.addf %239, %240 : vector<64x126xf32>
      %c2_i32_166 = arith.constant 2 : i32
      %242 = arith.muli %c2_i32_166, %arg12 : i32
      %243 = vector.extract_strided_slice %241 {offsets = [0, 0], sizes = [64, 61], strides = [1, 1]} : vector<64x126xf32> to vector<64x61xf32>
      %244 = arith.truncf %243 : vector<64x61xf32> to vector<64x61xbf16>
      %cst_167 = arith.constant dense<0.000000e+00> : vector<64x128xf32>
      %245 = tpu.matmul %244, %178, %cst_167 {dimension_numbers = #tpu.dot_dimension_numbers<[1], [0], [0], [1], [0, 0, 1, 1], [], []>} : vector<64x61xbf16>, vector<61x128xbf16>, vector<64x128xf32> -> vector<64x128xf32>
      %246 = arith.truncf %245 : vector<64x128xf32> to vector<64x128xbf16>
      %247 = vector.extract_strided_slice %246 {offsets = [0, 0], sizes = [32, 128], strides = [1, 1]} : vector<64x128xbf16> to vector<32x128xbf16>
      %248 = arith.index_cast %242 : i32 to index
      %c0_168 = arith.constant 0 : index
      %c0_169 = arith.constant 0 : index
      %249 = vector.load %arg11[%248, %c0_168, %c0_169] : memref<61x32x128xbf16, #tpu.memory_space<vmem>>, vector<1x32x128xbf16>
      %250 = vector.shape_cast %249 : vector<1x32x128xbf16> to vector<32x128xbf16>
      %251 = vector.shape_cast %247 : vector<32x128xbf16> to vector<1x32x128xbf16>
      tpu.vector_store %arg11[%248, %c0_168, %c0_169], %251 {strides = array<i32>} : memref<61x32x128xbf16, #tpu.memory_space<vmem>>, vector<1x32x128xbf16>,
      %252 = vector.extract_strided_slice %246 {offsets = [32, 0], sizes = [32, 128], strides = [1, 1]} : vector<64x128xbf16> to vector<32x128xbf16>
      %c1_i32_170 = arith.constant 1 : i32
      %253 = arith.addi %242, %c1_i32_170 : i32
      %254 = arith.index_cast %253 : i32 to index
      %c0_171 = arith.constant 0 : index
      %c0_172 = arith.constant 0 : index
      %255 = vector.load %arg11[%254, %c0_171, %c0_172] : memref<61x32x128xbf16, #tpu.memory_space<vmem>>, vector<1x32x128xbf16>
      %256 = vector.shape_cast %255 : vector<1x32x128xbf16> to vector<32x128xbf16>
      %257 = vector.shape_cast %252 : vector<32x128xbf16> to vector<1x32x128xbf16>
      tpu.vector_store %arg11[%254, %c0_171, %c0_172], %257 {strides = array<i32>} : memref<61x32x128xbf16, #tpu.memory_space<vmem>>, vector<1x32x128xbf16>,
    }
    %c30_i32_134 = arith.constant 30 : i32
    %c30_135 = arith.constant 30 : index
    %c0_136 = arith.constant 0 : index
    %c0_137 = arith.constant 0 : index
    %182 = vector.load %arg10[%c30_135, %c0_136, %c0_137] : memref<31x32x128xbf16, #tpu.memory_space<vmem>>, vector<1x32x128xbf16>
    %183 = vector.shape_cast %182 : vector<1x32x128xbf16> to vector<32x128xbf16>
    %184 = vector.extract_strided_slice %183 {offsets = [0, 0], sizes = [32, 126], strides = [1, 1]} : vector<32x128xbf16> to vector<32x126xbf16>
    %185 = vector.extract_strided_slice %183 {offsets = [0, 1], sizes = [32, 126], strides = [1, 1]} : vector<32x128xbf16> to vector<32x126xbf16>
    %186 = vector.extract_strided_slice %183 {offsets = [0, 2], sizes = [32, 126], strides = [1, 1]} : vector<32x128xbf16> to vector<32x126xbf16>
    %187 = tpu.concatenate %184, %185, %186 in 0 : vector<32x126xbf16>, vector<32x126xbf16>, vector<32x126xbf16> -> vector<96x126xbf16>
    %188 = vector.extract_strided_slice %179 {offsets = [0, 0], sizes = [32, 96], strides = [1, 1]} : vector<64x192xbf16> to vector<32x96xbf16>
    %cst_138 = arith.constant dense<0.000000e+00> : vector<32x126xf32>
    %189 = tpu.matmul %188, %187, %cst_138 {dimension_numbers = #tpu.dot_dimension_numbers<[1], [0], [0], [1], [0, 0, 1, 1], [], []>} : vector<32x96xbf16>, vector<96x126xbf16>, vector<32x126xf32> -> vector<32x126xf32>
    %190 = vector.extract_strided_slice %180 {offsets = [0, 0], sizes = [32, 1], strides = [1, 1]} : vector<64x1xf32> to vector<32x1xf32>
    %191 = vector.broadcast %190 : vector<32x1xf32> to vector<32x126xf32>
    %192 = arith.addf %189, %191 : vector<32x126xf32>
    %193 = vector.extract_strided_slice %192 {offsets = [0, 0], sizes = [32, 61], strides = [1, 1]} : vector<32x126xf32> to vector<32x61xf32>
    %194 = arith.truncf %193 : vector<32x61xf32> to vector<32x61xbf16>
    %cst_139 = arith.constant dense<0.000000e+00> : vector<32x128xf32>
    %195 = tpu.matmul %194, %178, %cst_139 {dimension_numbers = #tpu.dot_dimension_numbers<[1], [0], [0], [1], [0, 0, 1, 1], [], []>} : vector<32x61xbf16>, vector<61x128xbf16>, vector<32x128xf32> -> vector<32x128xf32>
    %196 = arith.truncf %195 : vector<32x128xf32> to vector<32x128xbf16>
    %c60 = arith.constant 60 : index
    %c0_140 = arith.constant 0 : index
    %c0_141 = arith.constant 0 : index
    %197 = vector.load %arg11[%c60, %c0_140, %c0_141] : memref<61x32x128xbf16, #tpu.memory_space<vmem>>, vector<1x32x128xbf16>
    %198 = vector.shape_cast %197 : vector<1x32x128xbf16> to vector<32x128xbf16>
    %199 = vector.shape_cast %196 : vector<32x128xbf16> to vector<1x32x128xbf16>
    tpu.vector_store %arg11[%c60, %c0_140, %c0_141], %199 {strides = array<i32>} : memref<61x32x128xbf16, #tpu.memory_space<vmem>>, vector<1x32x128xbf16>,
    %c0_142 = arith.constant 0 : index
    %c0_143 = arith.constant 0 : index
    %200 = vector.load %arg6[%c0_142, %c0_143] : memref<64x192xbf16, #tpu.memory_space<vmem>>, vector<64x192xbf16>
    %c0_144 = arith.constant 0 : index
    %c0_145 = arith.constant 0 : index
    %201 = vector.load %arg7[%c0_144, %c0_145] : memref<64x1xf32, #tpu.memory_space<vmem>>, vector<64x1xf32>
    %c0_i32_146 = arith.constant 0 : i32
    %c60_i32 = arith.constant 60 : i32
    %202 = arith.addi %c0_i32_146, %c60_i32 : i32
    %c1_i32_147 = arith.constant 1 : i32
    scf.for %arg12 = %c0_i32_146 to %202 step %c1_i32_147  : i32 {
      %225 = arith.index_cast %arg12 : i32 to index
      %c0_160 = arith.constant 0 : index
      %c0_161 = arith.constant 0 : index
      %226 = vector.load %arg11[%225, %c0_160, %c0_161] : memref<61x32x128xbf16, #tpu.memory_space<vmem>>, vector<1x32x128xbf16>
      %227 = vector.shape_cast %226 : vector<1x32x128xbf16> to vector<32x128xbf16>
      %c1_i32_162 = arith.constant 1 : i32
      %228 = arith.addi %arg12, %c1_i32_162 : i32
      %229 = arith.index_cast %228 : i32 to index
      %c0_163 = arith.constant 0 : index
      %c0_164 = arith.constant 0 : index
      %230 = vector.load %arg11[%229, %c0_163, %c0_164] : memref<61x32x128xbf16, #tpu.memory_space<vmem>>, vector<1x32x128xbf16>
      %231 = vector.shape_cast %230 : vector<1x32x128xbf16> to vector<32x128xbf16>
      %232 = vector.extract_strided_slice %227 {offsets = [0, 0], sizes = [32, 126], strides = [1, 1]} : vector<32x128xbf16> to vector<32x126xbf16>
      %233 = vector.extract_strided_slice %227 {offsets = [0, 1], sizes = [32, 126], strides = [1, 1]} : vector<32x128xbf16> to vector<32x126xbf16>
      %234 = vector.extract_strided_slice %227 {offsets = [0, 2], sizes = [32, 126], strides = [1, 1]} : vector<32x128xbf16> to vector<32x126xbf16>
      %235 = vector.extract_strided_slice %231 {offsets = [0, 0], sizes = [32, 126], strides = [1, 1]} : vector<32x128xbf16> to vector<32x126xbf16>
      %236 = vector.extract_strided_slice %231 {offsets = [0, 1], sizes = [32, 126], strides = [1, 1]} : vector<32x128xbf16> to vector<32x126xbf16>
      %237 = vector.extract_strided_slice %231 {offsets = [0, 2], sizes = [32, 126], strides = [1, 1]} : vector<32x128xbf16> to vector<32x126xbf16>
      %238 = tpu.concatenate %232, %233, %234, %235, %236, %237 in 0 : vector<32x126xbf16>, vector<32x126xbf16>, vector<32x126xbf16>, vector<32x126xbf16>, vector<32x126xbf16>, vector<32x126xbf16> -> vector<192x126xbf16>
      %cst_165 = arith.constant dense<0.000000e+00> : vector<64x126xf32>
      %239 = tpu.matmul %200, %238, %cst_165 {dimension_numbers = #tpu.dot_dimension_numbers<[1], [0], [0], [1], [0, 0, 1, 1], [], []>} : vector<64x192xbf16>, vector<192x126xbf16>, vector<64x126xf32> -> vector<64x126xf32>
      %240 = vector.broadcast %201 : vector<64x1xf32> to vector<64x126xf32>
      %241 = arith.addf %239, %240 : vector<64x126xf32>
      %c2_i32_166 = arith.constant 2 : i32
      %242 = arith.muli %c2_i32_166, %arg12 : i32
      %cst_167 = arith.constant 3.000000e+00 : f32
      %243 = vector.broadcast %cst_167 : f32 to vector<64x126xf32>
      %244 = arith.addf %241, %243 : vector<64x126xf32>
      %cst_168 = arith.constant 0.000000e+00 : f32
      %cst_169 = arith.constant 6.000000e+00 : f32
      %245 = vector.broadcast %cst_168 : f32 to vector<64x126xf32>
      %246 = arith.maximumf %245, %244 : vector<64x126xf32>
      %247 = vector.broadcast %cst_169 : f32 to vector<64x126xf32>
      %248 = arith.minimumf %247, %246 : vector<64x126xf32>
      %cst_170 = arith.constant 0.166666672 : f32
      %249 = vector.broadcast %cst_170 : f32 to vector<64x126xf32>
      %250 = arith.mulf %248, %249 : vector<64x126xf32>
      %251 = vector.extract_strided_slice %250 {offsets = [0, 0], sizes = [32, 126], strides = [1, 1]} : vector<64x126xf32> to vector<32x126xf32>
      %c0_171 = arith.constant 0 : index
      %252 = arith.index_cast %242 : i32 to index
      %c0_172 = arith.constant 0 : index
      %c0_173 = arith.constant 0 : index
      %253 = vector.load %arg8[%c0_171, %252, %c0_172, %c0_173] : memref<1x121x32x128xf32, #tpu.memory_space<vmem>>, vector<1x1x32x126xf32>
      %254 = vector.shape_cast %253 : vector<1x1x32x126xf32> to vector<32x126xf32>
      %255 = vector.shape_cast %251 : vector<32x126xf32> to vector<1x1x32x126xf32>
      tpu.vector_store %arg8[%c0_171, %252, %c0_172, %c0_173], %255 {strides = array<i32>} : memref<1x121x32x128xf32, #tpu.memory_space<vmem>>, vector<1x1x32x126xf32>,
      %256 = vector.extract_strided_slice %250 {offsets = [32, 0], sizes = [32, 126], strides = [1, 1]} : vector<64x126xf32> to vector<32x126xf32>
      %c1_i32_174 = arith.constant 1 : i32
      %257 = arith.addi %242, %c1_i32_174 : i32
      %c0_175 = arith.constant 0 : index
      %258 = arith.index_cast %257 : i32 to index
      %c0_176 = arith.constant 0 : index
      %c0_177 = arith.constant 0 : index
      %259 = vector.load %arg8[%c0_175, %258, %c0_176, %c0_177] : memref<1x121x32x128xf32, #tpu.memory_space<vmem>>, vector<1x1x32x126xf32>
      %260 = vector.shape_cast %259 : vector<1x1x32x126xf32> to vector<32x126xf32>
      %261 = vector.shape_cast %256 : vector<32x126xf32> to vector<1x1x32x126xf32>
      tpu.vector_store %arg8[%c0_175, %258, %c0_176, %c0_177], %261 {strides = array<i32>} : memref<1x121x32x128xf32, #tpu.memory_space<vmem>>, vector<1x1x32x126xf32>,
    }
    %c60_i32_148 = arith.constant 60 : i32
    %c60_149 = arith.constant 60 : index
    %c0_150 = arith.constant 0 : index
    %c0_151 = arith.constant 0 : index
    %203 = vector.load %arg11[%c60_149, %c0_150, %c0_151] : memref<61x32x128xbf16, #tpu.memory_space<vmem>>, vector<1x32x128xbf16>
    %204 = vector.shape_cast %203 : vector<1x32x128xbf16> to vector<32x128xbf16>
    %205 = vector.extract_strided_slice %204 {offsets = [0, 0], sizes = [32, 126], strides = [1, 1]} : vector<32x128xbf16> to vector<32x126xbf16>
    %206 = vector.extract_strided_slice %204 {offsets = [0, 1], sizes = [32, 126], strides = [1, 1]} : vector<32x128xbf16> to vector<32x126xbf16>
    %207 = vector.extract_strided_slice %204 {offsets = [0, 2], sizes = [32, 126], strides = [1, 1]} : vector<32x128xbf16> to vector<32x126xbf16>
    %208 = tpu.concatenate %205, %206, %207 in 0 : vector<32x126xbf16>, vector<32x126xbf16>, vector<32x126xbf16> -> vector<96x126xbf16>
    %209 = vector.extract_strided_slice %200 {offsets = [0, 0], sizes = [32, 96], strides = [1, 1]} : vector<64x192xbf16> to vector<32x96xbf16>
    %cst_152 = arith.constant dense<0.000000e+00> : vector<32x126xf32>
    %210 = tpu.matmul %209, %208, %cst_152 {dimension_numbers = #tpu.dot_dimension_numbers<[1], [0], [0], [1], [0, 0, 1, 1], [], []>} : vector<32x96xbf16>, vector<96x126xbf16>, vector<32x126xf32> -> vector<32x126xf32>
    %211 = vector.extract_strided_slice %201 {offsets = [0, 0], sizes = [32, 1], strides = [1, 1]} : vector<64x1xf32> to vector<32x1xf32>
    %212 = vector.broadcast %211 : vector<32x1xf32> to vector<32x126xf32>
    %213 = arith.addf %210, %212 : vector<32x126xf32>
    %cst_153 = arith.constant 3.000000e+00 : f32
    %214 = vector.broadcast %cst_153 : f32 to vector<32x126xf32>
    %215 = arith.addf %213, %214 : vector<32x126xf32>
    %cst_154 = arith.constant 0.000000e+00 : f32
    %cst_155 = arith.constant 6.000000e+00 : f32
    %216 = vector.broadcast %cst_154 : f32 to vector<32x126xf32>
    %217 = arith.maximumf %216, %215 : vector<32x126xf32>
    %218 = vector.broadcast %cst_155 : f32 to vector<32x126xf32>
    %219 = arith.minimumf %218, %217 : vector<32x126xf32>
    %cst_156 = arith.constant 0.166666672 : f32
    %220 = vector.broadcast %cst_156 : f32 to vector<32x126xf32>
    %221 = arith.mulf %219, %220 : vector<32x126xf32>
    %c0_157 = arith.constant 0 : index
    %c120 = arith.constant 120 : index
    %c0_158 = arith.constant 0 : index
    %c0_159 = arith.constant 0 : index
    %222 = vector.load %arg8[%c0_157, %c120, %c0_158, %c0_159] : memref<1x121x32x128xf32, #tpu.memory_space<vmem>>, vector<1x1x32x126xf32>
    %223 = vector.shape_cast %222 : vector<1x1x32x126xf32> to vector<32x126xf32>
    %224 = vector.shape_cast %221 : vector<32x126xf32> to vector<1x1x32x126xf32>
    tpu.vector_store %arg8[%c0_157, %c120, %c0_158, %c0_159], %224 {strides = array<i32>} : memref<1x121x32x128xf32, #tpu.memory_space<vmem>>, vector<1x1x32x126xf32>,
    return
  }
  func.func @transform_0(%arg0: i32) -> (i32, i32, i32, i32) {
    %c0_i32 = arith.constant 0 : i32
    %c0_i32_0 = arith.constant 0 : i32
    %c0_i32_1 = arith.constant 0 : i32
    %c0_i32_2 = arith.constant 0 : i32
    return %arg0, %c0_i32, %c0_i32_0, %c0_i32_1 : i32, i32, i32, i32
  }
  func.func @transform_1(%arg0: i32) -> (i32, i32) {
    %c0_i32 = arith.constant 0 : i32
    %c0_i32_0 = arith.constant 0 : i32
    %c0_i32_1 = arith.constant 0 : i32
    return %c0_i32, %c0_i32_0 : i32, i32
  }
  func.func @transform_2(%arg0: i32) -> (i32, i32) {
    %c0_i32 = arith.constant 0 : i32
    %c0_i32_0 = arith.constant 0 : i32
    %c0_i32_1 = arith.constant 0 : i32
    return %c0_i32, %c0_i32_0 : i32, i32
  }
  func.func @transform_3(%arg0: i32) -> (i32, i32) {
    %c0_i32 = arith.constant 0 : i32
    %c0_i32_0 = arith.constant 0 : i32
    %c0_i32_1 = arith.constant 0 : i32
    return %c0_i32, %c0_i32_0 : i32, i32
  }
  func.func @transform_4(%arg0: i32) -> (i32, i32) {
    %c0_i32 = arith.constant 0 : i32
    %c0_i32_0 = arith.constant 0 : i32
    %c0_i32_1 = arith.constant 0 : i32
    return %c0_i32, %c0_i32_0 : i32, i32
  }
  func.func @transform_5(%arg0: i32) -> (i32, i32) {
    %c0_i32 = arith.constant 0 : i32
    %c0_i32_0 = arith.constant 0 : i32
    %c0_i32_1 = arith.constant 0 : i32
    return %c0_i32, %c0_i32_0 : i32, i32
  }
  func.func @transform_6(%arg0: i32) -> (i32, i32) {
    %c0_i32 = arith.constant 0 : i32
    %c0_i32_0 = arith.constant 0 : i32
    %c0_i32_1 = arith.constant 0 : i32
    return %c0_i32, %c0_i32_0 : i32, i32
  }
  func.func @transform_7(%arg0: i32) -> (i32, i32, i32, i32) {
    %c0_i32 = arith.constant 0 : i32
    %c0_i32_0 = arith.constant 0 : i32
    %c0_i32_1 = arith.constant 0 : i32
    %c0_i32_2 = arith.constant 0 : i32
    return %arg0, %c0_i32, %c0_i32_0, %c0_i32_1 : i32, i32, i32, i32
  }
}

</mosaic_0001>

<llo_original>
// kernel: fused_forward.1
$region0: #{fused_forward.1}
  #allocation0 [shape = 'u32[]', space=smem, size = 0x4, offset = 0x4, fixed_abs, tag = 'smem constant byte address 0x4 - core index']
  #allocation1 [shape = 'u32[144,128]{1,0:T(1,128)}', space=vmem, size = 0x12000, scoped, tag = 'internal scratch']
  #allocation2 [shape = 'bf16[16,32,128]{2,1,0:T(16,128)(2,1)}', space=vmem, size = 0x20000, scoped, tag = 'scratch operand']
  #allocation3 [shape = 'bf16[31,32,128]{2,1,0:T(16,128)(2,1)}', space=vmem, size = 0x3e000, scoped, tag = 'scratch operand']
  #allocation4 [shape = 'bf16[61,32,128]{2,1,0:T(16,128)(2,1)}', space=vmem, size = 0x7a000, scoped, tag = 'scratch operand']
  %s0 = inlined_call_operand.vmem [shape: f32[1,16,32,16], index: 0, kind: input, shape index: {}]
  %s1 = inlined_call_operand.hbm [shape: bf16[64,192], index: 1, kind: input, shape index: {}]
  %s2 = inlined_call_operand.vmem [shape: f32[64,1], index: 2, kind: input, shape index: {}]
  %s3 = inlined_call_operand.hbm [shape: bf16[64,192], index: 3, kind: input, shape index: {}]
  %s4 = inlined_call_operand.vmem [shape: f32[64,1], index: 4, kind: input, shape index: {}]
  %s5 = inlined_call_operand.hbm [shape: bf16[64,192], index: 5, kind: input, shape index: {}]
  %s6 = inlined_call_operand.vmem [shape: f32[64,1], index: 6, kind: input, shape index: {}]
  %s7 = inlined_call_operand.vmem [shape: f32[1,121,32,128], index: 7, kind: output, shape index: {}]
  %s8 = sld [smem:[#allocation0]]
  $region71: #{fused_forward.1} parent=0
    _
  %s10 = ssub.s32 1, %s8
  %s11 = scalar_select 0, %s10, %s8
  $region1: #{fused_forward.1} parent=0
    #allocation5 [shape = 'u8[32768]{0}', space=vmem, size = 0x8000, scoped, tag = 'input window, operand 1, single buffered']
    #allocation6 [shape = 's32[1]{0}', space=sflag, size = 0x4, scoped, tag = 'scoped memory for fused_forward.1']
    #allocation7 [shape = 'u8[32768]{0}', space=vmem, size = 0x8000, scoped, tag = 'input window, operand 3, single buffered']
    #allocation8 [shape = 's32[1]{0}', space=sflag, size = 0x4, scoped, tag = 'scoped memory for fused_forward.1']
    #allocation9 [shape = 'u8[32768]{0}', space=vmem, size = 0x8000, scoped, tag = 'input window, operand 5, single buffered']
    %12 = vsyncpa [#allocation6], 0
    %13 = vsyncpa [#allocation8], 0
    // Predicated region
    $region2: #{fused_forward.1} parent=1 // pred_check
      _
    $region3: #{fused_forward.1} parent=1 // pred_check_branch
      %15 = sbr.rel (0) target = $region5
    $region4: #{fused_forward.1} parent=1 // pred_region
      _
    $region5: #{fused_forward.1} parent=1 // pred_fallthru
      _
    // Predicated region
    $region6: #{fused_forward.1} parent=1 // pred_check
      _
    $region7: #{fused_forward.1} parent=1 // pred_check_branch
      %17 = sbr.rel (0) target = $region9
    $region8: #{fused_forward.1} parent=1 // pred_region
      %s19 = ssub.s32 1024, 1024
      %20 = vsyncadd [#allocation6], %s19
      %s21 = sshll.u32 [#allocation5], 4
      %s22 = int_to_ptr.vmem [resolvable:$true] %s21
      %27 = dma.hbm_to_vmem [thread:$0]  %s1, 1024, %s22, [#allocation6], 128, 128, 8
    $region9: #{fused_forward.1} parent=1 // pred_fallthru
      _
    // Predicated region
    $region10: #{fused_forward.1} parent=1 // pred_check
      _
    $region11: #{fused_forward.1} parent=1 // pred_check_branch
      %29 = sbr.rel (0) target = $region13
    $region12: #{fused_forward.1} parent=1 // pred_region
      _
    $region13: #{fused_forward.1} parent=1 // pred_fallthru
      _
    // Predicated region
    $region14: #{fused_forward.1} parent=1 // pred_check
      _
    $region15: #{fused_forward.1} parent=1 // pred_check_branch
      %31 = sbr.rel (0) target = $region17
    $region16: #{fused_forward.1} parent=1 // pred_region
      %s33 = ssub.s32 1024, 1024
      %34 = vsyncadd [#allocation8], %s33
      %s35 = sshll.u32 [#allocation7], 4
      %s36 = int_to_ptr.vmem [resolvable:$true] %s35
      %41 = dma.hbm_to_vmem [thread:$0]  %s3, 1024, %s36, [#allocation8], 128, 128, 8
    $region17: #{fused_forward.1} parent=1 // pred_fallthru
      _
    // Predicated region
    $region18: #{fused_forward.1} parent=1 // pred_check
      _
    $region19: #{fused_forward.1} parent=1 // pred_check_branch
      %43 = sbr.rel (0) target = $region21
    $region20: #{fused_forward.1} parent=1 // pred_region
      _
    $region21: #{fused_forward.1} parent=1 // pred_fallthru
      _
    // Predicated region
    $region22: #{fused_forward.1} parent=1 // pred_check
      _
    $region23: #{fused_forward.1} parent=1 // pred_check_branch
      %45 = sbr.rel (0) target = $region25
    $region24: #{fused_forward.1} parent=1 // pred_region
      %s47 = ssub.s32 1024, 1024
      %48 = vsyncadd [#allocation8], %s47
      %s49 = sshll.u32 [#allocation9], 4
      %s50 = int_to_ptr.vmem [resolvable:$true] %s49
      %55 = dma.hbm_to_vmem [thread:$0]  %s5, 1024, %s50, [#allocation8], 128, 128, 8
    $region25: #{fused_forward.1} parent=1 // pred_fallthru
      _
    // Predicated region
    $region26: #{fused_forward.1} parent=1 // pred_check
      _
    $region27: #{fused_forward.1} parent=1 // pred_check_branch
      %57 = sbr.rel (0) target = $region29
    $region28: #{fused_forward.1} parent=1 // pred_region
      _
    $region29: #{fused_forward.1} parent=1 // pred_fallthru
      _
    // Predicated region
    $region30: #{fused_forward.1} parent=1 // pred_check
      _
    $region31: #{fused_forward.1} parent=1 // pred_check_branch
      %59 = sbr.rel (0) target = $region33
    $region32: #{fused_forward.1} parent=1 // pred_region
      %60 = dma.done [#allocation6], 1024
    $region33: #{fused_forward.1} parent=1 // pred_fallthru
      _
    // Predicated region
    $region34: #{fused_forward.1} parent=1 // pred_check
      _
    $region35: #{fused_forward.1} parent=1 // pred_check_branch
      %62 = sbr.rel (0) target = $region37
    $region36: #{fused_forward.1} parent=1 // pred_region
      %63 = dma.done [#allocation8], 1024
    $region37: #{fused_forward.1} parent=1 // pred_fallthru
      _
    // Predicated region
    $region38: #{fused_forward.1} parent=1 // pred_check
      _
    $region39: #{fused_forward.1} parent=1 // pred_check_branch
      %65 = sbr.rel (0) target = $region41
    $region40: #{fused_forward.1} parent=1 // pred_region
      %66 = dma.done [#allocation8], 1024
    $region41: #{fused_forward.1} parent=1 // pred_fallthru
      _
    %v68 = vlaneseq
    %v69 = vshrl.u32 %v68, 7
    %v70 = vadd.s32 %v69, 8
    %v71 = vlaneseq
    %v72 = vand.u32 %v71, 127
    %v73 = vmul.u32 %v69, 2
    %v74 = vmul.u32 %v70, 2
    %v75 = vadd.s32 %v73, 1
    %v76 = vadd.s32 %v74, 1
    %vm77 = vcmp.eq.s32.totalorder %v72, %v75
    %vm78 = vcmp.eq.s32.totalorder %v72, %v76
    %v79 = vsel %vm77, 1, 0
    %v80 = vsel %vm78, 1, 0
    %v81 = vcvt.s32.f32 %v79
    %v82 = vcvt.s32.f32 %v80
    %v83 = vpack.c.bf16 %v82, %v81
    %v84 = vld [vmem:[%s0] sm:$0xff]
    %v85 = vld [vmem:[%s0 + $0x8] sm:$0xff]
    %v86 = vld [vmem:[%s0 + $0x10] sm:$0xff]
    %v87 = vld [vmem:[%s0 + $0x18] sm:$0xff]
    %v88 = vpack.c.bf16 %v85, %v84
    %v89 = vpack.c.bf16 %v87, %v86
    %vm90 = vcmask 130048
    %v92 = vsel %vm90, %v88, 0
    %v95 = vsel %vm90, %v89, 0
    %97 = vmatprep.subr.bf16.mxu0 0
    %98 = vmatpush1.bf16.msra.mxu0 %v83
    %99 = vmatprep.subr.bf16.mxu0 0
    %100 = vmatpush1.bf16.msra.mxu0 0
    %101 = vmatprep.subr.bf16.mxu0 0
    %102 = vmatpush1.bf16.msra.mxu0 0
    %103 = vmatprep.subr.bf16.mxu0 0
    %104 = vmatpush1.bf16.msra.mxu0 0
    %105 = vmatprep.subr.bf16.mxu0 0
    %106 = vmatpush1.bf16.msra.mxu0 0
    %107 = vmatprep.subr.bf16.mxu0 0
    %108 = vmatpush1.bf16.msra.mxu0 0
    %109 = vmatprep.subr.bf16.mxu0 0
    %110 = vmatpush1.bf16.msra.mxu0 0
    %111 = vmatprep.subr.bf16.mxu0 0
    %112 = vmatpush1.bf16.msra.mxu0 0
    %113 = vmatprep.subr.bf16.mxu0 0
    %114 = vmatpush1.bf16.msra.mxu0 0
    %115 = vmatprep.subr.bf16.mxu0 0
    %116 = vmatpush1.bf16.msra.mxu0 0
    %117 = vmatprep.subr.bf16.mxu0 0
    %118 = vmatpush1.bf16.msra.mxu0 0
    %119 = vmatprep.subr.bf16.mxu0 0
    %120 = vmatpush1.bf16.msra.mxu0 0
    %121 = vmatprep.subr.bf16.mxu0 0
    %122 = vmatpush1.bf16.msra.mxu0 0
    %123 = vmatprep.subr.bf16.mxu0 0
    %124 = vmatpush1.bf16.msra.mxu0 0
    %125 = vmatprep.subr.bf16.mxu0 0
    %126 = vmatpush1.bf16.msra.mxu0 0
    %127 = vmatprep.subr.bf16.mxu0 0
    %128 = vmatpush1.bf16.msra.mxu0 0
    %129 = vmatprep.mubr.bf16.mxu0 0
    %130 = vmatmul.mubr.bf16.gmra.mrb[0].mxu0 %v92
    %v131 = vpop.f32.mrb[0].mxu0
    %v132 = vadd.f32 0.0, %v131
    %v133 = vpop.f32.mrb[0].mxu0
    %v134 = vpop.f32.mrb[0].mxu0
    %v135 = vadd.f32 0.0, %v134
    %v136 = vpop.f32.mrb[0].mxu0
    %137 = vmatprep.mubr.bf16.mxu0 0
    %138 = vmatmul.mubr.bf16.gmra.mrb[0].mxu0 %v95
    %v139 = vpop.f32.mrb[0].mxu0
    %v140 = vadd.f32 0.0, %v139
    %v141 = vpop.f32.mrb[0].mxu0
    %v142 = vpop.f32.mrb[0].mxu0
    %v143 = vadd.f32 0.0, %v142
    %v144 = vpop.f32.mrb[0].mxu0
    %145 = vdwg.mxu0
    %v146 = vpack.c.bf16 %v135, %v132
    %v147 = vpack.c.bf16 %v143, %v140
    %148 = vst [vmem:[#allocation2] sm:$0xff] %v146
    %149 = vst [vmem:[#allocation2 + $0x8] sm:$0xff] %v147
    %s150 = scalar_lea.vmem %s0, 32
    %v151 = vld [vmem:[%s150] sm:$0xff]
    %v152 = vld [vmem:[%s150 + $0x8] sm:$0xff]
    %v153 = vld [vmem:[%s150 + $0x10] sm:$0xff]
    %v154 = vld [vmem:[%s150 + $0x18] sm:$0xff]
    %v155 = vpack.c.bf16 %v152, %v151
    %v156 = vpack.c.bf16 %v154, %v153
    %v158 = vsel %vm90, %v155, 0
    %v161 = vsel %vm90, %v156, 0
    %163 = vmatprep.subr.bf16.mxu0 0
    %164 = vmatpush1.bf16.msra.mxu0 %v83
    %165 = vmatprep.subr.bf16.mxu0 0
    %166 = vmatpush1.bf16.msra.mxu0 0
    %167 = vmatprep.subr.bf16.mxu0 0
    %168 = vmatpush1.bf16.msra.mxu0 0
    %169 = vmatprep.subr.bf16.mxu0 0
    %170 = vmatpush1.bf16.msra.mxu0 0
    %171 = vmatprep.subr.bf16.mxu0 0
    %172 = vmatpush1.bf16.msra.mxu0 0
    %173 = vmatprep.subr.bf16.mxu0 0
    %174 = vmatpush1.bf16.msra.mxu0 0
    %175 = vmatprep.subr.bf16.mxu0 0
    %176 = vmatpush1.bf16.msra.mxu0 0
    %177 = vmatprep.subr.bf16.mxu0 0
    %178 = vmatpush1.bf16.msra.mxu0 0
    %179 = vmatprep.subr.bf16.mxu0 0
    %180 = vmatpush1.bf16.msra.mxu0 0
    %181 = vmatprep.subr.bf16.mxu0 0
    %182 = vmatpush1.bf16.msra.mxu0 0
    %183 = vmatprep.subr.bf16.mxu0 0
    %184 = vmatpush1.bf16.msra.mxu0 0
    %185 = vmatprep.subr.bf16.mxu0 0
    %186 = vmatpush1.bf16.msra.mxu0 0
    %187 = vmatprep.subr.bf16.mxu0 0
    %188 = vmatpush1.bf16.msra.mxu0 0
    %189 = vmatprep.subr.bf16.mxu0 0
    %190 = vmatpush1.bf16.msra.mxu0 0
    %191 = vmatprep.subr.bf16.mxu0 0
    %192 = vmatpush1.bf16.msra.mxu0 0
    %193 = vmatprep.subr.bf16.mxu0 0
    %194 = vmatpush1.bf16.msra.mxu0 0
    %195 = vmatprep.mubr.bf16.mxu0 0
    %196 = vmatmul.mubr.bf16.gmra.mrb[0].mxu0 %v158
    %v197 = vpop.f32.mrb[0].mxu0
    %v198 = vadd.f32 0.0, %v197
    %v199 = vpop.f32.mrb[0].mxu0
    %v200 = vpop.f32.mrb[0].mxu0
    %v201 = vadd.f32 0.0, %v200
    %v202 = vpop.f32.mrb[0].mxu0
    %203 = vmatprep.mubr.bf16.mxu0 0
    %204 = vmatmul.mubr.bf16.gmra.mrb[0].mxu0 %v161
    %v205 = vpop.f32.mrb[0].mxu0
    %v206 = vadd.f32 0.0, %v205
    %v207 = vpop.f32.mrb[0].mxu0
    %v208 = vpop.f32.mrb[0].mxu0
    %v209 = vadd.f32 0.0, %v208
    %v210 = vpop.f32.mrb[0].mxu0
    %211 = vdwg.mxu0
    %v212 = vpack.c.bf16 %v201, %v198
    %v213 = vpack.c.bf16 %v209, %v206
    %s214 = scalar_lea.vmem [#allocation2], 16
    %215 = vst [vmem:[%s214] sm:$0xff] %v212
    %216 = vst [vmem:[%s214 + $0x8] sm:$0xff] %v213
    %s217 = scalar_lea.vmem %s0, 64
    %v218 = vld [vmem:[%s217] sm:$0xff]
    %v219 = vld [vmem:[%s217 + $0x8] sm:$0xff]
    %v220 = vld [vmem:[%s217 + $0x10] sm:$0xff]
    %v221 = vld [vmem:[%s217 + $0x18] sm:$0xff]
    %v222 = vpack.c.bf16 %v219, %v218
    %v223 = vpack.c.bf16 %v221, %v220
    %v225 = vsel %vm90, %v222, 0
    %v228 = vsel %vm90, %v223, 0
    %230 = vmatprep.subr.bf16.mxu0 0
    %231 = vmatpush1.bf16.msra.mxu0 %v83
    %232 = vmatprep.subr.bf16.mxu0 0
    %233 = vmatpush1.bf16.msra.mxu0 0
    %234 = vmatprep.subr.bf16.mxu0 0
    %235 = vmatpush1.bf16.msra.mxu0 0
    %236 = vmatprep.subr.bf16.mxu0 0
    %237 = vmatpush1.bf16.msra.mxu0 0
    %238 = vmatprep.subr.bf16.mxu0 0
    %239 = vmatpush1.bf16.msra.mxu0 0
    %240 = vmatprep.subr.bf16.mxu0 0
    %241 = vmatpush1.bf16.msra.mxu0 0
    %242 = vmatprep.subr.bf16.mxu0 0
    %243 = vmatpush1.bf16.msra.mxu0 0
    %244 = vmatprep.subr.bf16.mxu0 0
    %245 = vmatpush1.bf16.msra.mxu0 0
    %246 = vmatprep.subr.bf16.mxu0 0
    %247 = vmatpush1.bf16.msra.mxu0 0
    %248 = vmatprep.subr.bf16.mxu0 0
    %249 = vmatpush1.bf16.msra.mxu0 0
    %250 = vmatprep.subr.bf16.mxu0 0
    %251 = vmatpush1.bf16.msra.mxu0 0
    %252 = vmatprep.subr.bf16.mxu0 0
    %253 = vmatpush1.bf16.msra.mxu0 0
    %254 = vmatprep.subr.bf16.mxu0 0
    %255 = vmatpush1.bf16.msra.mxu0 0
    %256 = vmatprep.subr.bf16.mxu0 0
    %257 = vmatpush1.bf16.msra.mxu0 0
    %258 = vmatprep.subr.bf16.mxu0 0
    %259 = vmatpush1.bf16.msra.mxu0 0
    %260 = vmatprep.subr.bf16.mxu0 0
    %261 = vmatpush1.bf16.msra.mxu0 0
    %262 = vmatprep.mubr.bf16.mxu0 0
    %263 = vmatmul.mubr.bf16.gmra.mrb[0].mxu0 %v225
    %v264 = vpop.f32.mrb[0].mxu0
    %v265 = vadd.f32 0.0, %v264
    %v266 = vpop.f32.mrb[0].mxu0
    %v267 = vpop.f32.mrb[0].mxu0
    %v268 = vadd.f32 0.0, %v267
    %v269 = vpop.f32.mrb[0].mxu0
    %270 = vmatprep.mubr.bf16.mxu0 0
    %271 = vmatmul.mubr.bf16.gmra.mrb[0].mxu0 %v228
    %v272 = vpop.f32.mrb[0].mxu0
    %v273 = vadd.f32 0.0, %v272
    %v274 = vpop.f32.mrb[0].mxu0
    %v275 = vpop.f32.mrb[0].mxu0
    %v276 = vadd.f32 0.0, %v275
    %v277 = vpop.f32.mrb[0].mxu0
    %278 = vdwg.mxu0
    %v279 = vpack.c.bf16 %v268, %v265
    %v280 = vpack.c.bf16 %v276, %v273
    %s281 = scalar_lea.vmem [#allocation2], 32
    %282 = vst [vmem:[%s281] sm:$0xff] %v279
    %283 = vst [vmem:[%s281 + $0x8] sm:$0xff] %v280
    %s284 = scalar_lea.vmem %s0, 96
    %v285 = vld [vmem:[%s284] sm:$0xff]
    %v286 = vld [vmem:[%s284 + $0x8] sm:$0xff]
    %v287 = vld [vmem:[%s284 + $0x10] sm:$0xff]
    %v288 = vld [vmem:[%s284 + $0x18] sm:$0xff]
    %v289 = vpack.c.bf16 %v286, %v285
    %v290 = vpack.c.bf16 %v288, %v287
    %v292 = vsel %vm90, %v289, 0
    %v295 = vsel %vm90, %v290, 0
    %297 = vmatprep.subr.bf16.mxu0 0
    %298 = vmatpush1.bf16.msra.mxu0 %v83
    %299 = vmatprep.subr.bf16.mxu0 0
    %300 = vmatpush1.bf16.msra.mxu0 0
    %301 = vmatprep.subr.bf16.mxu0 0
    %302 = vmatpush1.bf16.msra.mxu0 0
    %303 = vmatprep.subr.bf16.mxu0 0
    %304 = vmatpush1.bf16.msra.mxu0 0
    %305 = vmatprep.subr.bf16.mxu0 0
    %306 = vmatpush1.bf16.msra.mxu0 0
    %307 = vmatprep.subr.bf16.mxu0 0
    %308 = vmatpush1.bf16.msra.mxu0 0
    %309 = vmatprep.subr.bf16.mxu0 0
    %310 = vmatpush1.bf16.msra.mxu0 0
    %311 = vmatprep.subr.bf16.mxu0 0
    %312 = vmatpush1.bf16.msra.mxu0 0
    %313 = vmatprep.subr.bf16.mxu0 0
    %314 = vmatpush1.bf16.msra.mxu0 0
    %315 = vmatprep.subr.bf16.mxu0 0
    %316 = vmatpush1.bf16.msra.mxu0 0
    %317 = vmatprep.subr.bf16.mxu0 0
    %318 = vmatpush1.bf16.msra.mxu0 0
    %319 = vmatprep.subr.bf16.mxu0 0
    %320 = vmatpush1.bf16.msra.mxu0 0
    %321 = vmatprep.subr.bf16.mxu0 0
    %322 = vmatpush1.bf16.msra.mxu0 0
    %323 = vmatprep.subr.bf16.mxu0 0
    %324 = vmatpush1.bf16.msra.mxu0 0
    %325 = vmatprep.subr.bf16.mxu0 0
    %326 = vmatpush1.bf16.msra.mxu0 0
    %327 = vmatprep.subr.bf16.mxu0 0
    %328 = vmatpush1.bf16.msra.mxu0 0
    %329 = vmatprep.mubr.bf16.mxu0 0
    %330 = vmatmul.mubr.bf16.gmra.mrb[0].mxu0 %v292
    %v331 = vpop.f32.mrb[0].mxu0
    %v332 = vadd.f32 0.0, %v331
    %v333 = vpop.f32.mrb[0].mxu0
    %v334 = vpop.f32.mrb[0].mxu0
    %v335 = vadd.f32 0.0, %v334
    %v336 = vpop.f32.mrb[0].mxu0
    %337 = vmatprep.mubr.bf16.mxu0 0
    %338 = vmatmul.mubr.bf16.gmra.mrb[0].mxu0 %v295
    %v339 = vpop.f32.mrb[0].mxu0
    %v340 = vadd.f32 0.0, %v339
    %v341 = vpop.f32.mrb[0].mxu0
    %v342 = vpop.f32.mrb[0].mxu0
    %v343 = vadd.f32 0.0, %v342
    %v344 = vpop.f32.mrb[0].mxu0
    %345 = vdwg.mxu0
    %v346 = vpack.c.bf16 %v335, %v332
    %v347 = vpack.c.bf16 %v343, %v340
    %s348 = scalar_lea.vmem [#allocation2], 48
    %349 = vst [vmem:[%s348] sm:$0xff] %v346
    %350 = vst [vmem:[%s348 + $0x8] sm:$0xff] %v347
    %s351 = scalar_lea.vmem %s0, 128
    %v352 = vld [vmem:[%s351] sm:$0xff]
    %v353 = vld [vmem:[%s351 + $0x8] sm:$0xff]
    %v354 = vld [vmem:[%s351 + $0x10] sm:$0xff]
    %v355 = vld [vmem:[%s351 + $0x18] sm:$0xff]
    %v356 = vpack.c.bf16 %v353, %v352
    %v357 = vpack.c.bf16 %v355, %v354
    %v359 = vsel %vm90, %v356, 0
    %v362 = vsel %vm90, %v357, 0
    %364 = vmatprep.subr.bf16.mxu0 0
    %365 = vmatpush1.bf16.msra.mxu0 %v83
    %366 = vmatprep.subr.bf16.mxu0 0
    %367 = vmatpush1.bf16.msra.mxu0 0
    %368 = vmatprep.subr.bf16.mxu0 0
    %369 = vmatpush1.bf16.msra.mxu0 0
    %370 = vmatprep.subr.bf16.mxu0 0
    %371 = vmatpush1.bf16.msra.mxu0 0
    %372 = vmatprep.subr.bf16.mxu0 0
    %373 = vmatpush1.bf16.msra.mxu0 0
    %374 = vmatprep.subr.bf16.mxu0 0
    %375 = vmatpush1.bf16.msra.mxu0 0
    %376 = vmatprep.subr.bf16.mxu0 0
    %377 = vmatpush1.bf16.msra.mxu0 0
    %378 = vmatprep.subr.bf16.mxu0 0
    %379 = vmatpush1.bf16.msra.mxu0 0
    %380 = vmatprep.subr.bf16.mxu0 0
    %381 = vmatpush1.bf16.msra.mxu0 0
    %382 = vmatprep.subr.bf16.mxu0 0
    %383 = vmatpush1.bf16.msra.mxu0 0
    %384 = vmatprep.subr.bf16.mxu0 0
    %385 = vmatpush1.bf16.msra.mxu0 0
    %386 = vmatprep.subr.bf16.mxu0 0
    %387 = vmatpush1.bf16.msra.mxu0 0
    %388 = vmatprep.subr.bf16.mxu0 0
    %389 = vmatpush1.bf16.msra.mxu0 0
    %390 = vmatprep.subr.bf16.mxu0 0
    %391 = vmatpush1.bf16.msra.mxu0 0
    %392 = vmatprep.subr.bf16.mxu0 0
    %393 = vmatpush1.bf16.msra.mxu0 0
    %394 = vmatprep.subr.bf16.mxu0 0
    %395 = vmatpush1.bf16.msra.mxu0 0
    %396 = vmatprep.mubr.bf16.mxu0 0
    %397 = vmatmul.mubr.bf16.gmra.mrb[0].mxu0 %v359
    %v398 = vpop.f32.mrb[0].mxu0
    %v399 = vadd.f32 0.0, %v398
    %v400 = vpop.f32.mrb[0].mxu0
    %v401 = vpop.f32.mrb[0].mxu0
    %v402 = vadd.f32 0.0, %v401
    %v403 = vpop.f32.mrb[0].mxu0
    %404 = vmatprep.mubr.bf16.mxu0 0
    %405 = vmatmul.mubr.bf16.gmra.mrb[0].mxu0 %v362
    %v406 = vpop.f32.mrb[0].mxu0
    %v407 = vadd.f32 0.0, %v406
    %v408 = vpop.f32.mrb[0].mxu0
    %v409 = vpop.f32.mrb[0].mxu0
    %v410 = vadd.f32 0.0, %v409
    %v411 = vpop.f32.mrb[0].mxu0
    %412 = vdwg.mxu0
    %v413 = vpack.c.bf16 %v402, %v399
    %v414 = vpack.c.bf16 %v410, %v407
    %s415 = scalar_lea.vmem [#allocation2], 64
    %416 = vst [vmem:[%s415] sm:$0xff] %v413
    %417 = vst [vmem:[%s415 + $0x8] sm:$0xff] %v414
    %s418 = scalar_lea.vmem %s0, 160
    %v419 = vld [vmem:[%s418] sm:$0xff]
    %v420 = vld [vmem:[%s418 + $0x8] sm:$0xff]
    %v421 = vld [vmem:[%s418 + $0x10] sm:$0xff]
    %v422 = vld [vmem:[%s418 + $0x18] sm:$0xff]
    %v423 = vpack.c.bf16 %v420, %v419
    %v424 = vpack.c.bf16 %v422, %v421
    %v426 = vsel %vm90, %v423, 0
    %v429 = vsel %vm90, %v424, 0
    %431 = vmatprep.subr.bf16.mxu0 0
    %432 = vmatpush1.bf16.msra.mxu0 %v83
    %433 = vmatprep.subr.bf16.mxu0 0
    %434 = vmatpush1.bf16.msra.mxu0 0
    %435 = vmatprep.subr.bf16.mxu0 0
    %436 = vmatpush1.bf16.msra.mxu0 0
    %437 = vmatprep.subr.bf16.mxu0 0
    %438 = vmatpush1.bf16.msra.mxu0 0
    %439 = vmatprep.subr.bf16.mxu0 0
    %440 = vmatpush1.bf16.msra.mxu0 0
    %441 = vmatprep.subr.bf16.mxu0 0
    %442 = vmatpush1.bf16.msra.mxu0 0
    %443 = vmatprep.subr.bf16.mxu0 0
    %444 = vmatpush1.bf16.msra.mxu0 0
    %445 = vmatprep.subr.bf16.mxu0 0
    %446 = vmatpush1.bf16.msra.mxu0 0
    %447 = vmatprep.subr.bf16.mxu0 0
    %448 = vmatpush1.bf16.msra.mxu0 0
    %449 = vmatprep.subr.bf16.mxu0 0
    %450 = vmatpush1.bf16.msra.mxu0 0
    %451 = vmatprep.subr.bf16.mxu0 0
    %452 = vmatpush1.bf16.msra.mxu0 0
    %453 = vmatprep.subr.bf16.mxu0 0
    %454 = vmatpush1.bf16.msra.mxu0 0
    %455 = vmatprep.subr.bf16.mxu0 0
    %456 = vmatpush1.bf16.msra.mxu0 0
    %457 = vmatprep.subr.bf16.mxu0 0
    %458 = vmatpush1.bf16.msra.mxu0 0
    %459 = vmatprep.subr.bf16.mxu0 0
    %460 = vmatpush1.bf16.msra.mxu0 0
    %461 = vmatprep.subr.bf16.mxu0 0
    %462 = vmatpush1.bf16.msra.mxu0 0
    %463 = vmatprep.mubr.bf16.mxu0 0
    %464 = vmatmul.mubr.bf16.gmra.mrb[0].mxu0 %v426
    %v465 = vpop.f32.mrb[0].mxu0
    %v466 = vadd.f32 0.0, %v465
    %v467 = vpop.f32.mrb[0].mxu0
    %v468 = vpop.f32.mrb[0].mxu0
    %v469 = vadd.f32 0.0, %v468
    %v470 = vpop.f32.mrb[0].mxu0
    %471 = vmatprep.mubr.bf16.mxu0 0
    %472 = vmatmul.mubr.bf16.gmra.mrb[0].mxu0 %v429
    %v473 = vpop.f32.mrb[0].mxu0
    %v474 = vadd.f32 0.0, %v473
    %v475 = vpop.f32.mrb[0].mxu0
    %v476 = vpop.f32.mrb[0].mxu0
    %v477 = vadd.f32 0.0, %v476
    %v478 = vpop.f32.mrb[0].mxu0
    %479 = vdwg.mxu0
    %v480 = vpack.c.bf16 %v469, %v466
    %v481 = vpack.c.bf16 %v477, %v474
    %s482 = scalar_lea.vmem [#allocation2], 80
    %483 = vst [vmem:[%s482] sm:$0xff] %v480
    %484 = vst [vmem:[%s482 + $0x8] sm:$0xff] %v481
    %s485 = scalar_lea.vmem %s0, 192
    %v486 = vld [vmem:[%s485] sm:$0xff]
    %v487 = vld [vmem:[%s485 + $0x8] sm:$0xff]
    %v488 = vld [vmem:[%s485 + $0x10] sm:$0xff]
    %v489 = vld [vmem:[%s485 + $0x18] sm:$0xff]
    %v490 = vpack.c.bf16 %v487, %v486
    %v491 = vpack.c.bf16 %v489, %v488
    %v493 = vsel %vm90, %v490, 0
    %v496 = vsel %vm90, %v491, 0
    %498 = vmatprep.subr.bf16.mxu0 0
    %499 = vmatpush1.bf16.msra.mxu0 %v83
    %500 = vmatprep.subr.bf16.mxu0 0
    %501 = vmatpush1.bf16.msra.mxu0 0
    %502 = vmatprep.subr.bf16.mxu0 0
    %503 = vmatpush1.bf16.msra.mxu0 0
    %504 = vmatprep.subr.bf16.mxu0 0
    %505 = vmatpush1.bf16.msra.mxu0 0
    %506 = vmatprep.subr.bf16.mxu0 0
    %507 = vmatpush1.bf16.msra.mxu0 0
    %508 = vmatprep.subr.bf16.mxu0 0
    %509 = vmatpush1.bf16.msra.mxu0 0
    %510 = vmatprep.subr.bf16.mxu0 0
    %511 = vmatpush1.bf16.msra.mxu0 0
    %512 = vmatprep.subr.bf16.mxu0 0
    %513 = vmatpush1.bf16.msra.mxu0 0
    %514 = vmatprep.subr.bf16.mxu0 0
    %515 = vmatpush1.bf16.msra.mxu0 0
    %516 = vmatprep.subr.bf16.mxu0 0
    %517 = vmatpush1.bf16.msra.mxu0 0
    %518 = vmatprep.subr.bf16.mxu0 0
    %519 = vmatpush1.bf16.msra.mxu0 0
    %520 = vmatprep.subr.bf16.mxu0 0
    %521 = vmatpush1.bf16.msra.mxu0 0
    %522 = vmatprep.subr.bf16.mxu0 0
    %523 = vmatpush1.bf16.msra.mxu0 0
    %524 = vmatprep.subr.bf16.mxu0 0
    %525 = vmatpush1.bf16.msra.mxu0 0
    %526 = vmatprep.subr.bf16.mxu0 0
    %527 = vmatpush1.bf16.msra.mxu0 0
    %528 = vmatprep.subr.bf16.mxu0 0
    %529 = vmatpush1.bf16.msra.mxu0 0
    %530 = vmatprep.mubr.bf16.mxu0 0
    %531 = vmatmul.mubr.bf16.gmra.mrb[0].mxu0 %v493
    %v532 = vpop.f32.mrb[0].mxu0
    %v533 = vadd.f32 0.0, %v532
    %v534 = vpop.f32.mrb[0].mxu0
    %v535 = vpop.f32.mrb[0].mxu0
    %v536 = vadd.f32 0.0, %v535
    %v537 = vpop.f32.mrb[0].mxu0
    %538 = vmatprep.mubr.bf16.mxu0 0
    %539 = vmatmul.mubr.bf16.gmra.mrb[0].mxu0 %v496
    %v540 = vpop.f32.mrb[0].mxu0
    %v541 = vadd.f32 0.0, %v540
    %v542 = vpop.f32.mrb[0].mxu0
    %v543 = vpop.f32.mrb[0].mxu0
    %v544 = vadd.f32 0.0, %v543
    %v545 = vpop.f32.mrb[0].mxu0
    %546 = vdwg.mxu0
    %v547 = vpack.c.bf16 %v536, %v533
    %v548 = vpack.c.bf16 %v544, %v541
    %s549 = scalar_lea.vmem [#allocation2], 96
    %550 = vst [vmem:[%s549] sm:$0xff] %v547
    %551 = vst [vmem:[%s549 + $0x8] sm:$0xff] %v548
    %s552 = scalar_lea.vmem %s0, 224
    %v553 = vld [vmem:[%s552] sm:$0xff]
    %v554 = vld [vmem:[%s552 + $0x8] sm:$0xff]
    %v555 = vld [vmem:[%s552 + $0x10] sm:$0xff]
    %v556 = vld [vmem:[%s552 + $0x18] sm:$0xff]
    %v557 = vpack.c.bf16 %v554, %v553
    %v558 = vpack.c.bf16 %v556, %v555
    %v560 = vsel %vm90, %v557, 0
    %v563 = vsel %vm90, %v558, 0
    %565 = vmatprep.subr.bf16.mxu0 0
    %566 = vmatpush1.bf16.msra.mxu0 %v83
    %567 = vmatprep.subr.bf16.mxu0 0
    %568 = vmatpush1.bf16.msra.mxu0 0
    %569 = vmatprep.subr.bf16.mxu0 0
    %570 = vmatpush1.bf16.msra.mxu0 0
    %571 = vmatprep.subr.bf16.mxu0 0
    %572 = vmatpush1.bf16.msra.mxu0 0
    %573 = vmatprep.subr.bf16.mxu0 0
    %574 = vmatpush1.bf16.msra.mxu0 0
    %575 = vmatprep.subr.bf16.mxu0 0
    %576 = vmatpush1.bf16.msra.mxu0 0
    %577 = vmatprep.subr.bf16.mxu0 0
    %578 = vmatpush1.bf16.msra.mxu0 0
    %579 = vmatprep.subr.bf16.mxu0 0
    %580 = vmatpush1.bf16.msra.mxu0 0
    %581 = vmatprep.subr.bf16.mxu0 0
    %582 = vmatpush1.bf16.msra.mxu0 0
    %583 = vmatprep.subr.bf16.mxu0 0
    %584 = vmatpush1.bf16.msra.mxu0 0
    %585 = vmatprep.subr.bf16.mxu0 0
    %586 = vmatpush1.bf16.msra.mxu0 0
    %587 = vmatprep.subr.bf16.mxu0 0
    %588 = vmatpush1.bf16.msra.mxu0 0
    %589 = vmatprep.subr.bf16.mxu0 0
    %590 = vmatpush1.bf16.msra.mxu0 0
    %591 = vmatprep.subr.bf16.mxu0 0
    %592 = vmatpush1.bf16.msra.mxu0 0
    %593 = vmatprep.subr.bf16.mxu0 0
    %594 = vmatpush1.bf16.msra.mxu0 0
    %595 = vmatprep.subr.bf16.mxu0 0
    %596 = vmatpush1.bf16.msra.mxu0 0
    %597 = vmatprep.mubr.bf16.mxu0 0
    %598 = vmatmul.mubr.bf16.gmra.mrb[0].mxu0 %v560
    %v599 = vpop.f32.mrb[0].mxu0
    %v600 = vadd.f32 0.0, %v599
    %v601 = vpop.f32.mrb[0].mxu0
    %v602 = vpop.f32.mrb[0].mxu0
    %v603 = vadd.f32 0.0, %v602
    %v604 = vpop.f32.mrb[0].mxu0
    %605 = vmatprep.mubr.bf16.mxu0 0
    %606 = vmatmul.mubr.bf16.gmra.mrb[0].mxu0 %v563
    %v607 = vpop.f32.mrb[0].mxu0
    %v608 = vadd.f32 0.0, %v607
    %v609 = vpop.f32.mrb[0].mxu0
    %v610 = vpop.f32.mrb[0].mxu0
    %v611 = vadd.f32 0.0, %v610
    %v612 = vpop.f32.mrb[0].mxu0
    %613 = vdwg.mxu0
    %v614 = vpack.c.bf16 %v603, %v600
    %v615 = vpack.c.bf16 %v611, %v608
    %s616 = scalar_lea.vmem [#allocation2], 112
    %617 = vst [vmem:[%s616] sm:$0xff] %v614
    %618 = vst [vmem:[%s616 + $0x8] sm:$0xff] %v615
    %s619 = scalar_lea.vmem %s0, 256
    %v620 = vld [vmem:[%s619] sm:$0xff]
    %v621 = vld [vmem:[%s619 + $0x8] sm:$0xff]
    %v622 = vld [vmem:[%s619 + $0x10] sm:$0xff]
    %v623 = vld [vmem:[%s619 + $0x18] sm:$0xff]
    %v624 = vpack.c.bf16 %v621, %v620
    %v625 = vpack.c.bf16 %v623, %v622
    %v627 = vsel %vm90, %v624, 0
    %v630 = vsel %vm90, %v625, 0
    %632 = vmatprep.subr.bf16.mxu0 0
    %633 = vmatpush1.bf16.msra.mxu0 %v83
    %634 = vmatprep.subr.bf16.mxu0 0
    %635 = vmatpush1.bf16.msra.mxu0 0
    %636 = vmatprep.subr.bf16.mxu0 0
    %637 = vmatpush1.bf16.msra.mxu0 0
    %638 = vmatprep.subr.bf16.mxu0 0
    %639 = vmatpush1.bf16.msra.mxu0 0
    %640 = vmatprep.subr.bf16.mxu0 0
    %641 = vmatpush1.bf16.msra.mxu0 0
    %642 = vmatprep.subr.bf16.mxu0 0
    %643 = vmatpush1.bf16.msra.mxu0 0
    %644 = vmatprep.subr.bf16.mxu0 0
    %645 = vmatpush1.bf16.msra.mxu0 0
    %646 = vmatprep.subr.bf16.mxu0 0
    %647 = vmatpush1.bf16.msra.mxu0 0
    %648 = vmatprep.subr.bf16.mxu0 0
    %649 = vmatpush1.bf16.msra.mxu0 0
    %650 = vmatprep.subr.bf16.mxu0 0
    %651 = vmatpush1.bf16.msra.mxu0 0
    %652 = vmatprep.subr.bf16.mxu0 0
    %653 = vmatpush1.bf16.msra.mxu0 0
    %654 = vmatprep.subr.bf16.mxu0 0
    %655 = vmatpush1.bf16.msra.mxu0 0
    %656 = vmatprep.subr.bf16.mxu0 0
    %657 = vmatpush1.bf16.msra.mxu0 0
    %658 = vmatprep.subr.bf16.mxu0 0
    %659 = vmatpush1.bf16.msra.mxu0 0
    %660 = vmatprep.subr.bf16.mxu0 0
    %661 = vmatpush1.bf16.msra.mxu0 0
    %662 = vmatprep.subr.bf16.mxu0 0
    %663 = vmatpush1.bf16.msra.mxu0 0
    %664 = vmatprep.mubr.bf16.mxu0 0
    %665 = vmatmul.mubr.bf16.gmra.mrb[0].mxu0 %v627
    %v666 = vpop.f32.mrb[0].mxu0
    %v667 = vadd.f32 0.0, %v666
    %v668 = vpop.f32.mrb[0].mxu0
    %v669 = vpop.f32.mrb[0].mxu0
    %v670 = vadd.f32 0.0, %v669
    %v671 = vpop.f32.mrb[0].mxu0
    %672 = vmatprep.mubr.bf16.mxu0 0
    %673 = vmatmul.mubr.bf16.gmra.mrb[0].mxu0 %v630
    %v674 = vpop.f32.mrb[0].mxu0
    %v675 = vadd.f32 0.0, %v674
    %v676 = vpop.f32.mrb[0].mxu0
    %v677 = vpop.f32.mrb[0].mxu0
    %v678 = vadd.f32 0.0, %v677
    %v679 = vpop.f32.mrb[0].mxu0
    %680 = vdwg.mxu0
    %v681 = vpack.c.bf16 %v670, %v667
    %v682 = vpack.c.bf16 %v678, %v675
    %s683 = scalar_lea.vmem [#allocation2], 128
    %684 = vst [vmem:[%s683] sm:$0xff] %v681
    %685 = vst [vmem:[%s683 + $0x8] sm:$0xff] %v682
    %s686 = scalar_lea.vmem %s0, 288
    %v687 = vld [vmem:[%s686] sm:$0xff]
    %v688 = vld [vmem:[%s686 + $0x8] sm:$0xff]
    %v689 = vld [vmem:[%s686 + $0x10] sm:$0xff]
    %v690 = vld [vmem:[%s686 + $0x18] sm:$0xff]
    %v691 = vpack.c.bf16 %v688, %v687
    %v692 = vpack.c.bf16 %v690, %v689
    %v694 = vsel %vm90, %v691, 0
    %v697 = vsel %vm90, %v692, 0
    %699 = vmatprep.subr.bf16.mxu0 0
    %700 = vmatpush1.bf16.msra.mxu0 %v83
    %701 = vmatprep.subr.bf16.mxu0 0
    %702 = vmatpush1.bf16.msra.mxu0 0
    %703 = vmatprep.subr.bf16.mxu0 0
    %704 = vmatpush1.bf16.msra.mxu0 0
    %705 = vmatprep.subr.bf16.mxu0 0
    %706 = vmatpush1.bf16.msra.mxu0 0
    %707 = vmatprep.subr.bf16.mxu0 0
    %708 = vmatpush1.bf16.msra.mxu0 0
    %709 = vmatprep.subr.bf16.mxu0 0
    %710 = vmatpush1.bf16.msra.mxu0 0
    %711 = vmatprep.subr.bf16.mxu0 0
    %712 = vmatpush1.bf16.msra.mxu0 0
    %713 = vmatprep.subr.bf16.mxu0 0
    %714 = vmatpush1.bf16.msra.mxu0 0
    %715 = vmatprep.subr.bf16.mxu0 0
    %716 = vmatpush1.bf16.msra.mxu0 0
    %717 = vmatprep.subr.bf16.mxu0 0
    %718 = vmatpush1.bf16.msra.mxu0 0
    %719 = vmatprep.subr.bf16.mxu0 0
    %720 = vmatpush1.bf16.msra.mxu0 0
    %721 = vmatprep.subr.bf16.mxu0 0
    %722 = vmatpush1.bf16.msra.mxu0 0
    %723 = vmatprep.subr.bf16.mxu0 0
    %724 = vmatpush1.bf16.msra.mxu0 0
    %725 = vmatprep.subr.bf16.mxu0 0
    %726 = vmatpush1.bf16.msra.mxu0 0
    %727 = vmatprep.subr.bf16.mxu0 0
    %728 = vmatpush1.bf16.msra.mxu0 0
    %729 = vmatprep.subr.bf16.mxu0 0
    %730 = vmatpush1.bf16.msra.mxu0 0
    %731 = vmatprep.mubr.bf16.mxu0 0
    %732 = vmatmul.mubr.bf16.gmra.mrb[0].mxu0 %v694
    %v733 = vpop.f32.mrb[0].mxu0
    %v734 = vadd.f32 0.0, %v733
    %v735 = vpop.f32.mrb[0].mxu0
    %v736 = vpop.f32.mrb[0].mxu0
    %v737 = vadd.f32 0.0, %v736
    %v738 = vpop.f32.mrb[0].mxu0
    %739 = vmatprep.mubr.bf16.mxu0 0
    %740 = vmatmul.mubr.bf16.gmra.mrb[0].mxu0 %v697
    %v741 = vpop.f32.mrb[0].mxu0
    %v742 = vadd.f32 0.0, %v741
    %v743 = vpop.f32.mrb[0].mxu0
    %v744 = vpop.f32.mrb[0].mxu0
    %v745 = vadd.f32 0.0, %v744
    %v746 = vpop.f32.mrb[0].mxu0
    %747 = vdwg.mxu0
    %v748 = vpack.c.bf16 %v737, %v734
    %v749 = vpack.c.bf16 %v745, %v742
    %s750 = scalar_lea.vmem [#allocation2], 144
    %751 = vst [vmem:[%s750] sm:$0xff] %v748
    %752 = vst [vmem:[%s750 + $0x8] sm:$0xff] %v749
    %s753 = scalar_lea.vmem %s0, 320
    %v754 = vld [vmem:[%s753] sm:$0xff]
    %v755 = vld [vmem:[%s753 + $0x8] sm:$0xff]
    %v756 = vld [vmem:[%s753 + $0x10] sm:$0xff]
    %v757 = vld [vmem:[%s753 + $0x18] sm:$0xff]
    %v758 = vpack.c.bf16 %v755, %v754
    %v759 = vpack.c.bf16 %v757, %v756
    %v761 = vsel %vm90, %v758, 0
    %v764 = vsel %vm90, %v759, 0
    %766 = vmatprep.subr.bf16.mxu0 0
    %767 = vmatpush1.bf16.msra.mxu0 %v83
    %768 = vmatprep.subr.bf16.mxu0 0
    %769 = vmatpush1.bf16.msra.mxu0 0
    %770 = vmatprep.subr.bf16.mxu0 0
    %771 = vmatpush1.bf16.msra.mxu0 0
    %772 = vmatprep.subr.bf16.mxu0 0
    %773 = vmatpush1.bf16.msra.mxu0 0
    %774 = vmatprep.subr.bf16.mxu0 0
    %775 = vmatpush1.bf16.msra.mxu0 0
    %776 = vmatprep.subr.bf16.mxu0 0
    %777 = vmatpush1.bf16.msra.mxu0 0
    %778 = vmatprep.subr.bf16.mxu0 0
    %779 = vmatpush1.bf16.msra.mxu0 0
    %780 = vmatprep.subr.bf16.mxu0 0
    %781 = vmatpush1.bf16.msra.mxu0 0
    %782 = vmatprep.subr.bf16.mxu0 0
    %783 = vmatpush1.bf16.msra.mxu0 0
    %784 = vmatprep.subr.bf16.mxu0 0
    %785 = vmatpush1.bf16.msra.mxu0 0
    %786 = vmatprep.subr.bf16.mxu0 0
    %787 = vmatpush1.bf16.msra.mxu0 0
    %788 = vmatprep.subr.bf16.mxu0 0
    %789 = vmatpush1.bf16.msra.mxu0 0
    %790 = vmatprep.subr.bf16.mxu0 0
    %791 = vmatpush1.bf16.msra.mxu0 0
    %792 = vmatprep.subr.bf16.mxu0 0
    %793 = vmatpush1.bf16.msra.mxu0 0
    %794 = vmatprep.subr.bf16.mxu0 0
    %795 = vmatpush1.bf16.msra.mxu0 0
    %796 = vmatprep.subr.bf16.mxu0 0
    %797 = vmatpush1.bf16.msra.mxu0 0
    %798 = vmatprep.mubr.bf16.mxu0 0
    %799 = vmatmul.mubr.bf16.gmra.mrb[0].mxu0 %v761
    %v800 = vpop.f32.mrb[0].mxu0
    %v801 = vadd.f32 0.0, %v800
    %v802 = vpop.f32.mrb[0].mxu0
    %v803 = vpop.f32.mrb[0].mxu0
    %v804 = vadd.f32 0.0, %v803
    %v805 = vpop.f32.mrb[0].mxu0
    %806 = vmatprep.mubr.bf16.mxu0 0
    %807 = vmatmul.mubr.bf16.gmra.mrb[0].mxu0 %v764
    %v808 = vpop.f32.mrb[0].mxu0
    %v809 = vadd.f32 0.0, %v808
    %v810 = vpop.f32.mrb[0].mxu0
    %v811 = vpop.f32.mrb[0].mxu0
    %v812 = vadd.f32 0.0, %v811
    %v813 = vpop.f32.mrb[0].mxu0
    %814 = vdwg.mxu0
    %v815 = vpack.c.bf16 %v804, %v801
    %v816 = vpack.c.bf16 %v812, %v809
    %s817 = scalar_lea.vmem [#allocation2], 160
    %818 = vst [vmem:[%s817] sm:$0xff] %v815
    %819 = vst [vmem:[%s817 + $0x8] sm:$0xff] %v816
    %s820 = scalar_lea.vmem %s0, 352
    %v821 = vld [vmem:[%s820] sm:$0xff]
    %v822 = vld [vmem:[%s820 + $0x8] sm:$0xff]
    %v823 = vld [vmem:[%s820 + $0x10] sm:$0xff]
    %v824 = vld [vmem:[%s820 + $0x18] sm:$0xff]
    %v825 = vpack.c.bf16 %v822, %v821
    %v826 = vpack.c.bf16 %v824, %v823
    %v828 = vsel %vm90, %v825, 0
    %v831 = vsel %vm90, %v826, 0
    %833 = vmatprep.subr.bf16.mxu0 0
    %834 = vmatpush1.bf16.msra.mxu0 %v83
    %835 = vmatprep.subr.bf16.mxu0 0
    %836 = vmatpush1.bf16.msra.mxu0 0
    %837 = vmatprep.subr.bf16.mxu0 0
    %838 = vmatpush1.bf16.msra.mxu0 0
    %839 = vmatprep.subr.bf16.mxu0 0
    %840 = vmatpush1.bf16.msra.mxu0 0
    %841 = vmatprep.subr.bf16.mxu0 0
    %842 = vmatpush1.bf16.msra.mxu0 0
    %843 = vmatprep.subr.bf16.mxu0 0
    %844 = vmatpush1.bf16.msra.mxu0 0
    %845 = vmatprep.subr.bf16.mxu0 0
    %846 = vmatpush1.bf16.msra.mxu0 0
    %847 = vmatprep.subr.bf16.mxu0 0
    %848 = vmatpush1.bf16.msra.mxu0 0
    %849 = vmatprep.subr.bf16.mxu0 0
    %850 = vmatpush1.bf16.msra.mxu0 0
    %851 = vmatprep.subr.bf16.mxu0 0
    %852 = vmatpush1.bf16.msra.mxu0 0
    %853 = vmatprep.subr.bf16.mxu0 0
    %854 = vmatpush1.bf16.msra.mxu0 0
    %855 = vmatprep.subr.bf16.mxu0 0
    %856 = vmatpush1.bf16.msra.mxu0 0
    %857 = vmatprep.subr.bf16.mxu0 0
    %858 = vmatpush1.bf16.msra.mxu0 0
    %859 = vmatprep.subr.bf16.mxu0 0
    %860 = vmatpush1.bf16.msra.mxu0 0
    %861 = vmatprep.subr.bf16.mxu0 0
    %862 = vmatpush1.bf16.msra.mxu0 0
    %863 = vmatprep.subr.bf16.mxu0 0
    %864 = vmatpush1.bf16.msra.mxu0 0
    %865 = vmatprep.mubr.bf16.mxu0 0
    %866 = vmatmul.mubr.bf16.gmra.mrb[0].mxu0 %v828
    %v867 = vpop.f32.mrb[0].mxu0
    %v868 = vadd.f32 0.0, %v867
    %v869 = vpop.f32.mrb[0].mxu0
    %v870 = vpop.f32.mrb[0].mxu0
    %v871 = vadd.f32 0.0, %v870
    %v872 = vpop.f32.mrb[0].mxu0
    %873 = vmatprep.mubr.bf16.mxu0 0
    %874 = vmatmul.mubr.bf16.gmra.mrb[0].mxu0 %v831
    %v875 = vpop.f32.mrb[0].mxu0
    %v876 = vadd.f32 0.0, %v875
    %v877 = vpop.f32.mrb[0].mxu0
    %v878 = vpop.f32.mrb[0].mxu0
    %v879 = vadd.f32 0.0, %v878
    %v880 = vpop.f32.mrb[0].mxu0
    %881 = vdwg.mxu0
    %v882 = vpack.c.bf16 %v871, %v868
    %v883 = vpack.c.bf16 %v879, %v876
    %s884 = scalar_lea.vmem [#allocation2], 176
    %885 = vst [vmem:[%s884] sm:$0xff] %v882
    %886 = vst [vmem:[%s884 + $0x8] sm:$0xff] %v883
    %s887 = scalar_lea.vmem %s0, 384
    %v888 = vld [vmem:[%s887] sm:$0xff]
    %v889 = vld [vmem:[%s887 + $0x8] sm:$0xff]
    %v890 = vld [vmem:[%s887 + $0x10] sm:$0xff]
    %v891 = vld [vmem:[%s887 + $0x18] sm:$0xff]
    %v892 = vpack.c.bf16 %v889, %v888
    %v893 = vpack.c.bf16 %v891, %v890
    %v895 = vsel %vm90, %v892, 0
    %v898 = vsel %vm90, %v893, 0
    %900 = vmatprep.subr.bf16.mxu0 0
    %901 = vmatpush1.bf16.msra.mxu0 %v83
    %902 = vmatprep.subr.bf16.mxu0 0
    %903 = vmatpush1.bf16.msra.mxu0 0
    %904 = vmatprep.subr.bf16.mxu0 0
    %905 = vmatpush1.bf16.msra.mxu0 0
    %906 = vmatprep.subr.bf16.mxu0 0
    %907 = vmatpush1.bf16.msra.mxu0 0
    %908 = vmatprep.subr.bf16.mxu0 0
    %909 = vmatpush1.bf16.msra.mxu0 0
    %910 = vmatprep.subr.bf16.mxu0 0
    %911 = vmatpush1.bf16.msra.mxu0 0
    %912 = vmatprep.subr.bf16.mxu0 0
    %913 = vmatpush1.bf16.msra.mxu0 0
    %914 = vmatprep.subr.bf16.mxu0 0
    %915 = vmatpush1.bf16.msra.mxu0 0
    %916 = vmatprep.subr.bf16.mxu0 0
    %917 = vmatpush1.bf16.msra.mxu0 0
    %918 = vmatprep.subr.bf16.mxu0 0
    %919 = vmatpush1.bf16.msra.mxu0 0
    %920 = vmatprep.subr.bf16.mxu0 0
    %921 = vmatpush1.bf16.msra.mxu0 0
    %922 = vmatprep.subr.bf16.mxu0 0
    %923 = vmatpush1.bf16.msra.mxu0 0
    %924 = vmatprep.subr.bf16.mxu0 0
    %925 = vmatpush1.bf16.msra.mxu0 0
    %926 = vmatprep.subr.bf16.mxu0 0
    %927 = vmatpush1.bf16.msra.mxu0 0
    %928 = vmatprep.subr.bf16.mxu0 0
    %929 = vmatpush1.bf16.msra.mxu0 0
    %930 = vmatprep.subr.bf16.mxu0 0
    %931 = vmatpush1.bf16.msra.mxu0 0
    %932 = vmatprep.mubr.bf16.mxu0 0
    %933 = vmatmul.mubr.bf16.gmra.mrb[0].mxu0 %v895
    %v934 = vpop.f32.mrb[0].mxu0
    %v935 = vadd.f32 0.0, %v934
    %v936 = vpop.f32.mrb[0].mxu0
    %v937 = vpop.f32.mrb[0].mxu0
    %v938 = vadd.f32 0.0, %v937
    %v939 = vpop.f32.mrb[0].mxu0
    %940 = vmatprep.mubr.bf16.mxu0 0
    %941 = vmatmul.mubr.bf16.gmra.mrb[0].mxu0 %v898
    %v942 = vpop.f32.mrb[0].mxu0
    %v943 = vadd.f32 0.0, %v942
    %v944 = vpop.f32.mrb[0].mxu0
    %v945 = vpop.f32.mrb[0].mxu0
    %v946 = vadd.f32 0.0, %v945
    %v947 = vpop.f32.mrb[0].mxu0
    %948 = vdwg.mxu0
    %v949 = vpack.c.bf16 %v938, %v935
    %v950 = vpack.c.bf16 %v946, %v943
    %s951 = scalar_lea.vmem [#allocation2], 192
    %952 = vst [vmem:[%s951] sm:$0xff] %v949
    %953 = vst [vmem:[%s951 + $0x8] sm:$0xff] %v950
    %s954 = scalar_lea.vmem %s0, 416
    %v955 = vld [vmem:[%s954] sm:$0xff]
    %v956 = vld [vmem:[%s954 + $0x8] sm:$0xff]
    %v957 = vld [vmem:[%s954 + $0x10] sm:$0xff]
    %v958 = vld [vmem:[%s954 + $0x18] sm:$0xff]
    %v959 = vpack.c.bf16 %v956, %v955
    %v960 = vpack.c.bf16 %v958, %v957
    %v962 = vsel %vm90, %v959, 0
    %v965 = vsel %vm90, %v960, 0
    %967 = vmatprep.subr.bf16.mxu0 0
    %968 = vmatpush1.bf16.msra.mxu0 %v83
    %969 = vmatprep.subr.bf16.mxu0 0
    %970 = vmatpush1.bf16.msra.mxu0 0
    %971 = vmatprep.subr.bf16.mxu0 0
    %972 = vmatpush1.bf16.msra.mxu0 0
    %973 = vmatprep.subr.bf16.mxu0 0
    %974 = vmatpush1.bf16.msra.mxu0 0
    %975 = vmatprep.subr.bf16.mxu0 0
    %976 = vmatpush1.bf16.msra.mxu0 0
    %977 = vmatprep.subr.bf16.mxu0 0
    %978 = vmatpush1.bf16.msra.mxu0 0
    %979 = vmatprep.subr.bf16.mxu0 0
    %980 = vmatpush1.bf16.msra.mxu0 0
    %981 = vmatprep.subr.bf16.mxu0 0
    %982 = vmatpush1.bf16.msra.mxu0 0
    %983 = vmatprep.subr.bf16.mxu0 0
    %984 = vmatpush1.bf16.msra.mxu0 0
    %985 = vmatprep.subr.bf16.mxu0 0
    %986 = vmatpush1.bf16.msra.mxu0 0
    %987 = vmatprep.subr.bf16.mxu0 0
    %988 = vmatpush1.bf16.msra.mxu0 0
    %989 = vmatprep.subr.bf16.mxu0 0
    %990 = vmatpush1.bf16.msra.mxu0 0
    %991 = vmatprep.subr.bf16.mxu0 0
    %992 = vmatpush1.bf16.msra.mxu0 0
    %993 = vmatprep.subr.bf16.mxu0 0
    %994 = vmatpush1.bf16.msra.mxu0 0
    %995 = vmatprep.subr.bf16.mxu0 0
    %996 = vmatpush1.bf16.msra.mxu0 0
    %997 = vmatprep.subr.bf16.mxu0 0
    %998 = vmatpush1.bf16.msra.mxu0 0
    %999 = vmatprep.mubr.bf16.mxu0 0
    %1000 = vmatmul.mubr.bf16.gmra.mrb[0].mxu0 %v962
    %v1001 = vpop.f32.mrb[0].mxu0
    %v1002 = vadd.f32 0.0, %v1001
    %v1003 = vpop.f32.mrb[0].mxu0
    %v1004 = vpop.f32.mrb[0].mxu0
    %v1005 = vadd.f32 0.0, %v1004
    %v1006 = vpop.f32.mrb[0].mxu0
    %1007 = vmatprep.mubr.bf16.mxu0 0
    %1008 = vmatmul.mubr.bf16.gmra.mrb[0].mxu0 %v965
    %v1009 = vpop.f32.mrb[0].mxu0
    %v1010 = vadd.f32 0.0, %v1009
    %v1011 = vpop.f32.mrb[0].mxu0
    %v1012 = vpop.f32.mrb[0].mxu0
    %v1013 = vadd.f32 0.0, %v1012
    %v1014 = vpop.f32.mrb[0].mxu0
    %1015 = vdwg.mxu0
    %v1016 = vpack.c.bf16 %v1005, %v1002
    %v1017 = vpack.c.bf16 %v1013, %v1010
    %s1018 = scalar_lea.vmem [#allocation2], 208
    %1019 = vst [vmem:[%s1018] sm:$0xff] %v1016
    %1020 = vst [vmem:[%s1018 + $0x8] sm:$0xff] %v1017
    %s1021 = scalar_lea.vmem %s0, 448
    %v1022 = vld [vmem:[%s1021] sm:$0xff]
    %v1023 = vld [vmem:[%s1021 + $0x8] sm:$0xff]
    %v1024 = vld [vmem:[%s1021 + $0x10] sm:$0xff]
    %v1025 = vld [vmem:[%s1021 + $0x18] sm:$0xff]
    %v1026 = vpack.c.bf16 %v1023, %v1022
    %v1027 = vpack.c.bf16 %v1025, %v1024
    %v1029 = vsel %vm90, %v1026, 0
    %v1032 = vsel %vm90, %v1027, 0
    %1034 = vmatprep.subr.bf16.mxu0 0
    %1035 = vmatpush1.bf16.msra.mxu0 %v83
    %1036 = vmatprep.subr.bf16.mxu0 0
    %1037 = vmatpush1.bf16.msra.mxu0 0
    %1038 = vmatprep.subr.bf16.mxu0 0
    %1039 = vmatpush1.bf16.msra.mxu0 0
    %1040 = vmatprep.subr.bf16.mxu0 0
    %1041 = vmatpush1.bf16.msra.mxu0 0
    %1042 = vmatprep.subr.bf16.mxu0 0
    %1043 = vmatpush1.bf16.msra.mxu0 0
    %1044 = vmatprep.subr.bf16.mxu0 0
    %1045 = vmatpush1.bf16.msra.mxu0 0
    %1046 = vmatprep.subr.bf16.mxu0 0
    %1047 = vmatpush1.bf16.msra.mxu0 0
    %1048 = vmatprep.subr.bf16.mxu0 0
    %1049 = vmatpush1.bf16.msra.mxu0 0
    %1050 = vmatprep.subr.bf16.mxu0 0
    %1051 = vmatpush1.bf16.msra.mxu0 0
    %1052 = vmatprep.subr.bf16.mxu0 0
    %1053 = vmatpush1.bf16.msra.mxu0 0
    %1054 = vmatprep.subr.bf16.mxu0 0
    %1055 = vmatpush1.bf16.msra.mxu0 0
    %1056 = vmatprep.subr.bf16.mxu0 0
    %1057 = vmatpush1.bf16.msra.mxu0 0
    %1058 = vmatprep.subr.bf16.mxu0 0
    %1059 = vmatpush1.bf16.msra.mxu0 0
    %1060 = vmatprep.subr.bf16.mxu0 0
    %1061 = vmatpush1.bf16.msra.mxu0 0
    %1062 = vmatprep.subr.bf16.mxu0 0
    %1063 = vmatpush1.bf16.msra.mxu0 0
    %1064 = vmatprep.subr.bf16.mxu0 0
    %1065 = vmatpush1.bf16.msra.mxu0 0
    %1066 = vmatprep.mubr.bf16.mxu0 0
    %1067 = vmatmul.mubr.bf16.gmra.mrb[0].mxu0 %v1029
    %v1068 = vpop.f32.mrb[0].mxu0
    %v1069 = vadd.f32 0.0, %v1068
    %v1070 = vpop.f32.mrb[0].mxu0
    %v1071 = vpop.f32.mrb[0].mxu0
    %v1072 = vadd.f32 0.0, %v1071
    %v1073 = vpop.f32.mrb[0].mxu0
    %1074 = vmatprep.mubr.bf16.mxu0 0
    %1075 = vmatmul.mubr.bf16.gmra.mrb[0].mxu0 %v1032
    %v1076 = vpop.f32.mrb[0].mxu0
    %v1077 = vadd.f32 0.0, %v1076
    %v1078 = vpop.f32.mrb[0].mxu0
    %v1079 = vpop.f32.mrb[0].mxu0
    %v1080 = vadd.f32 0.0, %v1079
    %v1081 = vpop.f32.mrb[0].mxu0
    %1082 = vdwg.mxu0
    %v1083 = vpack.c.bf16 %v1072, %v1069
    %v1084 = vpack.c.bf16 %v1080, %v1077
    %s1085 = scalar_lea.vmem [#allocation2], 224
    %1086 = vst [vmem:[%s1085] sm:$0xff] %v1083
    %1087 = vst [vmem:[%s1085 + $0x8] sm:$0xff] %v1084
    %s1088 = scalar_lea.vmem %s0, 480
    %v1089 = vld [vmem:[%s1088] sm:$0xff]
    %v1090 = vld [vmem:[%s1088 + $0x8] sm:$0xff]
    %v1091 = vld [vmem:[%s1088 + $0x10] sm:$0xff]
    %v1092 = vld [vmem:[%s1088 + $0x18] sm:$0xff]
    %v1093 = vpack.c.bf16 %v1090, %v1089
    %v1094 = vpack.c.bf16 %v1092, %v1091
    %v1096 = vsel %vm90, %v1093, 0
    %v1099 = vsel %vm90, %v1094, 0
    %1101 = vmatprep.subr.bf16.mxu0 0
    %1102 = vmatpush1.bf16.msra.mxu0 %v83
    %1103 = vmatprep.subr.bf16.mxu0 0
    %1104 = vmatpush1.bf16.msra.mxu0 0
    %1105 = vmatprep.subr.bf16.mxu0 0
    %1106 = vmatpush1.bf16.msra.mxu0 0
    %1107 = vmatprep.subr.bf16.mxu0 0
    %1108 = vmatpush1.bf16.msra.mxu0 0
    %1109 = vmatprep.subr.bf16.mxu0 0
    %1110 = vmatpush1.bf16.msra.mxu0 0
    %1111 = vmatprep.subr.bf16.mxu0 0
    %1112 = vmatpush1.bf16.msra.mxu0 0
    %1113 = vmatprep.subr.bf16.mxu0 0
    %1114 = vmatpush1.bf16.msra.mxu0 0
    %1115 = vmatprep.subr.bf16.mxu0 0
    %1116 = vmatpush1.bf16.msra.mxu0 0
    %1117 = vmatprep.subr.bf16.mxu0 0
    %1118 = vmatpush1.bf16.msra.mxu0 0
    %1119 = vmatprep.subr.bf16.mxu0 0
    %1120 = vmatpush1.bf16.msra.mxu0 0
    %1121 = vmatprep.subr.bf16.mxu0 0
    %1122 = vmatpush1.bf16.msra.mxu0 0
    %1123 = vmatprep.subr.bf16.mxu0 0
    %1124 = vmatpush1.bf16.msra.mxu0 0
    %1125 = vmatprep.subr.bf16.mxu0 0
    %1126 = vmatpush1.bf16.msra.mxu0 0
    %1127 = vmatprep.subr.bf16.mxu0 0
    %1128 = vmatpush1.bf16.msra.mxu0 0
    %1129 = vmatprep.subr.bf16.mxu0 0
    %1130 = vmatpush1.bf16.msra.mxu0 0
    %1131 = vmatprep.subr.bf16.mxu0 0
    %1132 = vmatpush1.bf16.msra.mxu0 0
    %1133 = vmatprep.mubr.bf16.mxu0 0
    %1134 = vmatmul.mubr.bf16.gmra.mrb[0].mxu0 %v1096
    %v1135 = vpop.f32.mrb[0].mxu0
    %v1136 = vadd.f32 0.0, %v1135
    %v1137 = vpop.f32.mrb[0].mxu0
    %v1138 = vpop.f32.mrb[0].mxu0
    %v1139 = vadd.f32 0.0, %v1138
    %v1140 = vpop.f32.mrb[0].mxu0
    %1141 = vmatprep.mubr.bf16.mxu0 0
    %1142 = vmatmul.mubr.bf16.gmra.mrb[0].mxu0 %v1099
    %v1143 = vpop.f32.mrb[0].mxu0
    %v1144 = vadd.f32 0.0, %v1143
    %v1145 = vpop.f32.mrb[0].mxu0
    %v1146 = vpop.f32.mrb[0].mxu0
    %v1147 = vadd.f32 0.0, %v1146
    %v1148 = vpop.f32.mrb[0].mxu0
    %1149 = vdwg.mxu0
    %v1150 = vpack.c.bf16 %v1139, %v1136
    %v1151 = vpack.c.bf16 %v1147, %v1144
    %s1152 = scalar_lea.vmem [#allocation2], 240
    %1153 = vst [vmem:[%s1152] sm:$0xff] %v1150
    %1154 = vst [vmem:[%s1152 + $0x8] sm:$0xff] %v1151
    %v1155 = vadd.s32 %v69, 16
    %v1156 = vadd.s32 %v69, 24
    %v1157 = vmul.u32 %v1155, 2
    %v1158 = vmul.u32 %v1156, 2
    %v1159 = vadd.s32 %v1157, 1
    %v1160 = vadd.s32 %v1158, 1
    %vm1161 = vcmp.eq.s32.totalorder %v72, %v1159
    %vm1162 = vcmp.eq.s32.totalorder %v72, %v1160
    %v1163 = vsel %vm1161, 1, 0
    %v1164 = vsel %vm1162, 1, 0
    %v1165 = vcvt.s32.f32 %v1163
    %v1166 = vcvt.s32.f32 %v1164
    %v1167 = vpack.c.bf16 %v1166, %v1165
    %v1168 = vld [vmem:[#allocation5] sm:$0xff]
    %v1169 = vld [vmem:[#allocation5 + $0x8] sm:$0xff]
    %v1170 = vld [vmem:[#allocation5 + $0x10] sm:$0xff]
    %v1171 = vld [vmem:[#allocation5 + $0x18] sm:$0xff]
    %v1172 = vld [vmem:[#allocation5 + $0x20] sm:$0xff]
    %v1173 = vld [vmem:[#allocation5 + $0x28] sm:$0xff]
    %v1174 = vld [vmem:[#allocation5 + $0x30] sm:$0xff]
    %v1175 = vld [vmem:[#allocation5 + $0x38] sm:$0xff]
    %v1176 = vld [vmem:[%s2] sm:$0xff]
    %v1177 = vld [vmem:[%s2 + $0x8] sm:$0xff]
    %v1178 = vld [vmem:[%s2 + $0x10] sm:$0xff]
    %v1179 = vld [vmem:[%s2 + $0x18] sm:$0xff]
    %v1180 = vld [vmem:[%s2 + $0x20] sm:$0xff]
    %v1181 = vld [vmem:[%s2 + $0x28] sm:$0xff]
    %v1182 = vld [vmem:[%s2 + $0x30] sm:$0xff]
    %v1183 = vld [vmem:[%s2 + $0x38] sm:$0xff]
    loop: start=0, step=1, limit=15
    $region42: #{fused_forward.1} parent=1 // loop_pre_header
      _
    $region43: #{fused_forward.1} parent=1 // loop_header
      %s1185 = sphi 0, %s1189
      %p1186 = scmp.ge.s32.totalorder %s1185, 15
    $region44: #{fused_forward.1} parent=1 // loop_header_branch
      %1188 = sbr.rel (%p1186) target = $region48
    $region45: #{fused_forward.1} parent=1 // loop_body
      %s1190 = smul.u32 %s1185, 2
      %s1191 = smul.addr %s1190, 8
      %s1192 = scalar_lea.vmem [#allocation2], %s1191
      %v1193 = vld [vmem:[%s1192] sm:$0xff]
      %v1194 = vld [vmem:[%s1192 + $0x8] sm:$0xff]
      %s1195 = sadd.s32 %s1185, 1
      %s1196 = smul.u32 %s1195, 2
      %s1197 = smul.addr %s1196, 8
      %s1198 = scalar_lea.vmem [#allocation2], %s1197
      %v1199 = vld [vmem:[%s1198] sm:$0xff]
      %v1200 = vld [vmem:[%s1198 + $0x8] sm:$0xff]
      %1203 = vrot.lane.b32.xlu0 %v1193, 127
      %v1204 = vpop.permute.xlu0 %1203
      %1205 = vrot.lane.b32.xlu0 %v1194, 127
      %v1206 = vpop.permute.xlu0 %1205
      %1209 = vrot.lane.b32.xlu0 %v1193, 126
      %v1210 = vpop.permute.xlu0 %1209
      %1211 = vrot.lane.b32.xlu0 %v1194, 126
      %v1212 = vpop.permute.xlu0 %1211
      %1217 = vrot.lane.b32.xlu0 %v1199, 127
      %v1218 = vpop.permute.xlu0 %1217
      %1219 = vrot.lane.b32.xlu0 %v1200, 127
      %v1220 = vpop.permute.xlu0 %1219
      %1223 = vrot.lane.b32.xlu0 %v1199, 126
      %v1224 = vpop.permute.xlu0 %1223
      %1225 = vrot.lane.b32.xlu0 %v1200, 126
      %v1226 = vpop.permute.xlu0 %1225
      %1230 = vset.pattern.permute.xlu0 0
      %1231 = vperm.xlu0 %1230, %v1176
      %v1232 = vpop.permute.xlu0 %1231
      %1235 = vset.pattern.permute.xlu0 0
      %1236 = vperm.xlu0 %1235, %v1177
      %v1237 = vpop.permute.xlu0 %1236
      %1240 = vset.pattern.permute.xlu0 0
      %1241 = vperm.xlu0 %1240, %v1178
      %v1242 = vpop.permute.xlu0 %1241
      %1245 = vset.pattern.permute.xlu0 0
      %1246 = vperm.xlu0 %1245, %v1179
      %v1247 = vpop.permute.xlu0 %1246
      %1250 = vset.pattern.permute.xlu0 0
      %1251 = vperm.xlu0 %1250, %v1180
      %v1252 = vpop.permute.xlu0 %1251
      %1255 = vset.pattern.permute.xlu0 0
      %1256 = vperm.xlu0 %1255, %v1181
      %v1257 = vpop.permute.xlu0 %1256
      %1260 = vset.pattern.permute.xlu0 0
      %1261 = vperm.xlu0 %1260, %v1182
      %v1262 = vpop.permute.xlu0 %1261
      %1265 = vset.pattern.permute.xlu0 0
      %1266 = vperm.xlu0 %1265, %v1183
      %v1267 = vpop.permute.xlu0 %1266
      %v1277 = vunpack.c.l.b16 %v1168
      %v1278 = vunpack.c.h.b16 %v1168
      %v1279 = vunpack.c.l.b16 %v1169
      %v1280 = vunpack.c.h.b16 %v1169
      %v1281 = vunpack.c.l.b16 %v1170
      %v1282 = vunpack.c.h.b16 %v1170
      %v1283 = vunpack.c.l.b16 %v1171
      %v1284 = vunpack.c.h.b16 %v1171
      %v1285 = vunpack.c.l.b16 %v1172
      %v1286 = vunpack.c.h.b16 %v1172
      %v1287 = vunpack.c.l.b16 %v1173
      %v1288 = vunpack.c.h.b16 %v1173
      %v1289 = vunpack.c.l.b16 %v1174
      %v1290 = vunpack.c.h.b16 %v1174
      %v1291 = vunpack.c.l.b16 %v1175
      %v1292 = vunpack.c.h.b16 %v1175
      %v1293 = vpack.c.b16 %v1279, %v1277
      %v1294 = vpack.c.b16 %v1280, %v1278
      %v1295 = vpack.c.b16 %v1283, %v1281
      %v1296 = vpack.c.b16 %v1284, %v1282
      %v1297 = vpack.c.b16 %v1287, %v1285
      %v1298 = vpack.c.b16 %v1288, %v1286
      %v1299 = vpack.c.b16 %v1291, %v1289
      %v1300 = vpack.c.b16 %v1292, %v1290
      %vm1305 = vcmask 523264
      %v1307 = vsel %vm1305, %v1294, 0
      %v1310 = vsel %vm1305, %v1296, 0
      %v1313 = vsel %vm1305, %v1298, 0
      %v1316 = vsel %vm1305, %v1300, 0
      %1318 = vmatprep.subr.bf16.mxu0 0
      %1319 = vmatpush1.bf16.msra.mxu0 %v1193
      %1320 = vmatprep.subr.bf16.mxu0 0
      %1321 = vmatpush1.bf16.msra.mxu0 %v1194
      %1322 = vmatprep.subr.bf16.mxu0 0
      %1323 = vmatpush1.bf16.msra.mxu0 %v1204
      %1324 = vmatprep.subr.bf16.mxu0 0
      %1325 = vmatpush1.bf16.msra.mxu0 %v1206
      %1326 = vmatprep.subr.bf16.mxu0 0
      %1327 = vmatpush1.bf16.msra.mxu0 %v1210
      %1328 = vmatprep.subr.bf16.mxu0 0
      %1329 = vmatpush1.bf16.msra.mxu0 %v1212
      %1330 = vmatprep.subr.bf16.mxu0 0
      %1331 = vmatpush1.bf16.msra.mxu0 %v1199
      %1332 = vmatprep.subr.bf16.mxu0 0
      %1333 = vmatpush1.bf16.msra.mxu0 %v1200
      %1334 = vmatprep.subr.bf16.mxu0 0
      %1335 = vmatpush1.bf16.msra.mxu0 %v1218
      %1336 = vmatprep.subr.bf16.mxu0 0
      %1337 = vmatpush1.bf16.msra.mxu0 %v1220
      %1338 = vmatprep.subr.bf16.mxu0 0
      %1339 = vmatpush1.bf16.msra.mxu0 %v1224
      %1340 = vmatprep.subr.bf16.mxu0 0
      %1341 = vmatpush1.bf16.msra.mxu0 %v1226
      %1342 = vmatprep.subr.bf16.mxu0 0
      %1343 = vmatpush1.bf16.msra.mxu0 0
      %1344 = vmatprep.subr.bf16.mxu0 0
      %1345 = vmatpush1.bf16.msra.mxu0 0
      %1346 = vmatprep.subr.bf16.mxu0 0
      %1347 = vmatpush1.bf16.msra.mxu0 0
      %1348 = vmatprep.subr.bf16.mxu0 0
      %1349 = vmatpush1.bf16.msra.mxu0 0
      %1350 = vmatprep.mubr.bf16.mxu0 %v1307
      %1351 = vmatmul.mubr.bf16.gmra.mrb[0].mxu0 %v1293
      %v1352 = vpop.f32.mrb[0].mxu0
      %v1353 = vadd.f32 %v1232, %v1352
      %v1354 = vpop.f32.mrb[0].mxu0
      %v1355 = vpop.f32.mrb[0].mxu0
      %v1356 = vadd.f32 %v1237, %v1355
      %v1357 = vpop.f32.mrb[0].mxu0
      %1358 = vmatprep.mubr.bf16.mxu0 %v1310
      %1359 = vmatmul.mubr.bf16.gmra.mrb[0].mxu0 %v1295
      %v1360 = vpop.f32.mrb[0].mxu0
      %v1361 = vadd.f32 %v1242, %v1360
      %v1362 = vpop.f32.mrb[0].mxu0
      %v1363 = vpop.f32.mrb[0].mxu0
      %v1364 = vadd.f32 %v1247, %v1363
      %v1365 = vpop.f32.mrb[0].mxu0
      %1366 = vmatprep.mubr.bf16.mxu0 %v1313
      %1367 = vmatmul.mubr.bf16.gmra.mrb[0].mxu0 %v1297
      %v1368 = vpop.f32.mrb[0].mxu0
      %v1369 = vadd.f32 %v1252, %v1368
      %v1370 = vpop.f32.mrb[0].mxu0
      %v1371 = vpop.f32.mrb[0].mxu0
      %v1372 = vadd.f32 %v1257, %v1371
      %v1373 = vpop.f32.mrb[0].mxu0
      %1374 = vmatprep.mubr.bf16.mxu0 %v1316
      %1375 = vmatmul.mubr.bf16.gmra.mrb[0].mxu0 %v1299
      %v1376 = vpop.f32.mrb[0].mxu0
      %v1377 = vadd.f32 %v1262, %v1376
      %v1378 = vpop.f32.mrb[0].mxu0
      %v1379 = vpop.f32.mrb[0].mxu0
      %v1380 = vadd.f32 %v1267, %v1379
      %v1381 = vpop.f32.mrb[0].mxu0
      %1382 = vdwg.mxu0
      %v1383 = vpack.c.bf16 %v1356, %v1353
      %v1384 = vpack.c.bf16 %v1364, %v1361
      %v1385 = vpack.c.bf16 %v1372, %v1369
      %v1386 = vpack.c.bf16 %v1380, %v1377
      %vm1387 = vcmask 252928
      %v1389 = vsel %vm1387, %v1383, 0
      %v1392 = vsel %vm1387, %v1384, 0
      %v1395 = vsel %vm1387, %v1385, 0
      %v1398 = vsel %vm1387, %v1386, 0
      %vm1400 = vcmask 1046528
      %vm1401 = vcmask 1047552
      %v1402 = vsel %vm1400, 4294967295, 65535
      %v1403 = vsel %vm1401, %v1402, 0
      %v1405 = vand.u32 %v1167, %v1403
      %1407 = vmatprep.subr.bf16.mxu0 0
      %1408 = vmatpush1.bf16.msra.mxu0 %v83
      %1409 = vmatprep.subr.bf16.mxu0 0
      %1410 = vmatpush1.bf16.msra.mxu0 %v1405
      %1411 = vmatprep.subr.bf16.mxu0 0
      %1412 = vmatpush1.bf16.msra.mxu0 0
      %1413 = vmatprep.subr.bf16.mxu0 0
      %1414 = vmatpush1.bf16.msra.mxu0 0
      %1415 = vmatprep.subr.bf16.mxu0 0
      %1416 = vmatpush1.bf16.msra.mxu0 0
      %1417 = vmatprep.subr.bf16.mxu0 0
      %1418 = vmatpush1.bf16.msra.mxu0 0
      %1419 = vmatprep.subr.bf16.mxu0 0
      %1420 = vmatpush1.bf16.msra.mxu0 0
      %1421 = vmatprep.subr.bf16.mxu0 0
      %1422 = vmatpush1.bf16.msra.mxu0 0
      %1423 = vmatprep.subr.bf16.mxu0 0
      %1424 = vmatpush1.bf16.msra.mxu0 0
      %1425 = vmatprep.subr.bf16.mxu0 0
      %1426 = vmatpush1.bf16.msra.mxu0 0
      %1427 = vmatprep.subr.bf16.mxu0 0
      %1428 = vmatpush1.bf16.msra.mxu0 0
      %1429 = vmatprep.subr.bf16.mxu0 0
      %1430 = vmatpush1.bf16.msra.mxu0 0
      %1431 = vmatprep.subr.bf16.mxu0 0
      %1432 = vmatpush1.bf16.msra.mxu0 0
      %1433 = vmatprep.subr.bf16.mxu0 0
      %1434 = vmatpush1.bf16.msra.mxu0 0
      %1435 = vmatprep.subr.bf16.mxu0 0
      %1436 = vmatpush1.bf16.msra.mxu0 0
      %1437 = vmatprep.subr.bf16.mxu0 0
      %1438 = vmatpush1.bf16.msra.mxu0 0
      %1439 = vmatprep.mubr.bf16.mxu0 0
      %1440 = vmatmul.mubr.bf16.gmra.mrb[0].mxu0 %v1389
      %v1441 = vpop.f32.mrb[0].mxu0
      %v1442 = vadd.f32 0.0, %v1441
      %v1443 = vpop.f32.mrb[0].mxu0
      %v1444 = vpop.f32.mrb[0].mxu0
      %v1445 = vadd.f32 0.0, %v1444
      %v1446 = vpop.f32.mrb[0].mxu0
      %1447 = vmatprep.mubr.bf16.mxu0 0
      %1448 = vmatmul.mubr.bf16.gmra.mrb[0].mxu0 %v1392
      %v1449 = vpop.f32.mrb[0].mxu0
      %v1450 = vadd.f32 0.0, %v1449
      %v1451 = vpop.f32.mrb[0].mxu0
      %v1452 = vpop.f32.mrb[0].mxu0
      %v1453 = vadd.f32 0.0, %v1452
      %v1454 = vpop.f32.mrb[0].mxu0
      %1455 = vmatprep.mubr.bf16.mxu0 0
      %1456 = vmatmul.mubr.bf16.gmra.mrb[0].mxu0 %v1395
      %v1457 = vpop.f32.mrb[0].mxu0
      %v1458 = vadd.f32 0.0, %v1457
      %v1459 = vpop.f32.mrb[0].mxu0
      %v1460 = vpop.f32.mrb[0].mxu0
      %v1461 = vadd.f32 0.0, %v1460
      %v1462 = vpop.f32.mrb[0].mxu0
      %1463 = vmatprep.mubr.bf16.mxu0 0
      %1464 = vmatmul.mubr.bf16.gmra.mrb[0].mxu0 %v1398
      %v1465 = vpop.f32.mrb[0].mxu0
      %v1466 = vadd.f32 0.0, %v1465
      %v1467 = vpop.f32.mrb[0].mxu0
      %v1468 = vpop.f32.mrb[0].mxu0
      %v1469 = vadd.f32 0.0, %v1468
      %v1470 = vpop.f32.mrb[0].mxu0
      %1471 = vdwg.mxu0
      %v1472 = vpack.c.bf16 %v1445, %v1442
      %v1473 = vpack.c.bf16 %v1453, %v1450
      %v1474 = vpack.c.bf16 %v1461, %v1458
      %v1475 = vpack.c.bf16 %v1469, %v1466
      %s1476 = smul.u32 %s1190, 2
      %s1477 = smul.addr %s1476, 8
      %s1478 = scalar_lea.vmem [#allocation3], %s1477
      %1479 = vst [vmem:[%s1478] sm:$0xff] %v1472
      %1480 = vst [vmem:[%s1478 + $0x8] sm:$0xff] %v1473
      %s1481 = sadd.s32 %s1190, 1
      %s1482 = smul.u32 %s1481, 2
      %s1483 = smul.addr %s1482, 8
      %s1484 = scalar_lea.vmem [#allocation3], %s1483
      %1485 = vst [vmem:[%s1484] sm:$0xff] %v1474
      %1486 = vst [vmem:[%s1484 + $0x8] sm:$0xff] %v1475
    $region46: #{fused_forward.1} parent=1 // loop_footer
      %s1189 = sadd.s32 1, %s1185
    $region47: #{fused_forward.1} parent=1 // loop_footer_branch
      %1184 = sbr.rel target = $region43
    $region48: #{fused_forward.1} parent=1 // loop_exit
      _
    %v1487 = vld [vmem:[%s1152] sm:$0xff]
    %v1488 = vld [vmem:[%s1152 + $0x8] sm:$0xff]
    %1491 = vrot.lane.b32.xlu0 %v1487, 127
    %v1492 = vpop.permute.xlu0 %1491
    %1493 = vrot.lane.b32.xlu0 %v1488, 127
    %v1494 = vpop.permute.xlu0 %1493
    %1497 = vrot.lane.b32.xlu0 %v1487, 126
    %v1498 = vpop.permute.xlu0 %1497
    %1499 = vrot.lane.b32.xlu0 %v1488, 126
    %v1500 = vpop.permute.xlu0 %1499
    %1504 = vset.pattern.permute.xlu0 0
    %1505 = vperm.xlu0 %1504, %v1176
    %v1506 = vpop.permute.xlu0 %1505
    %1509 = vset.pattern.permute.xlu0 0
    %1510 = vperm.xlu0 %1509, %v1177
    %v1511 = vpop.permute.xlu0 %1510
    %1514 = vset.pattern.permute.xlu0 0
    %1515 = vperm.xlu0 %1514, %v1178
    %v1516 = vpop.permute.xlu0 %1515
    %1519 = vset.pattern.permute.xlu0 0
    %1520 = vperm.xlu0 %1519, %v1179
    %v1521 = vpop.permute.xlu0 %1520
    %v1527 = vunpack.c.l.b16 %v1168
    %v1528 = vunpack.c.l.b16 %v1169
    %v1529 = vunpack.c.l.b16 %v1170
    %v1530 = vunpack.c.l.b16 %v1171
    %v1531 = vpack.c.b16 %v1528, %v1527
    %v1532 = vpack.c.b16 %v1530, %v1529
    %vm1533 = vcmask 785408
    %v1535 = vsel %vm1533, %v1531, 0
    %v1538 = vsel %vm1533, %v1532, 0
    %1540 = vmatprep.subr.bf16.mxu0 0
    %1541 = vmatpush1.bf16.msra.mxu0 %v1487
    %1542 = vmatprep.subr.bf16.mxu0 0
    %1543 = vmatpush1.bf16.msra.mxu0 %v1488
    %1544 = vmatprep.subr.bf16.mxu0 0
    %1545 = vmatpush1.bf16.msra.mxu0 %v1492
    %1546 = vmatprep.subr.bf16.mxu0 0
    %1547 = vmatpush1.bf16.msra.mxu0 %v1494
    %1548 = vmatprep.subr.bf16.mxu0 0
    %1549 = vmatpush1.bf16.msra.mxu0 %v1498
    %1550 = vmatprep.subr.bf16.mxu0 0
    %1551 = vmatpush1.bf16.msra.mxu0 %v1500
    %1552 = vmatprep.subr.bf16.mxu0 0
    %1553 = vmatpush1.bf16.msra.mxu0 0
    %1554 = vmatprep.subr.bf16.mxu0 0
    %1555 = vmatpush1.bf16.msra.mxu0 0
    %1556 = vmatprep.subr.bf16.mxu0 0
    %1557 = vmatpush1.bf16.msra.mxu0 0
    %1558 = vmatprep.subr.bf16.mxu0 0
    %1559 = vmatpush1.bf16.msra.mxu0 0
    %1560 = vmatprep.subr.bf16.mxu0 0
    %1561 = vmatpush1.bf16.msra.mxu0 0
    %1562 = vmatprep.subr.bf16.mxu0 0
    %1563 = vmatpush1.bf16.msra.mxu0 0
    %1564 = vmatprep.subr.bf16.mxu0 0
    %1565 = vmatpush1.bf16.msra.mxu0 0
    %1566 = vmatprep.subr.bf16.mxu0 0
    %1567 = vmatpush1.bf16.msra.mxu0 0
    %1568 = vmatprep.subr.bf16.mxu0 0
    %1569 = vmatpush1.bf16.msra.mxu0 0
    %1570 = vmatprep.subr.bf16.mxu0 0
    %1571 = vmatpush1.bf16.msra.mxu0 0
    %1572 = vmatprep.mubr.bf16.mxu0 0
    %1573 = vmatmul.mubr.bf16.gmra.mrb[0].mxu0 %v1535
    %v1574 = vpop.f32.mrb[0].mxu0
    %v1575 = vadd.f32 %v1506, %v1574
    %v1576 = vpop.f32.mrb[0].mxu0
    %v1577 = vpop.f32.mrb[0].mxu0
    %v1578 = vadd.f32 %v1511, %v1577
    %v1579 = vpop.f32.mrb[0].mxu0
    %1580 = vmatprep.mubr.bf16.mxu0 0
    %1581 = vmatmul.mubr.bf16.gmra.mrb[0].mxu0 %v1538
    %v1582 = vpop.f32.mrb[0].mxu0
    %v1583 = vadd.f32 %v1516, %v1582
    %v1584 = vpop.f32.mrb[0].mxu0
    %v1585 = vpop.f32.mrb[0].mxu0
    %v1586 = vadd.f32 %v1521, %v1585
    %v1587 = vpop.f32.mrb[0].mxu0
    %1588 = vdwg.mxu0
    %v1589 = vpack.c.bf16 %v1578, %v1575
    %v1590 = vpack.c.bf16 %v1586, %v1583
    %vm1591 = vcmask 252928
    %v1593 = vsel %vm1591, %v1589, 0
    %v1596 = vsel %vm1591, %v1590, 0
    %vm1598 = vcmask 1046528
    %vm1599 = vcmask 1047552
    %v1600 = vsel %vm1598, 4294967295, 65535
    %v1601 = vsel %vm1599, %v1600, 0
    %v1603 = vand.u32 %v1167, %v1601
    %1605 = vmatprep.subr.bf16.mxu0 0
    %1606 = vmatpush1.bf16.msra.mxu0 %v83
    %1607 = vmatprep.subr.bf16.mxu0 0
    %1608 = vmatpush1.bf16.msra.mxu0 %v1603
    %1609 = vmatprep.subr.bf16.mxu0 0
    %1610 = vmatpush1.bf16.msra.mxu0 0
    %1611 = vmatprep.subr.bf16.mxu0 0
    %1612 = vmatpush1.bf16.msra.mxu0 0
    %1613 = vmatprep.subr.bf16.mxu0 0
    %1614 = vmatpush1.bf16.msra.mxu0 0
    %1615 = vmatprep.subr.bf16.mxu0 0
    %1616 = vmatpush1.bf16.msra.mxu0 0
    %1617 = vmatprep.subr.bf16.mxu0 0
    %1618 = vmatpush1.bf16.msra.mxu0 0
    %1619 = vmatprep.subr.bf16.mxu0 0
    %1620 = vmatpush1.bf16.msra.mxu0 0
    %1621 = vmatprep.subr.bf16.mxu0 0
    %1622 = vmatpush1.bf16.msra.mxu0 0
    %1623 = vmatprep.subr.bf16.mxu0 0
    %1624 = vmatpush1.bf16.msra.mxu0 0
    %1625 = vmatprep.subr.bf16.mxu0 0
    %1626 = vmatpush1.bf16.msra.mxu0 0
    %1627 = vmatprep.subr.bf16.mxu0 0
    %1628 = vmatpush1.bf16.msra.mxu0 0
    %1629 = vmatprep.subr.bf16.mxu0 0
    %1630 = vmatpush1.bf16.msra.mxu0 0
    %1631 = vmatprep.subr.bf16.mxu0 0
    %1632 = vmatpush1.bf16.msra.mxu0 0
    %1633 = vmatprep.subr.bf16.mxu0 0
    %1634 = vmatpush1.bf16.msra.mxu0 0
    %1635 = vmatprep.subr.bf16.mxu0 0
    %1636 = vmatpush1.bf16.msra.mxu0 0
    %1637 = vmatprep.mubr.bf16.mxu0 0
    %1638 = vmatmul.mubr.bf16.gmra.mrb[0].mxu0 %v1593
    %v1639 = vpop.f32.mrb[0].mxu0
    %v1640 = vadd.f32 0.0, %v1639
    %v1641 = vpop.f32.mrb[0].mxu0
    %v1642 = vpop.f32.mrb[0].mxu0
    %v1643 = vadd.f32 0.0, %v1642
    %v1644 = vpop.f32.mrb[0].mxu0
    %1645 = vmatprep.mubr.bf16.mxu0 0
    %1646 = vmatmul.mubr.bf16.gmra.mrb[0].mxu0 %v1596
    %v1647 = vpop.f32.mrb[0].mxu0
    %v1648 = vadd.f32 0.0, %v1647
    %v1649 = vpop.f32.mrb[0].mxu0
    %v1650 = vpop.f32.mrb[0].mxu0
    %v1651 = vadd.f32 0.0, %v1650
    %v1652 = vpop.f32.mrb[0].mxu0
    %1653 = vdwg.mxu0
    %v1654 = vpack.c.bf16 %v1643, %v1640
    %v1655 = vpack.c.bf16 %v1651, %v1648
    %s1656 = scalar_lea.vmem [#allocation3], 480
    %1657 = vst [vmem:[%s1656] sm:$0xff] %v1654
    %1658 = vst [vmem:[%s1656 + $0x8] sm:$0xff] %v1655
    %v1659 = vadd.s32 %v69, 32
    %v1660 = vadd.s32 %v69, 40
    %v1661 = vadd.s32 %v69, 48
    %v1662 = vadd.s32 %v69, 56
    %v1663 = vmul.u32 %v1659, 2
    %v1664 = vmul.u32 %v1660, 2
    %v1665 = vmul.u32 %v1661, 2
    %v1666 = vmul.u32 %v1662, 2
    %v1667 = vadd.s32 %v1663, 1
    %v1668 = vadd.s32 %v1664, 1
    %v1669 = vadd.s32 %v1665, 1
    %v1670 = vadd.s32 %v1666, 1
    %vm1671 = vcmp.eq.s32.totalorder %v72, %v1667
    %vm1672 = vcmp.eq.s32.totalorder %v72, %v1668
    %vm1673 = vcmp.eq.s32.totalorder %v72, %v1669
    %vm1674 = vcmp.eq.s32.totalorder %v72, %v1670
    %v1675 = vsel %vm1671, 1, 0
    %v1676 = vsel %vm1672, 1, 0
    %v1677 = vsel %vm1673, 1, 0
    %v1678 = vsel %vm1674, 1, 0
    %v1679 = vcvt.s32.f32 %v1675
    %v1680 = vcvt.s32.f32 %v1676
    %v1681 = vcvt.s32.f32 %v1677
    %v1682 = vcvt.s32.f32 %v1678
    %v1683 = vpack.c.bf16 %v1680, %v1679
    %v1684 = vpack.c.bf16 %v1682, %v1681
    %v1685 = vld [vmem:[#allocation7] sm:$0xff]
    %v1686 = vld [vmem:[#allocation7 + $0x8] sm:$0xff]
    %v1687 = vld [vmem:[#allocation7 + $0x10] sm:$0xff]
    %v1688 = vld [vmem:[#allocation7 + $0x18] sm:$0xff]
    %v1689 = vld [vmem:[#allocation7 + $0x20] sm:$0xff]
    %v1690 = vld [vmem:[#allocation7 + $0x28] sm:$0xff]
    %v1691 = vld [vmem:[#allocation7 + $0x30] sm:$0xff]
    %v1692 = vld [vmem:[#allocation7 + $0x38] sm:$0xff]
    %v1693 = vld [vmem:[%s4] sm:$0xff]
    %v1694 = vld [vmem:[%s4 + $0x8] sm:$0xff]
    %v1695 = vld [vmem:[%s4 + $0x10] sm:$0xff]
    %v1696 = vld [vmem:[%s4 + $0x18] sm:$0xff]
    %v1697 = vld [vmem:[%s4 + $0x20] sm:$0xff]
    %v1698 = vld [vmem:[%s4 + $0x28] sm:$0xff]
    %v1699 = vld [vmem:[%s4 + $0x30] sm:$0xff]
    %v1700 = vld [vmem:[%s4 + $0x38] sm:$0xff]
    loop: start=0, step=1, limit=30
    $region49: #{fused_forward.1} parent=1 // loop_pre_header
      _
    $region50: #{fused_forward.1} parent=1 // loop_header
      %s1702 = sphi 0, %s1706
      %p1703 = scmp.ge.s32.totalorder %s1702, 30
    $region51: #{fused_forward.1} parent=1 // loop_header_branch
      %1705 = sbr.rel (%p1703) target = $region55
    $region52: #{fused_forward.1} parent=1 // loop_body
      %s1707 = smul.u32 %s1702, 2
      %s1708 = smul.addr %s1707, 8
      %s1709 = scalar_lea.vmem [#allocation3], %s1708
      %v1710 = vld [vmem:[%s1709] sm:$0xff]
      %v1711 = vld [vmem:[%s1709 + $0x8] sm:$0xff]
      %s1712 = sadd.s32 %s1702, 1
      %s1713 = smul.u32 %s1712, 2
      %s1714 = smul.addr %s1713, 8
      %s1715 = scalar_lea.vmem [#allocation3], %s1714
      %v1716 = vld [vmem:[%s1715] sm:$0xff]
      %v1717 = vld [vmem:[%s1715 + $0x8] sm:$0xff]
      %1720 = vrot.lane.b32.xlu0 %v1710, 127
      %v1721 = vpop.permute.xlu0 %1720
      %1722 = vrot.lane.b32.xlu0 %v1711, 127
      %v1723 = vpop.permute.xlu0 %1722
      %1726 = vrot.lane.b32.xlu0 %v1710, 126
      %v1727 = vpop.permute.xlu0 %1726
      %1728 = vrot.lane.b32.xlu0 %v1711, 126
      %v1729 = vpop.permute.xlu0 %1728
      %1734 = vrot.lane.b32.xlu0 %v1716, 127
      %v1735 = vpop.permute.xlu0 %1734
      %1736 = vrot.lane.b32.xlu0 %v1717, 127
      %v1737 = vpop.permute.xlu0 %1736
      %1740 = vrot.lane.b32.xlu0 %v1716, 126
      %v1741 = vpop.permute.xlu0 %1740
      %1742 = vrot.lane.b32.xlu0 %v1717, 126
      %v1743 = vpop.permute.xlu0 %1742
      %1747 = vset.pattern.permute.xlu0 0
      %1748 = vperm.xlu0 %1747, %v1693
      %v1749 = vpop.permute.xlu0 %1748
      %1752 = vset.pattern.permute.xlu0 0
      %1753 = vperm.xlu0 %1752, %v1694
      %v1754 = vpop.permute.xlu0 %1753
      %1757 = vset.pattern.permute.xlu0 0
      %1758 = vperm.xlu0 %1757, %v1695
      %v1759 = vpop.permute.xlu0 %1758
      %1762 = vset.pattern.permute.xlu0 0
      %1763 = vperm.xlu0 %1762, %v1696
      %v1764 = vpop.permute.xlu0 %1763
      %1767 = vset.pattern.permute.xlu0 0
      %1768 = vperm.xlu0 %1767, %v1697
      %v1769 = vpop.permute.xlu0 %1768
      %1772 = vset.pattern.permute.xlu0 0
      %1773 = vperm.xlu0 %1772, %v1698
      %v1774 = vpop.permute.xlu0 %1773
      %1777 = vset.pattern.permute.xlu0 0
      %1778 = vperm.xlu0 %1777, %v1699
      %v1779 = vpop.permute.xlu0 %1778
      %1782 = vset.pattern.permute.xlu0 0
      %1783 = vperm.xlu0 %1782, %v1700
      %v1784 = vpop.permute.xlu0 %1783
      %v1794 = vunpack.c.l.b16 %v1685
      %v1795 = vunpack.c.h.b16 %v1685
      %v1796 = vunpack.c.l.b16 %v1686
      %v1797 = vunpack.c.h.b16 %v1686
      %v1798 = vunpack.c.l.b16 %v1687
      %v1799 = vunpack.c.h.b16 %v1687
      %v1800 = vunpack.c.l.b16 %v1688
      %v1801 = vunpack.c.h.b16 %v1688
      %v1802 = vunpack.c.l.b16 %v1689
      %v1803 = vunpack.c.h.b16 %v1689
      %v1804 = vunpack.c.l.b16 %v1690
      %v1805 = vunpack.c.h.b16 %v1690
      %v1806 = vunpack.c.l.b16 %v1691
      %v1807 = vunpack.c.h.b16 %v1691
      %v1808 = vunpack.c.l.b16 %v1692
      %v1809 = vunpack.c.h.b16 %v1692
      %v1810 = vpack.c.b16 %v1796, %v1794
      %v1811 = vpack.c.b16 %v1797, %v1795
      %v1812 = vpack.c.b16 %v1800, %v1798
      %v1813 = vpack.c.b16 %v1801, %v1799
      %v1814 = vpack.c.b16 %v1804, %v1802
      %v1815 = vpack.c.b16 %v1805, %v1803
      %v1816 = vpack.c.b16 %v1808, %v1806
      %v1817 = vpack.c.b16 %v1809, %v1807
      %vm1822 = vcmask 523264
      %v1824 = vsel %vm1822, %v1811, 0
      %v1827 = vsel %vm1822, %v1813, 0
      %v1830 = vsel %vm1822, %v1815, 0
      %v1833 = vsel %vm1822, %v1817, 0
      %1835 = vmatprep.subr.bf16.mxu0 0
      %1836 = vmatpush1.bf16.msra.mxu0 %v1710
      %1837 = vmatprep.subr.bf16.mxu0 0
      %1838 = vmatpush1.bf16.msra.mxu0 %v1711
      %1839 = vmatprep.subr.bf16.mxu0 0
      %1840 = vmatpush1.bf16.msra.mxu0 %v1721
      %1841 = vmatprep.subr.bf16.mxu0 0
      %1842 = vmatpush1.bf16.msra.mxu0 %v1723
      %1843 = vmatprep.subr.bf16.mxu0 0
      %1844 = vmatpush1.bf16.msra.mxu0 %v1727
      %1845 = vmatprep.subr.bf16.mxu0 0
      %1846 = vmatpush1.bf16.msra.mxu0 %v1729
      %1847 = vmatprep.subr.bf16.mxu0 0
      %1848 = vmatpush1.bf16.msra.mxu0 %v1716
      %1849 = vmatprep.subr.bf16.mxu0 0
      %1850 = vmatpush1.bf16.msra.mxu0 %v1717
      %1851 = vmatprep.subr.bf16.mxu0 0
      %1852 = vmatpush1.bf16.msra.mxu0 %v1735
      %1853 = vmatprep.subr.bf16.mxu0 0
      %1854 = vmatpush1.bf16.msra.mxu0 %v1737
      %1855 = vmatprep.subr.bf16.mxu0 0
      %1856 = vmatpush1.bf16.msra.mxu0 %v1741
      %1857 = vmatprep.subr.bf16.mxu0 0
      %1858 = vmatpush1.bf16.msra.mxu0 %v1743
      %1859 = vmatprep.subr.bf16.mxu0 0
      %1860 = vmatpush1.bf16.msra.mxu0 0
      %1861 = vmatprep.subr.bf16.mxu0 0
      %1862 = vmatpush1.bf16.msra.mxu0 0
      %1863 = vmatprep.subr.bf16.mxu0 0
      %1864 = vmatpush1.bf16.msra.mxu0 0
      %1865 = vmatprep.subr.bf16.mxu0 0
      %1866 = vmatpush1.bf16.msra.mxu0 0
      %1867 = vmatprep.mubr.bf16.mxu0 %v1824
      %1868 = vmatmul.mubr.bf16.gmra.mrb[0].mxu0 %v1810
      %v1869 = vpop.f32.mrb[0].mxu0
      %v1870 = vadd.f32 %v1749, %v1869
      %v1871 = vpop.f32.mrb[0].mxu0
      %v1872 = vpop.f32.mrb[0].mxu0
      %v1873 = vadd.f32 %v1754, %v1872
      %v1874 = vpop.f32.mrb[0].mxu0
      %1875 = vmatprep.mubr.bf16.mxu0 %v1827
      %1876 = vmatmul.mubr.bf16.gmra.mrb[0].mxu0 %v1812
      %v1877 = vpop.f32.mrb[0].mxu0
      %v1878 = vadd.f32 %v1759, %v1877
      %v1879 = vpop.f32.mrb[0].mxu0
      %v1880 = vpop.f32.mrb[0].mxu0
      %v1881 = vadd.f32 %v1764, %v1880
      %v1882 = vpop.f32.mrb[0].mxu0
      %1883 = vmatprep.mubr.bf16.mxu0 %v1830
      %1884 = vmatmul.mubr.bf16.gmra.mrb[0].mxu0 %v1814
      %v1885 = vpop.f32.mrb[0].mxu0
      %v1886 = vadd.f32 %v1769, %v1885
      %v1887 = vpop.f32.mrb[0].mxu0
      %v1888 = vpop.f32.mrb[0].mxu0
      %v1889 = vadd.f32 %v1774, %v1888
      %v1890 = vpop.f32.mrb[0].mxu0
      %1891 = vmatprep.mubr.bf16.mxu0 %v1833
      %1892 = vmatmul.mubr.bf16.gmra.mrb[0].mxu0 %v1816
      %v1893 = vpop.f32.mrb[0].mxu0
      %v1894 = vadd.f32 %v1779, %v1893
      %v1895 = vpop.f32.mrb[0].mxu0
      %v1896 = vpop.f32.mrb[0].mxu0
      %v1897 = vadd.f32 %v1784, %v1896
      %v1898 = vpop.f32.mrb[0].mxu0
      %1899 = vdwg.mxu0
      %v1900 = vpack.c.bf16 %v1873, %v1870
      %v1901 = vpack.c.bf16 %v1881, %v1878
      %v1902 = vpack.c.bf16 %v1889, %v1886
      %v1903 = vpack.c.bf16 %v1897, %v1894
      %vm1904 = vcmask 498688
      %v1906 = vsel %vm1904, %v1900, 0
      %v1909 = vsel %vm1904, %v1901, 0
      %v1912 = vsel %vm1904, %v1902, 0
      %v1915 = vsel %vm1904, %v1903, 0
      %vm1917 = vcmask 1045504
      %v1918 = vsel %vm1917, 4294967295, 65535
      %v1919 = vsel %vm1598, %v1918, 0
      %v1921 = vand.u32 %v1684, %v1919
      %1923 = vmatprep.subr.bf16.mxu0 0
      %1924 = vmatpush1.bf16.msra.mxu0 %v83
      %1925 = vmatprep.subr.bf16.mxu0 0
      %1926 = vmatpush1.bf16.msra.mxu0 %v1167
      %1927 = vmatprep.subr.bf16.mxu0 0
      %1928 = vmatpush1.bf16.msra.mxu0 %v1683
      %1929 = vmatprep.subr.bf16.mxu0 0
      %1930 = vmatpush1.bf16.msra.mxu0 %v1921
      %1931 = vmatprep.subr.bf16.mxu0 0
      %1932 = vmatpush1.bf16.msra.mxu0 0
      %1933 = vmatprep.subr.bf16.mxu0 0
      %1934 = vmatpush1.bf16.msra.mxu0 0
      %1935 = vmatprep.subr.bf16.mxu0 0
      %1936 = vmatpush1.bf16.msra.mxu0 0
      %1937 = vmatprep.subr.bf16.mxu0 0
      %1938 = vmatpush1.bf16.msra.mxu0 0
      %1939 = vmatprep.subr.bf16.mxu0 0
      %1940 = vmatpush1.bf16.msra.mxu0 0
      %1941 = vmatprep.subr.bf16.mxu0 0
      %1942 = vmatpush1.bf16.msra.mxu0 0
      %1943 = vmatprep.subr.bf16.mxu0 0
      %1944 = vmatpush1.bf16.msra.mxu0 0
      %1945 = vmatprep.subr.bf16.mxu0 0
      %1946 = vmatpush1.bf16.msra.mxu0 0
      %1947 = vmatprep.subr.bf16.mxu0 0
      %1948 = vmatpush1.bf16.msra.mxu0 0
      %1949 = vmatprep.subr.bf16.mxu0 0
      %1950 = vmatpush1.bf16.msra.mxu0 0
      %1951 = vmatprep.subr.bf16.mxu0 0
      %1952 = vmatpush1.bf16.msra.mxu0 0
      %1953 = vmatprep.subr.bf16.mxu0 0
      %1954 = vmatpush1.bf16.msra.mxu0 0
      %1955 = vmatprep.mubr.bf16.mxu0 0
      %1956 = vmatmul.mubr.bf16.gmra.mrb[0].mxu0 %v1906
      %v1957 = vpop.f32.mrb[0].mxu0
      %v1958 = vadd.f32 0.0, %v1957
      %v1959 = vpop.f32.mrb[0].mxu0
      %v1960 = vpop.f32.mrb[0].mxu0
      %v1961 = vadd.f32 0.0, %v1960
      %v1962 = vpop.f32.mrb[0].mxu0
      %1963 = vmatprep.mubr.bf16.mxu0 0
      %1964 = vmatmul.mubr.bf16.gmra.mrb[0].mxu0 %v1909
      %v1965 = vpop.f32.mrb[0].mxu0
      %v1966 = vadd.f32 0.0, %v1965
      %v1967 = vpop.f32.mrb[0].mxu0
      %v1968 = vpop.f32.mrb[0].mxu0
      %v1969 = vadd.f32 0.0, %v1968
      %v1970 = vpop.f32.mrb[0].mxu0
      %1971 = vmatprep.mubr.bf16.mxu0 0
      %1972 = vmatmul.mubr.bf16.gmra.mrb[0].mxu0 %v1912
      %v1973 = vpop.f32.mrb[0].mxu0
      %v1974 = vadd.f32 0.0, %v1973
      %v1975 = vpop.f32.mrb[0].mxu0
      %v1976 = vpop.f32.mrb[0].mxu0
      %v1977 = vadd.f32 0.0, %v1976
      %v1978 = vpop.f32.mrb[0].mxu0
      %1979 = vmatprep.mubr.bf16.mxu0 0
      %1980 = vmatmul.mubr.bf16.gmra.mrb[0].mxu0 %v1915
      %v1981 = vpop.f32.mrb[0].mxu0
      %v1982 = vadd.f32 0.0, %v1981
      %v1983 = vpop.f32.mrb[0].mxu0
      %v1984 = vpop.f32.mrb[0].mxu0
      %v1985 = vadd.f32 0.0, %v1984
      %v1986 = vpop.f32.mrb[0].mxu0
      %1987 = vdwg.mxu0
      %v1988 = vpack.c.bf16 %v1961, %v1958
      %v1989 = vpack.c.bf16 %v1969, %v1966
      %v1990 = vpack.c.bf16 %v1977, %v1974
      %v1991 = vpack.c.bf16 %v1985, %v1982
      %s1992 = smul.u32 %s1707, 2
      %s1993 = smul.addr %s1992, 8
      %s1994 = scalar_lea.vmem [#allocation4], %s1993
      %1995 = vst [vmem:[%s1994] sm:$0xff] %v1988
      %1996 = vst [vmem:[%s1994 + $0x8] sm:$0xff] %v1989
      %s1997 = sadd.s32 %s1707, 1
      %s1998 = smul.u32 %s1997, 2
      %s1999 = smul.addr %s1998, 8
      %s2000 = scalar_lea.vmem [#allocation4], %s1999
      %2001 = vst [vmem:[%s2000] sm:$0xff] %v1990
      %2002 = vst [vmem:[%s2000 + $0x8] sm:$0xff] %v1991
    $region53: #{fused_forward.1} parent=1 // loop_footer
      %s1706 = sadd.s32 1, %s1702
    $region54: #{fused_forward.1} parent=1 // loop_footer_branch
      %1701 = sbr.rel target = $region50
    $region55: #{fused_forward.1} parent=1 // loop_exit
      _
    %v2003 = vld [vmem:[%s1656] sm:$0xff]
    %v2004 = vld [vmem:[%s1656 + $0x8] sm:$0xff]
    %2007 = vrot.lane.b32.xlu0 %v2003, 127
    %v2008 = vpop.permute.xlu0 %2007
    %2009 = vrot.lane.b32.xlu0 %v2004, 127
    %v2010 = vpop.permute.xlu0 %2009
    %2013 = vrot.lane.b32.xlu0 %v2003, 126
    %v2014 = vpop.permute.xlu0 %2013
    %2015 = vrot.lane.b32.xlu0 %v2004, 126
    %v2016 = vpop.permute.xlu0 %2015
    %2020 = vset.pattern.permute.xlu0 0
    %2021 = vperm.xlu0 %2020, %v1693
    %v2022 = vpop.permute.xlu0 %2021
    %2025 = vset.pattern.permute.xlu0 0
    %2026 = vperm.xlu0 %2025, %v1694
    %v2027 = vpop.permute.xlu0 %2026
    %2030 = vset.pattern.permute.xlu0 0
    %2031 = vperm.xlu0 %2030, %v1695
    %v2032 = vpop.permute.xlu0 %2031
    %2035 = vset.pattern.permute.xlu0 0
    %2036 = vperm.xlu0 %2035, %v1696
    %v2037 = vpop.permute.xlu0 %2036
    %v2043 = vunpack.c.l.b16 %v1685
    %v2044 = vunpack.c.l.b16 %v1686
    %v2045 = vunpack.c.l.b16 %v1687
    %v2046 = vunpack.c.l.b16 %v1688
    %v2047 = vpack.c.b16 %v2044, %v2043
    %v2048 = vpack.c.b16 %v2046, %v2045
    %v2050 = vsel %vm1533, %v2047, 0
    %v2053 = vsel %vm1533, %v2048, 0
    %2055 = vmatprep.subr.bf16.mxu0 0
    %2056 = vmatpush1.bf16.msra.mxu0 %v2003
    %2057 = vmatprep.subr.bf16.mxu0 0
    %2058 = vmatpush1.bf16.msra.mxu0 %v2004
    %2059 = vmatprep.subr.bf16.mxu0 0
    %2060 = vmatpush1.bf16.msra.mxu0 %v2008
    %2061 = vmatprep.subr.bf16.mxu0 0
    %2062 = vmatpush1.bf16.msra.mxu0 %v2010
    %2063 = vmatprep.subr.bf16.mxu0 0
    %2064 = vmatpush1.bf16.msra.mxu0 %v2014
    %2065 = vmatprep.subr.bf16.mxu0 0
    %2066 = vmatpush1.bf16.msra.mxu0 %v2016
    %2067 = vmatprep.subr.bf16.mxu0 0
    %2068 = vmatpush1.bf16.msra.mxu0 0
    %2069 = vmatprep.subr.bf16.mxu0 0
    %2070 = vmatpush1.bf16.msra.mxu0 0
    %2071 = vmatprep.subr.bf16.mxu0 0
    %2072 = vmatpush1.bf16.msra.mxu0 0
    %2073 = vmatprep.subr.bf16.mxu0 0
    %2074 = vmatpush1.bf16.msra.mxu0 0
    %2075 = vmatprep.subr.bf16.mxu0 0
    %2076 = vmatpush1.bf16.msra.mxu0 0
    %2077 = vmatprep.subr.bf16.mxu0 0
    %2078 = vmatpush1.bf16.msra.mxu0 0
    %2079 = vmatprep.subr.bf16.mxu0 0
    %2080 = vmatpush1.bf16.msra.mxu0 0
    %2081 = vmatprep.subr.bf16.mxu0 0
    %2082 = vmatpush1.bf16.msra.mxu0 0
    %2083 = vmatprep.subr.bf16.mxu0 0
    %2084 = vmatpush1.bf16.msra.mxu0 0
    %2085 = vmatprep.subr.bf16.mxu0 0
    %2086 = vmatpush1.bf16.msra.mxu0 0
    %2087 = vmatprep.mubr.bf16.mxu0 0
    %2088 = vmatmul.mubr.bf16.gmra.mrb[0].mxu0 %v2050
    %v2089 = vpop.f32.mrb[0].mxu0
    %v2090 = vadd.f32 %v2022, %v2089
    %v2091 = vpop.f32.mrb[0].mxu0
    %v2092 = vpop.f32.mrb[0].mxu0
    %v2093 = vadd.f32 %v2027, %v2092
    %v2094 = vpop.f32.mrb[0].mxu0
    %2095 = vmatprep.mubr.bf16.mxu0 0
    %2096 = vmatmul.mubr.bf16.gmra.mrb[0].mxu0 %v2053
    %v2097 = vpop.f32.mrb[0].mxu0
    %v2098 = vadd.f32 %v2032, %v2097
    %v2099 = vpop.f32.mrb[0].mxu0
    %v2100 = vpop.f32.mrb[0].mxu0
    %v2101 = vadd.f32 %v2037, %v2100
    %v2102 = vpop.f32.mrb[0].mxu0
    %2103 = vdwg.mxu0
    %v2104 = vpack.c.bf16 %v2093, %v2090
    %v2105 = vpack.c.bf16 %v2101, %v2098
    %vm2106 = vcmask 498688
    %v2108 = vsel %vm2106, %v2104, 0
    %v2111 = vsel %vm2106, %v2105, 0
    %vm2113 = vcmask 1045504
    %v2114 = vsel %vm2113, 4294967295, 65535
    %v2115 = vsel %vm1598, %v2114, 0
    %v2117 = vand.u32 %v1684, %v2115
    %2119 = vmatprep.subr.bf16.mxu0 0
    %2120 = vmatpush1.bf16.msra.mxu0 %v83
    %2121 = vmatprep.subr.bf16.mxu0 0
    %2122 = vmatpush1.bf16.msra.mxu0 %v1167
    %2123 = vmatprep.subr.bf16.mxu0 0
    %2124 = vmatpush1.bf16.msra.mxu0 %v1683
    %2125 = vmatprep.subr.bf16.mxu0 0
    %2126 = vmatpush1.bf16.msra.mxu0 %v2117
    %2127 = vmatprep.subr.bf16.mxu0 0
    %2128 = vmatpush1.bf16.msra.mxu0 0
    %2129 = vmatprep.subr.bf16.mxu0 0
    %2130 = vmatpush1.bf16.msra.mxu0 0
    %2131 = vmatprep.subr.bf16.mxu0 0
    %2132 = vmatpush1.bf16.msra.mxu0 0
    %2133 = vmatprep.subr.bf16.mxu0 0
    %2134 = vmatpush1.bf16.msra.mxu0 0
    %2135 = vmatprep.subr.bf16.mxu0 0
    %2136 = vmatpush1.bf16.msra.mxu0 0
    %2137 = vmatprep.subr.bf16.mxu0 0
    %2138 = vmatpush1.bf16.msra.mxu0 0
    %2139 = vmatprep.subr.bf16.mxu0 0
    %2140 = vmatpush1.bf16.msra.mxu0 0
    %2141 = vmatprep.subr.bf16.mxu0 0
    %2142 = vmatpush1.bf16.msra.mxu0 0
    %2143 = vmatprep.subr.bf16.mxu0 0
    %2144 = vmatpush1.bf16.msra.mxu0 0
    %2145 = vmatprep.subr.bf16.mxu0 0
    %2146 = vmatpush1.bf16.msra.mxu0 0
    %2147 = vmatprep.subr.bf16.mxu0 0
    %2148 = vmatpush1.bf16.msra.mxu0 0
    %2149 = vmatprep.subr.bf16.mxu0 0
    %2150 = vmatpush1.bf16.msra.mxu0 0
    %2151 = vmatprep.mubr.bf16.mxu0 0
    %2152 = vmatmul.mubr.bf16.gmra.mrb[0].mxu0 %v2108
    %v2153 = vpop.f32.mrb[0].mxu0
    %v2154 = vadd.f32 0.0, %v2153
    %v2155 = vpop.f32.mrb[0].mxu0
    %v2156 = vpop.f32.mrb[0].mxu0
    %v2157 = vadd.f32 0.0, %v2156
    %v2158 = vpop.f32.mrb[0].mxu0
    %2159 = vmatprep.mubr.bf16.mxu0 0
    %2160 = vmatmul.mubr.bf16.gmra.mrb[0].mxu0 %v2111
    %v2161 = vpop.f32.mrb[0].mxu0
    %v2162 = vadd.f32 0.0, %v2161
    %v2163 = vpop.f32.mrb[0].mxu0
    %v2164 = vpop.f32.mrb[0].mxu0
    %v2165 = vadd.f32 0.0, %v2164
    %v2166 = vpop.f32.mrb[0].mxu0
    %2167 = vdwg.mxu0
    %v2168 = vpack.c.bf16 %v2157, %v2154
    %v2169 = vpack.c.bf16 %v2165, %v2162
    %s2170 = scalar_lea.vmem [#allocation4], 960
    %2171 = vst [vmem:[%s2170] sm:$0xff] %v2168
    %2172 = vst [vmem:[%s2170 + $0x8] sm:$0xff] %v2169
    %v2173 = vld [vmem:[#allocation9] sm:$0xff]
    %v2174 = vld [vmem:[#allocation9 + $0x8] sm:$0xff]
    %v2175 = vld [vmem:[#allocation9 + $0x10] sm:$0xff]
    %v2176 = vld [vmem:[#allocation9 + $0x18] sm:$0xff]
    %v2177 = vld [vmem:[#allocation9 + $0x20] sm:$0xff]
    %v2178 = vld [vmem:[#allocation9 + $0x28] sm:$0xff]
    %v2179 = vld [vmem:[#allocation9 + $0x30] sm:$0xff]
    %v2180 = vld [vmem:[#allocation9 + $0x38] sm:$0xff]
    %v2181 = vld [vmem:[%s6] sm:$0xff]
    %v2182 = vld [vmem:[%s6 + $0x8] sm:$0xff]
    %v2183 = vld [vmem:[%s6 + $0x10] sm:$0xff]
    %v2184 = vld [vmem:[%s6 + $0x18] sm:$0xff]
    %v2185 = vld [vmem:[%s6 + $0x20] sm:$0xff]
    %v2186 = vld [vmem:[%s6 + $0x28] sm:$0xff]
    %v2187 = vld [vmem:[%s6 + $0x30] sm:$0xff]
    %v2188 = vld [vmem:[%s6 + $0x38] sm:$0xff]
    loop: start=0, step=1, limit=60
    $region56: #{fused_forward.1} parent=1 // loop_pre_header
      _
    $region57: #{fused_forward.1} parent=1 // loop_header
      %s2190 = sphi 0, %s2194
      %p2191 = scmp.ge.s32.totalorder %s2190, 60
    $region58: #{fused_forward.1} parent=1 // loop_header_branch
      %2193 = sbr.rel (%p2191) target = $region62
    $region59: #{fused_forward.1} parent=1 // loop_body
      %s2195 = smul.u32 %s2190, 2
      %s2196 = smul.addr %s2195, 8
      %s2197 = scalar_lea.vmem [#allocation4], %s2196
      %v2198 = vld [vmem:[%s2197] sm:$0xff]
      %v2199 = vld [vmem:[%s2197 + $0x8] sm:$0xff]
      %s2200 = sadd.s32 %s2190, 1
      %s2201 = smul.u32 %s2200, 2
      %s2202 = smul.addr %s2201, 8
      %s2203 = scalar_lea.vmem [#allocation4], %s2202
      %v2204 = vld [vmem:[%s2203] sm:$0xff]
      %v2205 = vld [vmem:[%s2203 + $0x8] sm:$0xff]
      %2208 = vrot.lane.b32.xlu0 %v2198, 127
      %v2209 = vpop.permute.xlu0 %2208
      %2210 = vrot.lane.b32.xlu0 %v2199, 127
      %v2211 = vpop.permute.xlu0 %2210
      %2214 = vrot.lane.b32.xlu0 %v2198, 126
      %v2215 = vpop.permute.xlu0 %2214
      %2216 = vrot.lane.b32.xlu0 %v2199, 126
      %v2217 = vpop.permute.xlu0 %2216
      %2222 = vrot.lane.b32.xlu0 %v2204, 127
      %v2223 = vpop.permute.xlu0 %2222
      %2224 = vrot.lane.b32.xlu0 %v2205, 127
      %v2225 = vpop.permute.xlu0 %2224
      %2228 = vrot.lane.b32.xlu0 %v2204, 126
      %v2229 = vpop.permute.xlu0 %2228
      %2230 = vrot.lane.b32.xlu0 %v2205, 126
      %v2231 = vpop.permute.xlu0 %2230
      %2235 = vset.pattern.permute.xlu0 0
      %2236 = vperm.xlu0 %2235, %v2181
      %v2237 = vpop.permute.xlu0 %2236
      %2240 = vset.pattern.permute.xlu0 0
      %2241 = vperm.xlu0 %2240, %v2182
      %v2242 = vpop.permute.xlu0 %2241
      %2245 = vset.pattern.permute.xlu0 0
      %2246 = vperm.xlu0 %2245, %v2183
      %v2247 = vpop.permute.xlu0 %2246
      %2250 = vset.pattern.permute.xlu0 0
      %2251 = vperm.xlu0 %2250, %v2184
      %v2252 = vpop.permute.xlu0 %2251
      %2255 = vset.pattern.permute.xlu0 0
      %2256 = vperm.xlu0 %2255, %v2185
      %v2257 = vpop.permute.xlu0 %2256
      %2260 = vset.pattern.permute.xlu0 0
      %2261 = vperm.xlu0 %2260, %v2186
      %v2262 = vpop.permute.xlu0 %2261
      %2265 = vset.pattern.permute.xlu0 0
      %2266 = vperm.xlu0 %2265, %v2187
      %v2267 = vpop.permute.xlu0 %2266
      %2270 = vset.pattern.permute.xlu0 0
      %2271 = vperm.xlu0 %2270, %v2188
      %v2272 = vpop.permute.xlu0 %2271
      %v2282 = vunpack.c.l.b16 %v2173
      %v2283 = vunpack.c.h.b16 %v2173
      %v2284 = vunpack.c.l.b16 %v2174
      %v2285 = vunpack.c.h.b16 %v2174
      %v2286 = vunpack.c.l.b16 %v2175
      %v2287 = vunpack.c.h.b16 %v2175
      %v2288 = vunpack.c.l.b16 %v2176
      %v2289 = vunpack.c.h.b16 %v2176
      %v2290 = vunpack.c.l.b16 %v2177
      %v2291 = vunpack.c.h.b16 %v2177
      %v2292 = vunpack.c.l.b16 %v2178
      %v2293 = vunpack.c.h.b16 %v2178
      %v2294 = vunpack.c.l.b16 %v2179
      %v2295 = vunpack.c.h.b16 %v2179
      %v2296 = vunpack.c.l.b16 %v2180
      %v2297 = vunpack.c.h.b16 %v2180
      %v2298 = vpack.c.b16 %v2284, %v2282
      %v2299 = vpack.c.b16 %v2285, %v2283
      %v2300 = vpack.c.b16 %v2288, %v2286
      %v2301 = vpack.c.b16 %v2289, %v2287
      %v2302 = vpack.c.b16 %v2292, %v2290
      %v2303 = vpack.c.b16 %v2293, %v2291
      %v2304 = vpack.c.b16 %v2296, %v2294
      %v2305 = vpack.c.b16 %v2297, %v2295
      %vm2310 = vcmask 523264
      %v2312 = vsel %vm2310, %v2299, 0
      %v2315 = vsel %vm2310, %v2301, 0
      %v2318 = vsel %vm2310, %v2303, 0
      %v2321 = vsel %vm2310, %v2305, 0
      %2323 = vmatprep.subr.bf16.mxu0 0
      %2324 = vmatpush1.bf16.msra.mxu0 %v2198
      %2325 = vmatprep.subr.bf16.mxu0 0
      %2326 = vmatpush1.bf16.msra.mxu0 %v2199
      %2327 = vmatprep.subr.bf16.mxu0 0
      %2328 = vmatpush1.bf16.msra.mxu0 %v2209
      %2329 = vmatprep.subr.bf16.mxu0 0
      %2330 = vmatpush1.bf16.msra.mxu0 %v2211
      %2331 = vmatprep.subr.bf16.mxu0 0
      %2332 = vmatpush1.bf16.msra.mxu0 %v2215
      %2333 = vmatprep.subr.bf16.mxu0 0
      %2334 = vmatpush1.bf16.msra.mxu0 %v2217
      %2335 = vmatprep.subr.bf16.mxu0 0
      %2336 = vmatpush1.bf16.msra.mxu0 %v2204
      %2337 = vmatprep.subr.bf16.mxu0 0
      %2338 = vmatpush1.bf16.msra.mxu0 %v2205
      %2339 = vmatprep.subr.bf16.mxu0 0
      %2340 = vmatpush1.bf16.msra.mxu0 %v2223
      %2341 = vmatprep.subr.bf16.mxu0 0
      %2342 = vmatpush1.bf16.msra.mxu0 %v2225
      %2343 = vmatprep.subr.bf16.mxu0 0
      %2344 = vmatpush1.bf16.msra.mxu0 %v2229
      %2345 = vmatprep.subr.bf16.mxu0 0
      %2346 = vmatpush1.bf16.msra.mxu0 %v2231
      %2347 = vmatprep.subr.bf16.mxu0 0
      %2348 = vmatpush1.bf16.msra.mxu0 0
      %2349 = vmatprep.subr.bf16.mxu0 0
      %2350 = vmatpush1.bf16.msra.mxu0 0
      %2351 = vmatprep.subr.bf16.mxu0 0
      %2352 = vmatpush1.bf16.msra.mxu0 0
      %2353 = vmatprep.subr.bf16.mxu0 0
      %2354 = vmatpush1.bf16.msra.mxu0 0
      %2355 = vmatprep.mubr.bf16.mxu0 %v2312
      %2356 = vmatmul.mubr.bf16.gmra.mrb[0].mxu0 %v2298
      %v2357 = vpop.f32.mrb[0].mxu0
      %v2358 = vadd.f32 %v2237, %v2357
      %v2359 = vpop.f32.mrb[0].mxu0
      %v2360 = vpop.f32.mrb[0].mxu0
      %v2361 = vadd.f32 %v2242, %v2360
      %v2362 = vpop.f32.mrb[0].mxu0
      %2363 = vmatprep.mubr.bf16.mxu0 %v2315
      %2364 = vmatmul.mubr.bf16.gmra.mrb[0].mxu0 %v2300
      %v2365 = vpop.f32.mrb[0].mxu0
      %v2366 = vadd.f32 %v2247, %v2365
      %v2367 = vpop.f32.mrb[0].mxu0
      %v2368 = vpop.f32.mrb[0].mxu0
      %v2369 = vadd.f32 %v2252, %v2368
      %v2370 = vpop.f32.mrb[0].mxu0
      %2371 = vmatprep.mubr.bf16.mxu0 %v2318
      %2372 = vmatmul.mubr.bf16.gmra.mrb[0].mxu0 %v2302
      %v2373 = vpop.f32.mrb[0].mxu0
      %v2374 = vadd.f32 %v2257, %v2373
      %v2375 = vpop.f32.mrb[0].mxu0
      %v2376 = vpop.f32.mrb[0].mxu0
      %v2377 = vadd.f32 %v2262, %v2376
      %v2378 = vpop.f32.mrb[0].mxu0
      %2379 = vmatprep.mubr.bf16.mxu0 %v2321
      %2380 = vmatmul.mubr.bf16.gmra.mrb[0].mxu0 %v2304
      %v2381 = vpop.f32.mrb[0].mxu0
      %v2382 = vadd.f32 %v2267, %v2381
      %v2383 = vpop.f32.mrb[0].mxu0
      %v2384 = vpop.f32.mrb[0].mxu0
      %v2385 = vadd.f32 %v2272, %v2384
      %v2386 = vpop.f32.mrb[0].mxu0
      %2387 = vdwg.mxu0
      %v2388 = vadd.f32 %v2358, 3.0
      %v2389 = vadd.f32 %v2361, 3.0
      %v2390 = vadd.f32 %v2366, 3.0
      %v2391 = vadd.f32 %v2369, 3.0
      %v2392 = vadd.f32 %v2374, 3.0
      %v2393 = vadd.f32 %v2377, 3.0
      %v2394 = vadd.f32 %v2382, 3.0
      %v2395 = vadd.f32 %v2385, 3.0
      %v2396 = vmax.f32 %v2388, 0.0
      %v2397 = vmax.f32 %v2389, 0.0
      %v2398 = vmax.f32 %v2390, 0.0
      %v2399 = vmax.f32 %v2391, 0.0
      %v2400 = vmax.f32 %v2392, 0.0
      %v2401 = vmax.f32 %v2393, 0.0
      %v2402 = vmax.f32 %v2394, 0.0
      %v2403 = vmax.f32 %v2395, 0.0
      %v2404 = vmin.f32 %v2396, 6.0
      %v2405 = vmin.f32 %v2397, 6.0
      %v2406 = vmin.f32 %v2398, 6.0
      %v2407 = vmin.f32 %v2399, 6.0
      %v2408 = vmin.f32 %v2400, 6.0
      %v2409 = vmin.f32 %v2401, 6.0
      %v2410 = vmin.f32 %v2402, 6.0
      %v2411 = vmin.f32 %v2403, 6.0
      %v2412 = vmul.f32 %v2404, 0.16666667
      %v2413 = vmul.f32 %v2405, 0.16666667
      %v2414 = vmul.f32 %v2406, 0.16666667
      %v2415 = vmul.f32 %v2407, 0.16666667
      %v2416 = vmul.f32 %v2408, 0.16666667
      %v2417 = vmul.f32 %v2409, 0.16666667
      %v2418 = vmul.f32 %v2410, 0.16666667
      %v2419 = vmul.f32 %v2411, 0.16666667
      %s2420 = smul.u32 %s2195, 32
      %s2421 = scalar_lea.vmem %s7, %s2420
      %vm2422 = vcmask 1031168
      %2423 = vst.msk [vmem:[%s2421] sm:$0xff] %vm2422, %v2412
      %2424 = vst.msk [vmem:[%s2421 + $0x8] sm:$0xff] %vm2422, %v2413
      %2425 = vst.msk [vmem:[%s2421 + $0x10] sm:$0xff] %vm2422, %v2414
      %2426 = vst.msk [vmem:[%s2421 + $0x18] sm:$0xff] %vm2422, %v2415
      %s2427 = sadd.s32 %s2195, 1
      %s2428 = smul.u32 %s2427, 32
      %s2429 = scalar_lea.vmem %s7, %s2428
      %2430 = vst.msk [vmem:[%s2429] sm:$0xff] %vm2422, %v2416
      %2431 = vst.msk [vmem:[%s2429 + $0x8] sm:$0xff] %vm2422, %v2417
      %2432 = vst.msk [vmem:[%s2429 + $0x10] sm:$0xff] %vm2422, %v2418
      %2433 = vst.msk [vmem:[%s2429 + $0x18] sm:$0xff] %vm2422, %v2419
    $region60: #{fused_forward.1} parent=1 // loop_footer
      %s2194 = sadd.s32 1, %s2190
    $region61: #{fused_forward.1} parent=1 // loop_footer_branch
      %2189 = sbr.rel target = $region57
    $region62: #{fused_forward.1} parent=1 // loop_exit
      _
    %v2434 = vld [vmem:[%s2170] sm:$0xff]
    %v2435 = vld [vmem:[%s2170 + $0x8] sm:$0xff]
    %2438 = vrot.lane.b32.xlu0 %v2434, 127
    %v2439 = vpop.permute.xlu0 %2438
    %2440 = vrot.lane.b32.xlu0 %v2435, 127
    %v2441 = vpop.permute.xlu0 %2440
    %2444 = vrot.lane.b32.xlu0 %v2434, 126
    %v2445 = vpop.permute.xlu0 %2444
    %2446 = vrot.lane.b32.xlu0 %v2435, 126
    %v2447 = vpop.permute.xlu0 %2446
    %2451 = vset.pattern.permute.xlu0 0
    %2452 = vperm.xlu0 %2451, %v2181
    %v2453 = vpop.permute.xlu0 %2452
    %2456 = vset.pattern.permute.xlu0 0
    %2457 = vperm.xlu0 %2456, %v2182
    %v2458 = vpop.permute.xlu0 %2457
    %2461 = vset.pattern.permute.xlu0 0
    %2462 = vperm.xlu0 %2461, %v2183
    %v2463 = vpop.permute.xlu0 %2462
    %2466 = vset.pattern.permute.xlu0 0
    %2467 = vperm.xlu0 %2466, %v2184
    %v2468 = vpop.permute.xlu0 %2467
    %v2474 = vunpack.c.l.b16 %v2173
    %v2475 = vunpack.c.l.b16 %v2174
    %v2476 = vunpack.c.l.b16 %v2175
    %v2477 = vunpack.c.l.b16 %v2176
    %v2478 = vpack.c.b16 %v2475, %v2474
    %v2479 = vpack.c.b16 %v2477, %v2476
    %v2481 = vsel %vm1533, %v2478, 0
    %v2484 = vsel %vm1533, %v2479, 0
    %2486 = vmatprep.subr.bf16.mxu0 0
    %2487 = vmatpush1.bf16.msra.mxu0 %v2434
    %2488 = vmatprep.subr.bf16.mxu0 0
    %2489 = vmatpush1.bf16.msra.mxu0 %v2435
    %2490 = vmatprep.subr.bf16.mxu0 0
    %2491 = vmatpush1.bf16.msra.mxu0 %v2439
    %2492 = vmatprep.subr.bf16.mxu0 0
    %2493 = vmatpush1.bf16.msra.mxu0 %v2441
    %2494 = vmatprep.subr.bf16.mxu0 0
    %2495 = vmatpush1.bf16.msra.mxu0 %v2445
    %2496 = vmatprep.subr.bf16.mxu0 0
    %2497 = vmatpush1.bf16.msra.mxu0 %v2447
    %2498 = vmatprep.subr.bf16.mxu0 0
    %2499 = vmatpush1.bf16.msra.mxu0 0
    %2500 = vmatprep.subr.bf16.mxu0 0
    %2501 = vmatpush1.bf16.msra.mxu0 0
    %2502 = vmatprep.subr.bf16.mxu0 0
    %2503 = vmatpush1.bf16.msra.mxu0 0
    %2504 = vmatprep.subr.bf16.mxu0 0
    %2505 = vmatpush1.bf16.msra.mxu0 0
    %2506 = vmatprep.subr.bf16.mxu0 0
    %2507 = vmatpush1.bf16.msra.mxu0 0
    %2508 = vmatprep.subr.bf16.mxu0 0
    %2509 = vmatpush1.bf16.msra.mxu0 0
    %2510 = vmatprep.subr.bf16.mxu0 0
    %2511 = vmatpush1.bf16.msra.mxu0 0
    %2512 = vmatprep.subr.bf16.mxu0 0
    %2513 = vmatpush1.bf16.msra.mxu0 0
    %2514 = vmatprep.subr.bf16.mxu0 0
    %2515 = vmatpush1.bf16.msra.mxu0 0
    %2516 = vmatprep.subr.bf16.mxu0 0
    %2517 = vmatpush1.bf16.msra.mxu0 0
    %2518 = vmatprep.mubr.bf16.mxu0 0
    %2519 = vmatmul.mubr.bf16.gmra.mrb[0].mxu0 %v2481
    %v2520 = vpop.f32.mrb[0].mxu0
    %v2521 = vadd.f32 %v2453, %v2520
    %v2522 = vpop.f32.mrb[0].mxu0
    %v2523 = vpop.f32.mrb[0].mxu0
    %v2524 = vadd.f32 %v2458, %v2523
    %v2525 = vpop.f32.mrb[0].mxu0
    %2526 = vmatprep.mubr.bf16.mxu0 0
    %2527 = vmatmul.mubr.bf16.gmra.mrb[0].mxu0 %v2484
    %v2528 = vpop.f32.mrb[0].mxu0
    %v2529 = vadd.f32 %v2463, %v2528
    %v2530 = vpop.f32.mrb[0].mxu0
    %v2531 = vpop.f32.mrb[0].mxu0
    %v2532 = vadd.f32 %v2468, %v2531
    %v2533 = vpop.f32.mrb[0].mxu0
    %2534 = vdwg.mxu0
    %v2535 = vadd.f32 %v2521, 3.0
    %v2536 = vadd.f32 %v2524, 3.0
    %v2537 = vadd.f32 %v2529, 3.0
    %v2538 = vadd.f32 %v2532, 3.0
    %v2539 = vmax.f32 %v2535, 0.0
    %v2540 = vmax.f32 %v2536, 0.0
    %v2541 = vmax.f32 %v2537, 0.0
    %v2542 = vmax.f32 %v2538, 0.0
    %v2543 = vmin.f32 %v2539, 6.0
    %v2544 = vmin.f32 %v2540, 6.0
    %v2545 = vmin.f32 %v2541, 6.0
    %v2546 = vmin.f32 %v2542, 6.0
    %v2547 = vmul.f32 %v2543, 0.16666667
    %v2548 = vmul.f32 %v2544, 0.16666667
    %v2549 = vmul.f32 %v2545, 0.16666667
    %v2550 = vmul.f32 %v2546, 0.16666667
    %s2551 = scalar_lea.vmem %s7, 3840
    %vm2552 = vcmask 1031168
    %2553 = vst.msk [vmem:[%s2551] sm:$0xff] %vm2552, %v2547
    %2554 = vst.msk [vmem:[%s2551 + $0x8] sm:$0xff] %vm2552, %v2548
    %2555 = vst.msk [vmem:[%s2551 + $0x10] sm:$0xff] %vm2552, %v2549
    %2556 = vst.msk [vmem:[%s2551 + $0x18] sm:$0xff] %vm2552, %v2550
    // Predicated region
    $region63: #{fused_forward.1} parent=1 // pred_check
      _
    $region64: #{fused_forward.1} parent=1 // pred_check_branch
      %2558 = sbr.rel (0) target = $region66
    $region65: #{fused_forward.1} parent=1 // pred_region
      _
    $region66: #{fused_forward.1} parent=1 // pred_fallthru
      _
    // Predicated region
    $region67: #{fused_forward.1} parent=1 // pred_check
      _
    $region68: #{fused_forward.1} parent=1 // pred_check_branch
      %2560 = sbr.rel (0) target = $region70
    $region69: #{fused_forward.1} parent=1 // pred_region
      _
    $region70: #{fused_forward.1} parent=1 // pred_fallthru
      _
    %2561 = vsyncpa [#allocation6], 1
    %2562 = vsyncpa [#allocation8], 1

</llo_original>
